<compile_context>
chip_gen: v5e
topology: v5e:2x2
jax: 0.10.0
libtpu: 0.0.40
codegen_flags: <defaults>
</compile_context>

<pallas_src>
import functools

import jax
import jax.numpy as jnp
from jax import lax
from jax.experimental import pallas as pl
from jax.experimental.pallas import tpu as pltpu

B = 2      # batch_size
P = 8      # pad_length (== keyvalue_dense1 out-features)
E = 128    # embedding_size == encoder_units == decoder_units
KB = 128   # kb_size
V = 256    # vocab_size (global_vocab_size)
L = 4      # tokens per key-value entry
M = B * P  # fused row count
Q = E // P # E-chunks per row in the raw torch (B,E,P)->(B,P,E) reshape (= 16)


# ---------------------------------------------------------------------------
# Fused Pallas kernel: whole forward pass (minus the embedding gathers)
# ---------------------------------------------------------------------------
def kvmm_fused_kernel(x_ref, kv_ref,
                      ewih_ref, ewhh_ref, eb_ref,
                      dwih_ref, dwhh_ref, db_ref,
                      w1_ref, b1_ref, w2_ref, b2_ref, w3_ref, b3_ref,
                      wo_ref, bo_ref, wk1_ref, bk1b_ref, wk3_ref, bk3_ref,
                      o_ref, nd1_scr):
    bf16 = jnp.bfloat16
    f32 = jnp.float32

    def lstm(x16, wih_ref, whh_ref, b_ref):
        """PyTorch-gate-order LSTM over P steps; x16: (M, E) bf16, time-major rows."""
        # Hoisted input projection: one well-shaped matmul instead of P serial ones.
        xw = jnp.dot(x16, wih_ref[...], preferred_element_type=f32) + b_ref[...]  # (M, 4E) f32
        h = jnp.zeros((B, E), f32)
        c = jnp.zeros((B, E), f32)
        hs = []
        # P is tiny & static: fully unroll; every per-step access is a static,
        # contiguous 2-row slab (time-major) and h/c live in vregs.
        for t in range(P):
            gates = xw[t * B:(t + 1) * B, :] + jnp.dot(
                h.astype(bf16), whh_ref[...], preferred_element_type=f32)          # (B, 4E)
            i = jax.nn.sigmoid(gates[:, 0:E])
            f = jax.nn.sigmoid(gates[:, E:2 * E])
            g = jnp.tanh(gates[:, 2 * E:3 * E])
            o = jax.nn.sigmoid(gates[:, 3 * E:4 * E])
            c = f * c + i * g
            h = o * jnp.tanh(c)
            hs.append(h)
        return jnp.concatenate(hs, axis=0)                                          # (M, E) f32

    # dialogue branch (dialogue_dropout is identity in eval mode)
    enc = lstm(x_ref[...], ewih_ref, ewhh_ref, eb_ref)            # (M, E) f32
    enc16 = enc.astype(bf16)
    dec = lstm(enc16, dwih_ref, dwhh_ref, db_ref)                 # (M, E) f32
    dec16 = dec.astype(bf16)

    # key-value branch: one (Q*M, KB) @ (KB, P) matmul against the original wk1.
    # kv rows are fed q-major (r = q*M + m) so piece q is a contiguous, tile-aligned
    # row slice; 16 narrow lane-group stores rebuild the (M, E) lane-dense layout
    # that torch's raw (B,E,P)->(B,P,E) reshape implies.
    nd1_pre = jnp.dot(kv_ref[...], wk1_ref[...], preferred_element_type=f32)        # (Q*M, P)
    for q in range(Q):
        nd1_scr[:, q * P:(q + 1) * P] = nd1_pre[q * M:(q + 1) * M, :]
    nd1 = jnp.tanh(nd1_scr[...] + bk1b_ref[...])                                    # (M, E)
    # TODO(synk): keyvalue_dense2 is not computed — its output is discarded by
    # reshape2's [:, :pad_length] slice, so it never reaches n_out.
    nd3 = jnp.tanh(jnp.dot(nd1.astype(bf16), wk3_ref[...],
                           preferred_element_type=f32) + bk3_ref[...])              # (M, KB)

    # dense attention chain (all matmul operands bf16, math in f32)
    d1 = jnp.tanh(jnp.dot(enc16, w1_ref[...], preferred_element_type=f32) + b1_ref[...])
    d2 = jnp.tanh(jnp.dot(dec16, w2_ref[...], preferred_element_type=f32) + b2_ref[...])
    d3 = jnp.tanh(jnp.dot((d1 + d2).astype(bf16), w3_ref[...],
                          preferred_element_type=f32) + b3_ref[...])

    # F.softmax(dense3, dim=2) -> softmax over the feature (E) axis
    mx = jnp.max(d3, axis=-1, keepdims=True)
    ex = jnp.exp(d3 - mx)
    att = ex * pl.reciprocal(jnp.sum(ex, axis=-1, keepdims=True), approx=True)
    n_hidden = att * enc

    # dialogue_output(cat(enc, n_hidden, dim=2)): single (M, 2E) @ (2E, V) matmul
    eh = jnp.concatenate([enc16, n_hidden.astype(bf16)], axis=-1)                   # (M, 2E)
    out = jnp.dot(eh, wo_ref[...], preferred_element_type=f32) + bo_ref[...]        # (M, V)

    # reshape2: zero left-pad up to vocab_size, then n_out = output + n_dense3.
    # Two unmasked 128-lane-aligned stores; no zero block materialized.
    o_ref[:, :V - KB] = out[:, :V - KB]
    o_ref[:, V - KB:] = out[:, V - KB:] + nd3


# ---------------------------------------------------------------------------
# Wrapper
# ---------------------------------------------------------------------------
def kvmm_forward(params, input_dialogue, input_keyvalues):
    # TODO(synk): embedding gathers + the per-entry token sum stay in XLA glue
    # (data-dependent row gathers); everything else runs in the single fused kernel.
    emb_d = params['emb_d'][input_dialogue]                       # (B, P, E) f32
    # time-major rows m = t*B + b (layout plumbing only)
    x0_tm = jnp.transpose(emb_d, (1, 0, 2)).reshape(M, E).astype(jnp.bfloat16)

    emb_kv = params['emb_kv'][input_keyvalues]                    # (B, KB, L, E) f32
    kv_sum = jnp.sum(emb_kv, axis=2)                              # torch reshape(): sum over dim=2
    kv_x = jnp.reshape(kv_sum, (B, E, KB))                        # raw reshape, as in torch
    kv_x4 = jnp.reshape(kv_x, (B, P, Q, KB))                      # e = p*Q + q
    # q-major rows r = q*M + (p*B + b): piece q is contiguous inside the kernel
    kv_q = jnp.transpose(kv_x4, (2, 1, 0, 3)).reshape(Q * M, KB).astype(jnp.bfloat16)

    out_flat = pl.pallas_call(
        kvmm_fused_kernel,
        out_shape=jax.ShapeDtypeStruct((M, V), jnp.float32),
        scratch_shapes=[pltpu.VMEM((M, E), jnp.float32)],         # keyvalue_dense1 relayout
    )(x0_tm, kv_q,
      params['enc_wih'], params['enc_whh'], params['enc_b'],
      params['dec_wih'], params['dec_whh'], params['dec_b'],
      params['w1'], params['b1'], params['w2'], params['b2'],
      params['w3'], params['b3'], params['wo'], params['bo'],
      params['wk1'], params['bk1_big'], params['wk3'], params['bk3'])
    # rows are time-major -> (P, B, V) -> (B, P, V)
    return jnp.transpose(jnp.reshape(out_flat, (P, B, V)), (1, 0, 2))


def init_params(key):
    ks = jax.random.split(key, 20)
    s = 0.1
    n = lambda k, shape: (jax.random.normal(k, shape, jnp.float32) * s)
    bf = lambda k, shape: n(k, shape).astype(jnp.bfloat16)        # matmul weights in bf16
    p = {}
    # embeddings (nn.Embedding(vocab, E, padding_idx) -> zero the padding row)
    p['emb_d'] = n(ks[0], (V, E)).at[P].set(0.0)      # padding_idx = pad_length
    p['emb_kv'] = n(ks[1], (V, E)).at[KB].set(0.0)    # padding_idx analog of 431 (= kb_size)
    # LSTMs: weights pre-transposed to (E, 4E) bf16; bias = b_ih + b_hh, stored (1, 4E) f32
    p['enc_wih'] = bf(ks[2], (E, 4 * E))
    p['enc_whh'] = bf(ks[3], (E, 4 * E))
    p['enc_b'] = n(ks[4], (1, 4 * E))
    p['dec_wih'] = bf(ks[5], (E, 4 * E))
    p['dec_whh'] = bf(ks[6], (E, 4 * E))
    p['dec_b'] = n(ks[7], (1, 4 * E))
    # dense1/2/3 (Linear(E, E) + Tanh), weights stored as (in, out)
    p['w1'], p['b1'] = bf(ks[8], (E, E)), n(ks[9], (1, E))
    p['w2'], p['b2'] = bf(ks[10], (E, E)), n(ks[11], (1, E))
    p['w3'], p['b3'] = bf(ks[12], (E, E)), n(ks[13], (1, E))
    # dialogue_output: Linear(2E, V)
    p['wo'], p['bo'] = bf(ks[14], (2 * E, V)), n(ks[15], (1, V))
    # keyvalue_dense1: Linear(KB, P); keyvalue_dense3: Linear(E, KB)
    p['wk1'], p['bk1'] = bf(ks[16], (KB, P)), n(ks[17], (1, P))
    p['wk3'], p['bk3'] = bf(ks[18], (E, KB)), n(ks[19], (1, KB))
    # keyvalue_dense1 bias tiled to the lane-dense (1, E) layout (exact transform)
    p['bk1_big'] = jnp.tile(p['bk1'], (1, Q))                     # (1, E) f32
    return p


# ---------------------------------------------------------------------------
# Pure-JAX f32 reference mirroring the torch graph (for a runtime sanity check)
# ---------------------------------------------------------------------------
def kvmm_reference(params, input_dialogue, input_keyvalues):
    _HI = jax.lax.Precision.HIGHEST
    f32 = lambda a: a.astype(jnp.float32)

    def lstm_ref(x, wih, whh, b):
        wih, whh = f32(wih), f32(whh)
        def step(carry, x_t):
            h, c = carry
            gates = (jnp.matmul(x_t, wih, precision=_HI)
                     + jnp.matmul(h, whh, precision=_HI) + b)
            i = jax.nn.sigmoid(gates[:, 0:E]); f = jax.nn.sigmoid(gates[:, E:2 * E])
            g = jnp.tanh(gates[:, 2 * E:3 * E]); o = jax.nn.sigmoid(gates[:, 3 * E:4 * E])
            c = f * c + i * g
            h = o * jnp.tanh(c)
            return (h, c), h
        x_tm = jnp.transpose(x, (1, 0, 2))
        (_, _), hs = lax.scan(step, (jnp.zeros((B, E)), jnp.zeros((B, E))), x_tm)
        return jnp.transpose(hs, (1, 0, 2))

    emb_d = params['emb_d'][input_dialogue]
    enc = lstm_ref(emb_d, params['enc_wih'], params['enc_whh'], params['enc_b'])
    dec = lstm_ref(enc, params['dec_wih'], params['dec_whh'], params['dec_b'])
    d1 = jnp.tanh(jnp.matmul(enc, f32(params['w1']), precision=_HI) + params['b1'])
    d2 = jnp.tanh(jnp.matmul(dec, f32(params['w2']), precision=_HI) + params['b2'])
    d3 = jnp.tanh(jnp.matmul(d1 + d2, f32(params['w3']), precision=_HI) + params['b3'])
    att = jax.nn.softmax(d3, axis=2)
    n_hidden = att * enc
    out = (jnp.matmul(jnp.concatenate([enc, n_hidden], axis=2), f32(params['wo']),
                      precision=_HI) + params['bo'])                                # (B, P, V)
    emb_kv = params['emb_kv'][input_keyvalues]
    kv = jnp.reshape(jnp.sum(emb_kv, axis=2), (B, E, KB))
    nd1 = jnp.tanh(jnp.matmul(kv, f32(params['wk1']), precision=_HI) + params['bk1'])  # (B, E, P)
    nd1 = jnp.reshape(nd1, (B, P, E))
    nd3 = jnp.tanh(jnp.matmul(nd1, f32(params['wk3']), precision=_HI) + params['bk3'])  # (B, P, KB)
    nd3 = jnp.concatenate([jnp.zeros((B, P, V - KB), jnp.float32), nd3], axis=2)
    return out + nd3


if __name__ == "__main__":
    key = jax.random.PRNGKey(0)
    kp, kd, kk = jax.random.split(key, 3)
    params = init_params(kp)
    input_dialogue = jax.random.randint(kd, (B, P), 0, V, dtype=jnp.int32)
    input_keyvalues = jax.random.randint(kk, (B, KB, L), 0, V, dtype=jnp.int32)

    fwd = jax.jit(functools.partial(kvmm_forward, params))
    out = fwd(input_dialogue, input_keyvalues)
    jax.block_until_ready(out)
    assert out.shape == (B, P, V) and out.dtype == jnp.float32

    ref = kvmm_reference(params, input_dialogue, input_keyvalues)
    err = float(jnp.max(jnp.abs(out - ref)))
    assert err < 2e-2, f"max abs error vs reference: {err}"
    print("KERNEL_OK")
</pallas_src>

<mosaic_0001>
module attributes {stable_mosaic.version = 11 : i64} {
  func.func @kvmm_fused_kernel(%arg0: memref<16x128xbf16, #tpu.memory_space<vmem>>, %arg1: memref<256x128xbf16, #tpu.memory_space<vmem>>, %arg2: memref<128x512xbf16, #tpu.memory_space<vmem>>, %arg3: memref<128x512xbf16, #tpu.memory_space<vmem>>, %arg4: memref<1x512xf32, #tpu.memory_space<vmem>>, %arg5: memref<128x512xbf16, #tpu.memory_space<vmem>>, %arg6: memref<128x512xbf16, #tpu.memory_space<vmem>>, %arg7: memref<1x512xf32, #tpu.memory_space<vmem>>, %arg8: memref<128x128xbf16, #tpu.memory_space<vmem>>, %arg9: memref<1x128xf32, #tpu.memory_space<vmem>>, %arg10: memref<128x128xbf16, #tpu.memory_space<vmem>>, %arg11: memref<1x128xf32, #tpu.memory_space<vmem>>, %arg12: memref<128x128xbf16, #tpu.memory_space<vmem>>, %arg13: memref<1x128xf32, #tpu.memory_space<vmem>>, %arg14: memref<256x256xbf16, #tpu.memory_space<vmem>>, %arg15: memref<1x256xf32, #tpu.memory_space<vmem>>, %arg16: memref<128x8xbf16, #tpu.memory_space<vmem>>, %arg17: memref<1x128xf32, #tpu.memory_space<vmem>>, %arg18: memref<128x128xbf16, #tpu.memory_space<vmem>>, %arg19: memref<1x128xf32, #tpu.memory_space<vmem>>, %arg20: memref<16x256xf32, #tpu.memory_space<vmem>>, %arg21: memref<16x128xf32, #tpu.memory_space<vmem>>) attributes {dimension_semantics = [], scalar_prefetch = 0 : i64, scratch_operands = 1 : i64, tpu.core_type = #tpu.core_type<tc>} {
    %c0 = arith.constant 0 : index
    %c0_0 = arith.constant 0 : index
    %0 = vector.load %arg0[%c0, %c0_0] : memref<16x128xbf16, #tpu.memory_space<vmem>>, vector<16x128xbf16>
    %c0_1 = arith.constant 0 : index
    %c0_2 = arith.constant 0 : index
    %1 = vector.load %arg2[%c0_1, %c0_2] : memref<128x512xbf16, #tpu.memory_space<vmem>>, vector<128x512xbf16>
    %cst = arith.constant dense<0.000000e+00> : vector<16x512xf32>
    %2 = tpu.matmul %0, %1, %cst {dimension_numbers = #tpu.dot_dimension_numbers<[1], [0], [0], [1], [0, 0, 1, 1], [], []>} : vector<16x128xbf16>, vector<128x512xbf16>, vector<16x512xf32> -> vector<16x512xf32>
    %c0_3 = arith.constant 0 : index
    %c0_4 = arith.constant 0 : index
    %3 = vector.load %arg4[%c0_3, %c0_4] : memref<1x512xf32, #tpu.memory_space<vmem>>, vector<1x512xf32>
    %4 = vector.broadcast %3 : vector<1x512xf32> to vector<16x512xf32>
    %5 = arith.addf %2, %4 : vector<16x512xf32>
    %cst_5 = arith.constant 0.000000e+00 : f32
    %6 = vector.broadcast %cst_5 : f32 to vector<2x128xf32>
    %cst_6 = arith.constant 0.000000e+00 : f32
    %7 = vector.broadcast %cst_6 : f32 to vector<2x128xf32>
    %8 = vector.extract_strided_slice %5 {offsets = [0, 0], sizes = [2, 512], strides = [1, 1]} : vector<16x512xf32> to vector<2x512xf32>
    %9 = arith.truncf %6 : vector<2x128xf32> to vector<2x128xbf16>
    %c0_7 = arith.constant 0 : index
    %c0_8 = arith.constant 0 : index
    %10 = vector.load %arg3[%c0_7, %c0_8] : memref<128x512xbf16, #tpu.memory_space<vmem>>, vector<128x512xbf16>
    %cst_9 = arith.constant dense<0.000000e+00> : vector<2x512xf32>
    %11 = tpu.matmul %9, %10, %cst_9 {dimension_numbers = #tpu.dot_dimension_numbers<[1], [0], [0], [1], [0, 0, 1, 1], [], []>} : vector<2x128xbf16>, vector<128x512xbf16>, vector<2x512xf32> -> vector<2x512xf32>
    %12 = arith.addf %8, %11 : vector<2x512xf32>
    %13 = vector.extract_strided_slice %12 {offsets = [0, 0], sizes = [2, 128], strides = [1, 1]} : vector<2x512xf32> to vector<2x128xf32>
    %14 = arith.negf %13 : vector<2x128xf32>
    %15 = math.exp %14 : vector<2x128xf32>
    %cst_10 = arith.constant 1.000000e+00 : f32
    %16 = vector.broadcast %cst_10 : f32 to vector<2x128xf32>
    %17 = arith.addf %16, %15 : vector<2x128xf32>
    %18 = arith.divf %16, %17 : vector<2x128xf32>
    %19 = vector.extract_strided_slice %12 {offsets = [0, 128], sizes = [2, 128], strides = [1, 1]} : vector<2x512xf32> to vector<2x128xf32>
    %20 = arith.negf %19 : vector<2x128xf32>
    %21 = math.exp %20 : vector<2x128xf32>
    %cst_11 = arith.constant 1.000000e+00 : f32
    %22 = vector.broadcast %cst_11 : f32 to vector<2x128xf32>
    %23 = arith.addf %22, %21 : vector<2x128xf32>
    %24 = arith.divf %22, %23 : vector<2x128xf32>
    %25 = vector.extract_strided_slice %12 {offsets = [0, 256], sizes = [2, 128], strides = [1, 1]} : vector<2x512xf32> to vector<2x128xf32>
    %26 = math.tanh %25 : vector<2x128xf32>
    %27 = vector.extract_strided_slice %12 {offsets = [0, 384], sizes = [2, 128], strides = [1, 1]} : vector<2x512xf32> to vector<2x128xf32>
    %28 = arith.negf %27 : vector<2x128xf32>
    %29 = math.exp %28 : vector<2x128xf32>
    %cst_12 = arith.constant 1.000000e+00 : f32
    %30 = vector.broadcast %cst_12 : f32 to vector<2x128xf32>
    %31 = arith.addf %30, %29 : vector<2x128xf32>
    %32 = arith.divf %30, %31 : vector<2x128xf32>
    %33 = arith.mulf %24, %7 : vector<2x128xf32>
    %34 = arith.mulf %18, %26 : vector<2x128xf32>
    %35 = arith.addf %33, %34 : vector<2x128xf32>
    %36 = math.tanh %35 : vector<2x128xf32>
    %37 = arith.mulf %32, %36 : vector<2x128xf32>
    %38 = vector.extract_strided_slice %5 {offsets = [2, 0], sizes = [2, 512], strides = [1, 1]} : vector<16x512xf32> to vector<2x512xf32>
    %39 = arith.truncf %37 : vector<2x128xf32> to vector<2x128xbf16>
    %c0_13 = arith.constant 0 : index
    %c0_14 = arith.constant 0 : index
    %40 = vector.load %arg3[%c0_13, %c0_14] : memref<128x512xbf16, #tpu.memory_space<vmem>>, vector<128x512xbf16>
    %cst_15 = arith.constant dense<0.000000e+00> : vector<2x512xf32>
    %41 = tpu.matmul %39, %40, %cst_15 {dimension_numbers = #tpu.dot_dimension_numbers<[1], [0], [0], [1], [0, 0, 1, 1], [], []>} : vector<2x128xbf16>, vector<128x512xbf16>, vector<2x512xf32> -> vector<2x512xf32>
    %42 = arith.addf %38, %41 : vector<2x512xf32>
    %43 = vector.extract_strided_slice %42 {offsets = [0, 0], sizes = [2, 128], strides = [1, 1]} : vector<2x512xf32> to vector<2x128xf32>
    %44 = arith.negf %43 : vector<2x128xf32>
    %45 = math.exp %44 : vector<2x128xf32>
    %cst_16 = arith.constant 1.000000e+00 : f32
    %46 = vector.broadcast %cst_16 : f32 to vector<2x128xf32>
    %47 = arith.addf %46, %45 : vector<2x128xf32>
    %48 = arith.divf %46, %47 : vector<2x128xf32>
    %49 = vector.extract_strided_slice %42 {offsets = [0, 128], sizes = [2, 128], strides = [1, 1]} : vector<2x512xf32> to vector<2x128xf32>
    %50 = arith.negf %49 : vector<2x128xf32>
    %51 = math.exp %50 : vector<2x128xf32>
    %cst_17 = arith.constant 1.000000e+00 : f32
    %52 = vector.broadcast %cst_17 : f32 to vector<2x128xf32>
    %53 = arith.addf %52, %51 : vector<2x128xf32>
    %54 = arith.divf %52, %53 : vector<2x128xf32>
    %55 = vector.extract_strided_slice %42 {offsets = [0, 256], sizes = [2, 128], strides = [1, 1]} : vector<2x512xf32> to vector<2x128xf32>
    %56 = math.tanh %55 : vector<2x128xf32>
    %57 = vector.extract_strided_slice %42 {offsets = [0, 384], sizes = [2, 128], strides = [1, 1]} : vector<2x512xf32> to vector<2x128xf32>
    %58 = arith.negf %57 : vector<2x128xf32>
    %59 = math.exp %58 : vector<2x128xf32>
    %cst_18 = arith.constant 1.000000e+00 : f32
    %60 = vector.broadcast %cst_18 : f32 to vector<2x128xf32>
    %61 = arith.addf %60, %59 : vector<2x128xf32>
    %62 = arith.divf %60, %61 : vector<2x128xf32>
    %63 = arith.mulf %54, %35 : vector<2x128xf32>
    %64 = arith.mulf %48, %56 : vector<2x128xf32>
    %65 = arith.addf %63, %64 : vector<2x128xf32>
    %66 = math.tanh %65 : vector<2x128xf32>
    %67 = arith.mulf %62, %66 : vector<2x128xf32>
    %68 = vector.extract_strided_slice %5 {offsets = [4, 0], sizes = [2, 512], strides = [1, 1]} : vector<16x512xf32> to vector<2x512xf32>
    %69 = arith.truncf %67 : vector<2x128xf32> to vector<2x128xbf16>
    %c0_19 = arith.constant 0 : index
    %c0_20 = arith.constant 0 : index
    %70 = vector.load %arg3[%c0_19, %c0_20] : memref<128x512xbf16, #tpu.memory_space<vmem>>, vector<128x512xbf16>
    %cst_21 = arith.constant dense<0.000000e+00> : vector<2x512xf32>
    %71 = tpu.matmul %69, %70, %cst_21 {dimension_numbers = #tpu.dot_dimension_numbers<[1], [0], [0], [1], [0, 0, 1, 1], [], []>} : vector<2x128xbf16>, vector<128x512xbf16>, vector<2x512xf32> -> vector<2x512xf32>
    %72 = arith.addf %68, %71 : vector<2x512xf32>
    %73 = vector.extract_strided_slice %72 {offsets = [0, 0], sizes = [2, 128], strides = [1, 1]} : vector<2x512xf32> to vector<2x128xf32>
    %74 = arith.negf %73 : vector<2x128xf32>
    %75 = math.exp %74 : vector<2x128xf32>
    %cst_22 = arith.constant 1.000000e+00 : f32
    %76 = vector.broadcast %cst_22 : f32 to vector<2x128xf32>
    %77 = arith.addf %76, %75 : vector<2x128xf32>
    %78 = arith.divf %76, %77 : vector<2x128xf32>
    %79 = vector.extract_strided_slice %72 {offsets = [0, 128], sizes = [2, 128], strides = [1, 1]} : vector<2x512xf32> to vector<2x128xf32>
    %80 = arith.negf %79 : vector<2x128xf32>
    %81 = math.exp %80 : vector<2x128xf32>
    %cst_23 = arith.constant 1.000000e+00 : f32
    %82 = vector.broadcast %cst_23 : f32 to vector<2x128xf32>
    %83 = arith.addf %82, %81 : vector<2x128xf32>
    %84 = arith.divf %82, %83 : vector<2x128xf32>
    %85 = vector.extract_strided_slice %72 {offsets = [0, 256], sizes = [2, 128], strides = [1, 1]} : vector<2x512xf32> to vector<2x128xf32>
    %86 = math.tanh %85 : vector<2x128xf32>
    %87 = vector.extract_strided_slice %72 {offsets = [0, 384], sizes = [2, 128], strides = [1, 1]} : vector<2x512xf32> to vector<2x128xf32>
    %88 = arith.negf %87 : vector<2x128xf32>
    %89 = math.exp %88 : vector<2x128xf32>
    %cst_24 = arith.constant 1.000000e+00 : f32
    %90 = vector.broadcast %cst_24 : f32 to vector<2x128xf32>
    %91 = arith.addf %90, %89 : vector<2x128xf32>
    %92 = arith.divf %90, %91 : vector<2x128xf32>
    %93 = arith.mulf %84, %65 : vector<2x128xf32>
    %94 = arith.mulf %78, %86 : vector<2x128xf32>
    %95 = arith.addf %93, %94 : vector<2x128xf32>
    %96 = math.tanh %95 : vector<2x128xf32>
    %97 = arith.mulf %92, %96 : vector<2x128xf32>
    %98 = vector.extract_strided_slice %5 {offsets = [6, 0], sizes = [2, 512], strides = [1, 1]} : vector<16x512xf32> to vector<2x512xf32>
    %99 = arith.truncf %97 : vector<2x128xf32> to vector<2x128xbf16>
    %c0_25 = arith.constant 0 : index
    %c0_26 = arith.constant 0 : index
    %100 = vector.load %arg3[%c0_25, %c0_26] : memref<128x512xbf16, #tpu.memory_space<vmem>>, vector<128x512xbf16>
    %cst_27 = arith.constant dense<0.000000e+00> : vector<2x512xf32>
    %101 = tpu.matmul %99, %100, %cst_27 {dimension_numbers = #tpu.dot_dimension_numbers<[1], [0], [0], [1], [0, 0, 1, 1], [], []>} : vector<2x128xbf16>, vector<128x512xbf16>, vector<2x512xf32> -> vector<2x512xf32>
    %102 = arith.addf %98, %101 : vector<2x512xf32>
    %103 = vector.extract_strided_slice %102 {offsets = [0, 0], sizes = [2, 128], strides = [1, 1]} : vector<2x512xf32> to vector<2x128xf32>
    %104 = arith.negf %103 : vector<2x128xf32>
    %105 = math.exp %104 : vector<2x128xf32>
    %cst_28 = arith.constant 1.000000e+00 : f32
    %106 = vector.broadcast %cst_28 : f32 to vector<2x128xf32>
    %107 = arith.addf %106, %105 : vector<2x128xf32>
    %108 = arith.divf %106, %107 : vector<2x128xf32>
    %109 = vector.extract_strided_slice %102 {offsets = [0, 128], sizes = [2, 128], strides = [1, 1]} : vector<2x512xf32> to vector<2x128xf32>
    %110 = arith.negf %109 : vector<2x128xf32>
    %111 = math.exp %110 : vector<2x128xf32>
    %cst_29 = arith.constant 1.000000e+00 : f32
    %112 = vector.broadcast %cst_29 : f32 to vector<2x128xf32>
    %113 = arith.addf %112, %111 : vector<2x128xf32>
    %114 = arith.divf %112, %113 : vector<2x128xf32>
    %115 = vector.extract_strided_slice %102 {offsets = [0, 256], sizes = [2, 128], strides = [1, 1]} : vector<2x512xf32> to vector<2x128xf32>
    %116 = math.tanh %115 : vector<2x128xf32>
    %117 = vector.extract_strided_slice %102 {offsets = [0, 384], sizes = [2, 128], strides = [1, 1]} : vector<2x512xf32> to vector<2x128xf32>
    %118 = arith.negf %117 : vector<2x128xf32>
    %119 = math.exp %118 : vector<2x128xf32>
    %cst_30 = arith.constant 1.000000e+00 : f32
    %120 = vector.broadcast %cst_30 : f32 to vector<2x128xf32>
    %121 = arith.addf %120, %119 : vector<2x128xf32>
    %122 = arith.divf %120, %121 : vector<2x128xf32>
    %123 = arith.mulf %114, %95 : vector<2x128xf32>
    %124 = arith.mulf %108, %116 : vector<2x128xf32>
    %125 = arith.addf %123, %124 : vector<2x128xf32>
    %126 = math.tanh %125 : vector<2x128xf32>
    %127 = arith.mulf %122, %126 : vector<2x128xf32>
    %128 = vector.extract_strided_slice %5 {offsets = [8, 0], sizes = [2, 512], strides = [1, 1]} : vector<16x512xf32> to vector<2x512xf32>
    %129 = arith.truncf %127 : vector<2x128xf32> to vector<2x128xbf16>
    %c0_31 = arith.constant 0 : index
    %c0_32 = arith.constant 0 : index
    %130 = vector.load %arg3[%c0_31, %c0_32] : memref<128x512xbf16, #tpu.memory_space<vmem>>, vector<128x512xbf16>
    %cst_33 = arith.constant dense<0.000000e+00> : vector<2x512xf32>
    %131 = tpu.matmul %129, %130, %cst_33 {dimension_numbers = #tpu.dot_dimension_numbers<[1], [0], [0], [1], [0, 0, 1, 1], [], []>} : vector<2x128xbf16>, vector<128x512xbf16>, vector<2x512xf32> -> vector<2x512xf32>
    %132 = arith.addf %128, %131 : vector<2x512xf32>
    %133 = vector.extract_strided_slice %132 {offsets = [0, 0], sizes = [2, 128], strides = [1, 1]} : vector<2x512xf32> to vector<2x128xf32>
    %134 = arith.negf %133 : vector<2x128xf32>
    %135 = math.exp %134 : vector<2x128xf32>
    %cst_34 = arith.constant 1.000000e+00 : f32
    %136 = vector.broadcast %cst_34 : f32 to vector<2x128xf32>
    %137 = arith.addf %136, %135 : vector<2x128xf32>
    %138 = arith.divf %136, %137 : vector<2x128xf32>
    %139 = vector.extract_strided_slice %132 {offsets = [0, 128], sizes = [2, 128], strides = [1, 1]} : vector<2x512xf32> to vector<2x128xf32>
    %140 = arith.negf %139 : vector<2x128xf32>
    %141 = math.exp %140 : vector<2x128xf32>
    %cst_35 = arith.constant 1.000000e+00 : f32
    %142 = vector.broadcast %cst_35 : f32 to vector<2x128xf32>
    %143 = arith.addf %142, %141 : vector<2x128xf32>
    %144 = arith.divf %142, %143 : vector<2x128xf32>
    %145 = vector.extract_strided_slice %132 {offsets = [0, 256], sizes = [2, 128], strides = [1, 1]} : vector<2x512xf32> to vector<2x128xf32>
    %146 = math.tanh %145 : vector<2x128xf32>
    %147 = vector.extract_strided_slice %132 {offsets = [0, 384], sizes = [2, 128], strides = [1, 1]} : vector<2x512xf32> to vector<2x128xf32>
    %148 = arith.negf %147 : vector<2x128xf32>
    %149 = math.exp %148 : vector<2x128xf32>
    %cst_36 = arith.constant 1.000000e+00 : f32
    %150 = vector.broadcast %cst_36 : f32 to vector<2x128xf32>
    %151 = arith.addf %150, %149 : vector<2x128xf32>
    %152 = arith.divf %150, %151 : vector<2x128xf32>
    %153 = arith.mulf %144, %125 : vector<2x128xf32>
    %154 = arith.mulf %138, %146 : vector<2x128xf32>
    %155 = arith.addf %153, %154 : vector<2x128xf32>
    %156 = math.tanh %155 : vector<2x128xf32>
    %157 = arith.mulf %152, %156 : vector<2x128xf32>
    %158 = vector.extract_strided_slice %5 {offsets = [10, 0], sizes = [2, 512], strides = [1, 1]} : vector<16x512xf32> to vector<2x512xf32>
    %159 = arith.truncf %157 : vector<2x128xf32> to vector<2x128xbf16>
    %c0_37 = arith.constant 0 : index
    %c0_38 = arith.constant 0 : index
    %160 = vector.load %arg3[%c0_37, %c0_38] : memref<128x512xbf16, #tpu.memory_space<vmem>>, vector<128x512xbf16>
    %cst_39 = arith.constant dense<0.000000e+00> : vector<2x512xf32>
    %161 = tpu.matmul %159, %160, %cst_39 {dimension_numbers = #tpu.dot_dimension_numbers<[1], [0], [0], [1], [0, 0, 1, 1], [], []>} : vector<2x128xbf16>, vector<128x512xbf16>, vector<2x512xf32> -> vector<2x512xf32>
    %162 = arith.addf %158, %161 : vector<2x512xf32>
    %163 = vector.extract_strided_slice %162 {offsets = [0, 0], sizes = [2, 128], strides = [1, 1]} : vector<2x512xf32> to vector<2x128xf32>
    %164 = arith.negf %163 : vector<2x128xf32>
    %165 = math.exp %164 : vector<2x128xf32>
    %cst_40 = arith.constant 1.000000e+00 : f32
    %166 = vector.broadcast %cst_40 : f32 to vector<2x128xf32>
    %167 = arith.addf %166, %165 : vector<2x128xf32>
    %168 = arith.divf %166, %167 : vector<2x128xf32>
    %169 = vector.extract_strided_slice %162 {offsets = [0, 128], sizes = [2, 128], strides = [1, 1]} : vector<2x512xf32> to vector<2x128xf32>
    %170 = arith.negf %169 : vector<2x128xf32>
    %171 = math.exp %170 : vector<2x128xf32>
    %cst_41 = arith.constant 1.000000e+00 : f32
    %172 = vector.broadcast %cst_41 : f32 to vector<2x128xf32>
    %173 = arith.addf %172, %171 : vector<2x128xf32>
    %174 = arith.divf %172, %173 : vector<2x128xf32>
    %175 = vector.extract_strided_slice %162 {offsets = [0, 256], sizes = [2, 128], strides = [1, 1]} : vector<2x512xf32> to vector<2x128xf32>
    %176 = math.tanh %175 : vector<2x128xf32>
    %177 = vector.extract_strided_slice %162 {offsets = [0, 384], sizes = [2, 128], strides = [1, 1]} : vector<2x512xf32> to vector<2x128xf32>
    %178 = arith.negf %177 : vector<2x128xf32>
    %179 = math.exp %178 : vector<2x128xf32>
    %cst_42 = arith.constant 1.000000e+00 : f32
    %180 = vector.broadcast %cst_42 : f32 to vector<2x128xf32>
    %181 = arith.addf %180, %179 : vector<2x128xf32>
    %182 = arith.divf %180, %181 : vector<2x128xf32>
    %183 = arith.mulf %174, %155 : vector<2x128xf32>
    %184 = arith.mulf %168, %176 : vector<2x128xf32>
    %185 = arith.addf %183, %184 : vector<2x128xf32>
    %186 = math.tanh %185 : vector<2x128xf32>
    %187 = arith.mulf %182, %186 : vector<2x128xf32>
    %188 = vector.extract_strided_slice %5 {offsets = [12, 0], sizes = [2, 512], strides = [1, 1]} : vector<16x512xf32> to vector<2x512xf32>
    %189 = arith.truncf %187 : vector<2x128xf32> to vector<2x128xbf16>
    %c0_43 = arith.constant 0 : index
    %c0_44 = arith.constant 0 : index
    %190 = vector.load %arg3[%c0_43, %c0_44] : memref<128x512xbf16, #tpu.memory_space<vmem>>, vector<128x512xbf16>
    %cst_45 = arith.constant dense<0.000000e+00> : vector<2x512xf32>
    %191 = tpu.matmul %189, %190, %cst_45 {dimension_numbers = #tpu.dot_dimension_numbers<[1], [0], [0], [1], [0, 0, 1, 1], [], []>} : vector<2x128xbf16>, vector<128x512xbf16>, vector<2x512xf32> -> vector<2x512xf32>
    %192 = arith.addf %188, %191 : vector<2x512xf32>
    %193 = vector.extract_strided_slice %192 {offsets = [0, 0], sizes = [2, 128], strides = [1, 1]} : vector<2x512xf32> to vector<2x128xf32>
    %194 = arith.negf %193 : vector<2x128xf32>
    %195 = math.exp %194 : vector<2x128xf32>
    %cst_46 = arith.constant 1.000000e+00 : f32
    %196 = vector.broadcast %cst_46 : f32 to vector<2x128xf32>
    %197 = arith.addf %196, %195 : vector<2x128xf32>
    %198 = arith.divf %196, %197 : vector<2x128xf32>
    %199 = vector.extract_strided_slice %192 {offsets = [0, 128], sizes = [2, 128], strides = [1, 1]} : vector<2x512xf32> to vector<2x128xf32>
    %200 = arith.negf %199 : vector<2x128xf32>
    %201 = math.exp %200 : vector<2x128xf32>
    %cst_47 = arith.constant 1.000000e+00 : f32
    %202 = vector.broadcast %cst_47 : f32 to vector<2x128xf32>
    %203 = arith.addf %202, %201 : vector<2x128xf32>
    %204 = arith.divf %202, %203 : vector<2x128xf32>
    %205 = vector.extract_strided_slice %192 {offsets = [0, 256], sizes = [2, 128], strides = [1, 1]} : vector<2x512xf32> to vector<2x128xf32>
    %206 = math.tanh %205 : vector<2x128xf32>
    %207 = vector.extract_strided_slice %192 {offsets = [0, 384], sizes = [2, 128], strides = [1, 1]} : vector<2x512xf32> to vector<2x128xf32>
    %208 = arith.negf %207 : vector<2x128xf32>
    %209 = math.exp %208 : vector<2x128xf32>
    %cst_48 = arith.constant 1.000000e+00 : f32
    %210 = vector.broadcast %cst_48 : f32 to vector<2x128xf32>
    %211 = arith.addf %210, %209 : vector<2x128xf32>
    %212 = arith.divf %210, %211 : vector<2x128xf32>
    %213 = arith.mulf %204, %185 : vector<2x128xf32>
    %214 = arith.mulf %198, %206 : vector<2x128xf32>
    %215 = arith.addf %213, %214 : vector<2x128xf32>
    %216 = math.tanh %215 : vector<2x128xf32>
    %217 = arith.mulf %212, %216 : vector<2x128xf32>
    %218 = vector.extract_strided_slice %5 {offsets = [14, 0], sizes = [2, 512], strides = [1, 1]} : vector<16x512xf32> to vector<2x512xf32>
    %219 = arith.truncf %217 : vector<2x128xf32> to vector<2x128xbf16>
    %c0_49 = arith.constant 0 : index
    %c0_50 = arith.constant 0 : index
    %220 = vector.load %arg3[%c0_49, %c0_50] : memref<128x512xbf16, #tpu.memory_space<vmem>>, vector<128x512xbf16>
    %cst_51 = arith.constant dense<0.000000e+00> : vector<2x512xf32>
    %221 = tpu.matmul %219, %220, %cst_51 {dimension_numbers = #tpu.dot_dimension_numbers<[1], [0], [0], [1], [0, 0, 1, 1], [], []>} : vector<2x128xbf16>, vector<128x512xbf16>, vector<2x512xf32> -> vector<2x512xf32>
    %222 = arith.addf %218, %221 : vector<2x512xf32>
    %223 = vector.extract_strided_slice %222 {offsets = [0, 0], sizes = [2, 128], strides = [1, 1]} : vector<2x512xf32> to vector<2x128xf32>
    %224 = arith.negf %223 : vector<2x128xf32>
    %225 = math.exp %224 : vector<2x128xf32>
    %cst_52 = arith.constant 1.000000e+00 : f32
    %226 = vector.broadcast %cst_52 : f32 to vector<2x128xf32>
    %227 = arith.addf %226, %225 : vector<2x128xf32>
    %228 = arith.divf %226, %227 : vector<2x128xf32>
    %229 = vector.extract_strided_slice %222 {offsets = [0, 128], sizes = [2, 128], strides = [1, 1]} : vector<2x512xf32> to vector<2x128xf32>
    %230 = arith.negf %229 : vector<2x128xf32>
    %231 = math.exp %230 : vector<2x128xf32>
    %cst_53 = arith.constant 1.000000e+00 : f32
    %232 = vector.broadcast %cst_53 : f32 to vector<2x128xf32>
    %233 = arith.addf %232, %231 : vector<2x128xf32>
    %234 = arith.divf %232, %233 : vector<2x128xf32>
    %235 = vector.extract_strided_slice %222 {offsets = [0, 256], sizes = [2, 128], strides = [1, 1]} : vector<2x512xf32> to vector<2x128xf32>
    %236 = math.tanh %235 : vector<2x128xf32>
    %237 = vector.extract_strided_slice %222 {offsets = [0, 384], sizes = [2, 128], strides = [1, 1]} : vector<2x512xf32> to vector<2x128xf32>
    %238 = arith.negf %237 : vector<2x128xf32>
    %239 = math.exp %238 : vector<2x128xf32>
    %cst_54 = arith.constant 1.000000e+00 : f32
    %240 = vector.broadcast %cst_54 : f32 to vector<2x128xf32>
    %241 = arith.addf %240, %239 : vector<2x128xf32>
    %242 = arith.divf %240, %241 : vector<2x128xf32>
    %243 = arith.mulf %234, %215 : vector<2x128xf32>
    %244 = arith.mulf %228, %236 : vector<2x128xf32>
    %245 = arith.addf %243, %244 : vector<2x128xf32>
    %246 = math.tanh %245 : vector<2x128xf32>
    %247 = arith.mulf %242, %246 : vector<2x128xf32>
    %248 = tpu.concatenate %37, %67, %97, %127, %157, %187, %217, %247 in 0 : vector<2x128xf32>, vector<2x128xf32>, vector<2x128xf32>, vector<2x128xf32>, vector<2x128xf32>, vector<2x128xf32>, vector<2x128xf32>, vector<2x128xf32> -> vector<16x128xf32>
    %249 = arith.truncf %248 : vector<16x128xf32> to vector<16x128xbf16>
    %c0_55 = arith.constant 0 : index
    %c0_56 = arith.constant 0 : index
    %250 = vector.load %arg5[%c0_55, %c0_56] : memref<128x512xbf16, #tpu.memory_space<vmem>>, vector<128x512xbf16>
    %cst_57 = arith.constant dense<0.000000e+00> : vector<16x512xf32>
    %251 = tpu.matmul %249, %250, %cst_57 {dimension_numbers = #tpu.dot_dimension_numbers<[1], [0], [0], [1], [0, 0, 1, 1], [], []>} : vector<16x128xbf16>, vector<128x512xbf16>, vector<16x512xf32> -> vector<16x512xf32>
    %c0_58 = arith.constant 0 : index
    %c0_59 = arith.constant 0 : index
    %252 = vector.load %arg7[%c0_58, %c0_59] : memref<1x512xf32, #tpu.memory_space<vmem>>, vector<1x512xf32>
    %253 = vector.broadcast %252 : vector<1x512xf32> to vector<16x512xf32>
    %254 = arith.addf %251, %253 : vector<16x512xf32>
    %cst_60 = arith.constant 0.000000e+00 : f32
    %255 = vector.broadcast %cst_60 : f32 to vector<2x128xf32>
    %cst_61 = arith.constant 0.000000e+00 : f32
    %256 = vector.broadcast %cst_61 : f32 to vector<2x128xf32>
    %257 = vector.extract_strided_slice %254 {offsets = [0, 0], sizes = [2, 512], strides = [1, 1]} : vector<16x512xf32> to vector<2x512xf32>
    %258 = arith.truncf %255 : vector<2x128xf32> to vector<2x128xbf16>
    %c0_62 = arith.constant 0 : index
    %c0_63 = arith.constant 0 : index
    %259 = vector.load %arg6[%c0_62, %c0_63] : memref<128x512xbf16, #tpu.memory_space<vmem>>, vector<128x512xbf16>
    %cst_64 = arith.constant dense<0.000000e+00> : vector<2x512xf32>
    %260 = tpu.matmul %258, %259, %cst_64 {dimension_numbers = #tpu.dot_dimension_numbers<[1], [0], [0], [1], [0, 0, 1, 1], [], []>} : vector<2x128xbf16>, vector<128x512xbf16>, vector<2x512xf32> -> vector<2x512xf32>
    %261 = arith.addf %257, %260 : vector<2x512xf32>
    %262 = vector.extract_strided_slice %261 {offsets = [0, 0], sizes = [2, 128], strides = [1, 1]} : vector<2x512xf32> to vector<2x128xf32>
    %263 = arith.negf %262 : vector<2x128xf32>
    %264 = math.exp %263 : vector<2x128xf32>
    %cst_65 = arith.constant 1.000000e+00 : f32
    %265 = vector.broadcast %cst_65 : f32 to vector<2x128xf32>
    %266 = arith.addf %265, %264 : vector<2x128xf32>
    %267 = arith.divf %265, %266 : vector<2x128xf32>
    %268 = vector.extract_strided_slice %261 {offsets = [0, 128], sizes = [2, 128], strides = [1, 1]} : vector<2x512xf32> to vector<2x128xf32>
    %269 = arith.negf %268 : vector<2x128xf32>
    %270 = math.exp %269 : vector<2x128xf32>
    %cst_66 = arith.constant 1.000000e+00 : f32
    %271 = vector.broadcast %cst_66 : f32 to vector<2x128xf32>
    %272 = arith.addf %271, %270 : vector<2x128xf32>
    %273 = arith.divf %271, %272 : vector<2x128xf32>
    %274 = vector.extract_strided_slice %261 {offsets = [0, 256], sizes = [2, 128], strides = [1, 1]} : vector<2x512xf32> to vector<2x128xf32>
    %275 = math.tanh %274 : vector<2x128xf32>
    %276 = vector.extract_strided_slice %261 {offsets = [0, 384], sizes = [2, 128], strides = [1, 1]} : vector<2x512xf32> to vector<2x128xf32>
    %277 = arith.negf %276 : vector<2x128xf32>
    %278 = math.exp %277 : vector<2x128xf32>
    %cst_67 = arith.constant 1.000000e+00 : f32
    %279 = vector.broadcast %cst_67 : f32 to vector<2x128xf32>
    %280 = arith.addf %279, %278 : vector<2x128xf32>
    %281 = arith.divf %279, %280 : vector<2x128xf32>
    %282 = arith.mulf %273, %256 : vector<2x128xf32>
    %283 = arith.mulf %267, %275 : vector<2x128xf32>
    %284 = arith.addf %282, %283 : vector<2x128xf32>
    %285 = math.tanh %284 : vector<2x128xf32>
    %286 = arith.mulf %281, %285 : vector<2x128xf32>
    %287 = vector.extract_strided_slice %254 {offsets = [2, 0], sizes = [2, 512], strides = [1, 1]} : vector<16x512xf32> to vector<2x512xf32>
    %288 = arith.truncf %286 : vector<2x128xf32> to vector<2x128xbf16>
    %c0_68 = arith.constant 0 : index
    %c0_69 = arith.constant 0 : index
    %289 = vector.load %arg6[%c0_68, %c0_69] : memref<128x512xbf16, #tpu.memory_space<vmem>>, vector<128x512xbf16>
    %cst_70 = arith.constant dense<0.000000e+00> : vector<2x512xf32>
    %290 = tpu.matmul %288, %289, %cst_70 {dimension_numbers = #tpu.dot_dimension_numbers<[1], [0], [0], [1], [0, 0, 1, 1], [], []>} : vector<2x128xbf16>, vector<128x512xbf16>, vector<2x512xf32> -> vector<2x512xf32>
    %291 = arith.addf %287, %290 : vector<2x512xf32>
    %292 = vector.extract_strided_slice %291 {offsets = [0, 0], sizes = [2, 128], strides = [1, 1]} : vector<2x512xf32> to vector<2x128xf32>
    %293 = arith.negf %292 : vector<2x128xf32>
    %294 = math.exp %293 : vector<2x128xf32>
    %cst_71 = arith.constant 1.000000e+00 : f32
    %295 = vector.broadcast %cst_71 : f32 to vector<2x128xf32>
    %296 = arith.addf %295, %294 : vector<2x128xf32>
    %297 = arith.divf %295, %296 : vector<2x128xf32>
    %298 = vector.extract_strided_slice %291 {offsets = [0, 128], sizes = [2, 128], strides = [1, 1]} : vector<2x512xf32> to vector<2x128xf32>
    %299 = arith.negf %298 : vector<2x128xf32>
    %300 = math.exp %299 : vector<2x128xf32>
    %cst_72 = arith.constant 1.000000e+00 : f32
    %301 = vector.broadcast %cst_72 : f32 to vector<2x128xf32>
    %302 = arith.addf %301, %300 : vector<2x128xf32>
    %303 = arith.divf %301, %302 : vector<2x128xf32>
    %304 = vector.extract_strided_slice %291 {offsets = [0, 256], sizes = [2, 128], strides = [1, 1]} : vector<2x512xf32> to vector<2x128xf32>
    %305 = math.tanh %304 : vector<2x128xf32>
    %306 = vector.extract_strided_slice %291 {offsets = [0, 384], sizes = [2, 128], strides = [1, 1]} : vector<2x512xf32> to vector<2x128xf32>
    %307 = arith.negf %306 : vector<2x128xf32>
    %308 = math.exp %307 : vector<2x128xf32>
    %cst_73 = arith.constant 1.000000e+00 : f32
    %309 = vector.broadcast %cst_73 : f32 to vector<2x128xf32>
    %310 = arith.addf %309, %308 : vector<2x128xf32>
    %311 = arith.divf %309, %310 : vector<2x128xf32>
    %312 = arith.mulf %303, %284 : vector<2x128xf32>
    %313 = arith.mulf %297, %305 : vector<2x128xf32>
    %314 = arith.addf %312, %313 : vector<2x128xf32>
    %315 = math.tanh %314 : vector<2x128xf32>
    %316 = arith.mulf %311, %315 : vector<2x128xf32>
    %317 = vector.extract_strided_slice %254 {offsets = [4, 0], sizes = [2, 512], strides = [1, 1]} : vector<16x512xf32> to vector<2x512xf32>
    %318 = arith.truncf %316 : vector<2x128xf32> to vector<2x128xbf16>
    %c0_74 = arith.constant 0 : index
    %c0_75 = arith.constant 0 : index
    %319 = vector.load %arg6[%c0_74, %c0_75] : memref<128x512xbf16, #tpu.memory_space<vmem>>, vector<128x512xbf16>
    %cst_76 = arith.constant dense<0.000000e+00> : vector<2x512xf32>
    %320 = tpu.matmul %318, %319, %cst_76 {dimension_numbers = #tpu.dot_dimension_numbers<[1], [0], [0], [1], [0, 0, 1, 1], [], []>} : vector<2x128xbf16>, vector<128x512xbf16>, vector<2x512xf32> -> vector<2x512xf32>
    %321 = arith.addf %317, %320 : vector<2x512xf32>
    %322 = vector.extract_strided_slice %321 {offsets = [0, 0], sizes = [2, 128], strides = [1, 1]} : vector<2x512xf32> to vector<2x128xf32>
    %323 = arith.negf %322 : vector<2x128xf32>
    %324 = math.exp %323 : vector<2x128xf32>
    %cst_77 = arith.constant 1.000000e+00 : f32
    %325 = vector.broadcast %cst_77 : f32 to vector<2x128xf32>
    %326 = arith.addf %325, %324 : vector<2x128xf32>
    %327 = arith.divf %325, %326 : vector<2x128xf32>
    %328 = vector.extract_strided_slice %321 {offsets = [0, 128], sizes = [2, 128], strides = [1, 1]} : vector<2x512xf32> to vector<2x128xf32>
    %329 = arith.negf %328 : vector<2x128xf32>
    %330 = math.exp %329 : vector<2x128xf32>
    %cst_78 = arith.constant 1.000000e+00 : f32
    %331 = vector.broadcast %cst_78 : f32 to vector<2x128xf32>
    %332 = arith.addf %331, %330 : vector<2x128xf32>
    %333 = arith.divf %331, %332 : vector<2x128xf32>
    %334 = vector.extract_strided_slice %321 {offsets = [0, 256], sizes = [2, 128], strides = [1, 1]} : vector<2x512xf32> to vector<2x128xf32>
    %335 = math.tanh %334 : vector<2x128xf32>
    %336 = vector.extract_strided_slice %321 {offsets = [0, 384], sizes = [2, 128], strides = [1, 1]} : vector<2x512xf32> to vector<2x128xf32>
    %337 = arith.negf %336 : vector<2x128xf32>
    %338 = math.exp %337 : vector<2x128xf32>
    %cst_79 = arith.constant 1.000000e+00 : f32
    %339 = vector.broadcast %cst_79 : f32 to vector<2x128xf32>
    %340 = arith.addf %339, %338 : vector<2x128xf32>
    %341 = arith.divf %339, %340 : vector<2x128xf32>
    %342 = arith.mulf %333, %314 : vector<2x128xf32>
    %343 = arith.mulf %327, %335 : vector<2x128xf32>
    %344 = arith.addf %342, %343 : vector<2x128xf32>
    %345 = math.tanh %344 : vector<2x128xf32>
    %346 = arith.mulf %341, %345 : vector<2x128xf32>
    %347 = vector.extract_strided_slice %254 {offsets = [6, 0], sizes = [2, 512], strides = [1, 1]} : vector<16x512xf32> to vector<2x512xf32>
    %348 = arith.truncf %346 : vector<2x128xf32> to vector<2x128xbf16>
    %c0_80 = arith.constant 0 : index
    %c0_81 = arith.constant 0 : index
    %349 = vector.load %arg6[%c0_80, %c0_81] : memref<128x512xbf16, #tpu.memory_space<vmem>>, vector<128x512xbf16>
    %cst_82 = arith.constant dense<0.000000e+00> : vector<2x512xf32>
    %350 = tpu.matmul %348, %349, %cst_82 {dimension_numbers = #tpu.dot_dimension_numbers<[1], [0], [0], [1], [0, 0, 1, 1], [], []>} : vector<2x128xbf16>, vector<128x512xbf16>, vector<2x512xf32> -> vector<2x512xf32>
    %351 = arith.addf %347, %350 : vector<2x512xf32>
    %352 = vector.extract_strided_slice %351 {offsets = [0, 0], sizes = [2, 128], strides = [1, 1]} : vector<2x512xf32> to vector<2x128xf32>
    %353 = arith.negf %352 : vector<2x128xf32>
    %354 = math.exp %353 : vector<2x128xf32>
    %cst_83 = arith.constant 1.000000e+00 : f32
    %355 = vector.broadcast %cst_83 : f32 to vector<2x128xf32>
    %356 = arith.addf %355, %354 : vector<2x128xf32>
    %357 = arith.divf %355, %356 : vector<2x128xf32>
    %358 = vector.extract_strided_slice %351 {offsets = [0, 128], sizes = [2, 128], strides = [1, 1]} : vector<2x512xf32> to vector<2x128xf32>
    %359 = arith.negf %358 : vector<2x128xf32>
    %360 = math.exp %359 : vector<2x128xf32>
    %cst_84 = arith.constant 1.000000e+00 : f32
    %361 = vector.broadcast %cst_84 : f32 to vector<2x128xf32>
    %362 = arith.addf %361, %360 : vector<2x128xf32>
    %363 = arith.divf %361, %362 : vector<2x128xf32>
    %364 = vector.extract_strided_slice %351 {offsets = [0, 256], sizes = [2, 128], strides = [1, 1]} : vector<2x512xf32> to vector<2x128xf32>
    %365 = math.tanh %364 : vector<2x128xf32>
    %366 = vector.extract_strided_slice %351 {offsets = [0, 384], sizes = [2, 128], strides = [1, 1]} : vector<2x512xf32> to vector<2x128xf32>
    %367 = arith.negf %366 : vector<2x128xf32>
    %368 = math.exp %367 : vector<2x128xf32>
    %cst_85 = arith.constant 1.000000e+00 : f32
    %369 = vector.broadcast %cst_85 : f32 to vector<2x128xf32>
    %370 = arith.addf %369, %368 : vector<2x128xf32>
    %371 = arith.divf %369, %370 : vector<2x128xf32>
    %372 = arith.mulf %363, %344 : vector<2x128xf32>
    %373 = arith.mulf %357, %365 : vector<2x128xf32>
    %374 = arith.addf %372, %373 : vector<2x128xf32>
    %375 = math.tanh %374 : vector<2x128xf32>
    %376 = arith.mulf %371, %375 : vector<2x128xf32>
    %377 = vector.extract_strided_slice %254 {offsets = [8, 0], sizes = [2, 512], strides = [1, 1]} : vector<16x512xf32> to vector<2x512xf32>
    %378 = arith.truncf %376 : vector<2x128xf32> to vector<2x128xbf16>
    %c0_86 = arith.constant 0 : index
    %c0_87 = arith.constant 0 : index
    %379 = vector.load %arg6[%c0_86, %c0_87] : memref<128x512xbf16, #tpu.memory_space<vmem>>, vector<128x512xbf16>
    %cst_88 = arith.constant dense<0.000000e+00> : vector<2x512xf32>
    %380 = tpu.matmul %378, %379, %cst_88 {dimension_numbers = #tpu.dot_dimension_numbers<[1], [0], [0], [1], [0, 0, 1, 1], [], []>} : vector<2x128xbf16>, vector<128x512xbf16>, vector<2x512xf32> -> vector<2x512xf32>
    %381 = arith.addf %377, %380 : vector<2x512xf32>
    %382 = vector.extract_strided_slice %381 {offsets = [0, 0], sizes = [2, 128], strides = [1, 1]} : vector<2x512xf32> to vector<2x128xf32>
    %383 = arith.negf %382 : vector<2x128xf32>
    %384 = math.exp %383 : vector<2x128xf32>
    %cst_89 = arith.constant 1.000000e+00 : f32
    %385 = vector.broadcast %cst_89 : f32 to vector<2x128xf32>
    %386 = arith.addf %385, %384 : vector<2x128xf32>
    %387 = arith.divf %385, %386 : vector<2x128xf32>
    %388 = vector.extract_strided_slice %381 {offsets = [0, 128], sizes = [2, 128], strides = [1, 1]} : vector<2x512xf32> to vector<2x128xf32>
    %389 = arith.negf %388 : vector<2x128xf32>
    %390 = math.exp %389 : vector<2x128xf32>
    %cst_90 = arith.constant 1.000000e+00 : f32
    %391 = vector.broadcast %cst_90 : f32 to vector<2x128xf32>
    %392 = arith.addf %391, %390 : vector<2x128xf32>
    %393 = arith.divf %391, %392 : vector<2x128xf32>
    %394 = vector.extract_strided_slice %381 {offsets = [0, 256], sizes = [2, 128], strides = [1, 1]} : vector<2x512xf32> to vector<2x128xf32>
    %395 = math.tanh %394 : vector<2x128xf32>
    %396 = vector.extract_strided_slice %381 {offsets = [0, 384], sizes = [2, 128], strides = [1, 1]} : vector<2x512xf32> to vector<2x128xf32>
    %397 = arith.negf %396 : vector<2x128xf32>
    %398 = math.exp %397 : vector<2x128xf32>
    %cst_91 = arith.constant 1.000000e+00 : f32
    %399 = vector.broadcast %cst_91 : f32 to vector<2x128xf32>
    %400 = arith.addf %399, %398 : vector<2x128xf32>
    %401 = arith.divf %399, %400 : vector<2x128xf32>
    %402 = arith.mulf %393, %374 : vector<2x128xf32>
    %403 = arith.mulf %387, %395 : vector<2x128xf32>
    %404 = arith.addf %402, %403 : vector<2x128xf32>
    %405 = math.tanh %404 : vector<2x128xf32>
    %406 = arith.mulf %401, %405 : vector<2x128xf32>
    %407 = vector.extract_strided_slice %254 {offsets = [10, 0], sizes = [2, 512], strides = [1, 1]} : vector<16x512xf32> to vector<2x512xf32>
    %408 = arith.truncf %406 : vector<2x128xf32> to vector<2x128xbf16>
    %c0_92 = arith.constant 0 : index
    %c0_93 = arith.constant 0 : index
    %409 = vector.load %arg6[%c0_92, %c0_93] : memref<128x512xbf16, #tpu.memory_space<vmem>>, vector<128x512xbf16>
    %cst_94 = arith.constant dense<0.000000e+00> : vector<2x512xf32>
    %410 = tpu.matmul %408, %409, %cst_94 {dimension_numbers = #tpu.dot_dimension_numbers<[1], [0], [0], [1], [0, 0, 1, 1], [], []>} : vector<2x128xbf16>, vector<128x512xbf16>, vector<2x512xf32> -> vector<2x512xf32>
    %411 = arith.addf %407, %410 : vector<2x512xf32>
    %412 = vector.extract_strided_slice %411 {offsets = [0, 0], sizes = [2, 128], strides = [1, 1]} : vector<2x512xf32> to vector<2x128xf32>
    %413 = arith.negf %412 : vector<2x128xf32>
    %414 = math.exp %413 : vector<2x128xf32>
    %cst_95 = arith.constant 1.000000e+00 : f32
    %415 = vector.broadcast %cst_95 : f32 to vector<2x128xf32>
    %416 = arith.addf %415, %414 : vector<2x128xf32>
    %417 = arith.divf %415, %416 : vector<2x128xf32>
    %418 = vector.extract_strided_slice %411 {offsets = [0, 128], sizes = [2, 128], strides = [1, 1]} : vector<2x512xf32> to vector<2x128xf32>
    %419 = arith.negf %418 : vector<2x128xf32>
    %420 = math.exp %419 : vector<2x128xf32>
    %cst_96 = arith.constant 1.000000e+00 : f32
    %421 = vector.broadcast %cst_96 : f32 to vector<2x128xf32>
    %422 = arith.addf %421, %420 : vector<2x128xf32>
    %423 = arith.divf %421, %422 : vector<2x128xf32>
    %424 = vector.extract_strided_slice %411 {offsets = [0, 256], sizes = [2, 128], strides = [1, 1]} : vector<2x512xf32> to vector<2x128xf32>
    %425 = math.tanh %424 : vector<2x128xf32>
    %426 = vector.extract_strided_slice %411 {offsets = [0, 384], sizes = [2, 128], strides = [1, 1]} : vector<2x512xf32> to vector<2x128xf32>
    %427 = arith.negf %426 : vector<2x128xf32>
    %428 = math.exp %427 : vector<2x128xf32>
    %cst_97 = arith.constant 1.000000e+00 : f32
    %429 = vector.broadcast %cst_97 : f32 to vector<2x128xf32>
    %430 = arith.addf %429, %428 : vector<2x128xf32>
    %431 = arith.divf %429, %430 : vector<2x128xf32>
    %432 = arith.mulf %423, %404 : vector<2x128xf32>
    %433 = arith.mulf %417, %425 : vector<2x128xf32>
    %434 = arith.addf %432, %433 : vector<2x128xf32>
    %435 = math.tanh %434 : vector<2x128xf32>
    %436 = arith.mulf %431, %435 : vector<2x128xf32>
    %437 = vector.extract_strided_slice %254 {offsets = [12, 0], sizes = [2, 512], strides = [1, 1]} : vector<16x512xf32> to vector<2x512xf32>
    %438 = arith.truncf %436 : vector<2x128xf32> to vector<2x128xbf16>
    %c0_98 = arith.constant 0 : index
    %c0_99 = arith.constant 0 : index
    %439 = vector.load %arg6[%c0_98, %c0_99] : memref<128x512xbf16, #tpu.memory_space<vmem>>, vector<128x512xbf16>
    %cst_100 = arith.constant dense<0.000000e+00> : vector<2x512xf32>
    %440 = tpu.matmul %438, %439, %cst_100 {dimension_numbers = #tpu.dot_dimension_numbers<[1], [0], [0], [1], [0, 0, 1, 1], [], []>} : vector<2x128xbf16>, vector<128x512xbf16>, vector<2x512xf32> -> vector<2x512xf32>
    %441 = arith.addf %437, %440 : vector<2x512xf32>
    %442 = vector.extract_strided_slice %441 {offsets = [0, 0], sizes = [2, 128], strides = [1, 1]} : vector<2x512xf32> to vector<2x128xf32>
    %443 = arith.negf %442 : vector<2x128xf32>
    %444 = math.exp %443 : vector<2x128xf32>
    %cst_101 = arith.constant 1.000000e+00 : f32
    %445 = vector.broadcast %cst_101 : f32 to vector<2x128xf32>
    %446 = arith.addf %445, %444 : vector<2x128xf32>
    %447 = arith.divf %445, %446 : vector<2x128xf32>
    %448 = vector.extract_strided_slice %441 {offsets = [0, 128], sizes = [2, 128], strides = [1, 1]} : vector<2x512xf32> to vector<2x128xf32>
    %449 = arith.negf %448 : vector<2x128xf32>
    %450 = math.exp %449 : vector<2x128xf32>
    %cst_102 = arith.constant 1.000000e+00 : f32
    %451 = vector.broadcast %cst_102 : f32 to vector<2x128xf32>
    %452 = arith.addf %451, %450 : vector<2x128xf32>
    %453 = arith.divf %451, %452 : vector<2x128xf32>
    %454 = vector.extract_strided_slice %441 {offsets = [0, 256], sizes = [2, 128], strides = [1, 1]} : vector<2x512xf32> to vector<2x128xf32>
    %455 = math.tanh %454 : vector<2x128xf32>
    %456 = vector.extract_strided_slice %441 {offsets = [0, 384], sizes = [2, 128], strides = [1, 1]} : vector<2x512xf32> to vector<2x128xf32>
    %457 = arith.negf %456 : vector<2x128xf32>
    %458 = math.exp %457 : vector<2x128xf32>
    %cst_103 = arith.constant 1.000000e+00 : f32
    %459 = vector.broadcast %cst_103 : f32 to vector<2x128xf32>
    %460 = arith.addf %459, %458 : vector<2x128xf32>
    %461 = arith.divf %459, %460 : vector<2x128xf32>
    %462 = arith.mulf %453, %434 : vector<2x128xf32>
    %463 = arith.mulf %447, %455 : vector<2x128xf32>
    %464 = arith.addf %462, %463 : vector<2x128xf32>
    %465 = math.tanh %464 : vector<2x128xf32>
    %466 = arith.mulf %461, %465 : vector<2x128xf32>
    %467 = vector.extract_strided_slice %254 {offsets = [14, 0], sizes = [2, 512], strides = [1, 1]} : vector<16x512xf32> to vector<2x512xf32>
    %468 = arith.truncf %466 : vector<2x128xf32> to vector<2x128xbf16>
    %c0_104 = arith.constant 0 : index
    %c0_105 = arith.constant 0 : index
    %469 = vector.load %arg6[%c0_104, %c0_105] : memref<128x512xbf16, #tpu.memory_space<vmem>>, vector<128x512xbf16>
    %cst_106 = arith.constant dense<0.000000e+00> : vector<2x512xf32>
    %470 = tpu.matmul %468, %469, %cst_106 {dimension_numbers = #tpu.dot_dimension_numbers<[1], [0], [0], [1], [0, 0, 1, 1], [], []>} : vector<2x128xbf16>, vector<128x512xbf16>, vector<2x512xf32> -> vector<2x512xf32>
    %471 = arith.addf %467, %470 : vector<2x512xf32>
    %472 = vector.extract_strided_slice %471 {offsets = [0, 0], sizes = [2, 128], strides = [1, 1]} : vector<2x512xf32> to vector<2x128xf32>
    %473 = arith.negf %472 : vector<2x128xf32>
    %474 = math.exp %473 : vector<2x128xf32>
    %cst_107 = arith.constant 1.000000e+00 : f32
    %475 = vector.broadcast %cst_107 : f32 to vector<2x128xf32>
    %476 = arith.addf %475, %474 : vector<2x128xf32>
    %477 = arith.divf %475, %476 : vector<2x128xf32>
    %478 = vector.extract_strided_slice %471 {offsets = [0, 128], sizes = [2, 128], strides = [1, 1]} : vector<2x512xf32> to vector<2x128xf32>
    %479 = arith.negf %478 : vector<2x128xf32>
    %480 = math.exp %479 : vector<2x128xf32>
    %cst_108 = arith.constant 1.000000e+00 : f32
    %481 = vector.broadcast %cst_108 : f32 to vector<2x128xf32>
    %482 = arith.addf %481, %480 : vector<2x128xf32>
    %483 = arith.divf %481, %482 : vector<2x128xf32>
    %484 = vector.extract_strided_slice %471 {offsets = [0, 256], sizes = [2, 128], strides = [1, 1]} : vector<2x512xf32> to vector<2x128xf32>
    %485 = math.tanh %484 : vector<2x128xf32>
    %486 = vector.extract_strided_slice %471 {offsets = [0, 384], sizes = [2, 128], strides = [1, 1]} : vector<2x512xf32> to vector<2x128xf32>
    %487 = arith.negf %486 : vector<2x128xf32>
    %488 = math.exp %487 : vector<2x128xf32>
    %cst_109 = arith.constant 1.000000e+00 : f32
    %489 = vector.broadcast %cst_109 : f32 to vector<2x128xf32>
    %490 = arith.addf %489, %488 : vector<2x128xf32>
    %491 = arith.divf %489, %490 : vector<2x128xf32>
    %492 = arith.mulf %483, %464 : vector<2x128xf32>
    %493 = arith.mulf %477, %485 : vector<2x128xf32>
    %494 = arith.addf %492, %493 : vector<2x128xf32>
    %495 = math.tanh %494 : vector<2x128xf32>
    %496 = arith.mulf %491, %495 : vector<2x128xf32>
    %497 = tpu.concatenate %286, %316, %346, %376, %406, %436, %466, %496 in 0 : vector<2x128xf32>, vector<2x128xf32>, vector<2x128xf32>, vector<2x128xf32>, vector<2x128xf32>, vector<2x128xf32>, vector<2x128xf32>, vector<2x128xf32> -> vector<16x128xf32>
    %498 = arith.truncf %497 : vector<16x128xf32> to vector<16x128xbf16>
    %c0_110 = arith.constant 0 : index
    %c0_111 = arith.constant 0 : index
    %499 = vector.load %arg1[%c0_110, %c0_111] : memref<256x128xbf16, #tpu.memory_space<vmem>>, vector<256x128xbf16>
    %c0_112 = arith.constant 0 : index
    %c0_113 = arith.constant 0 : index
    %500 = vector.load %arg16[%c0_112, %c0_113] : memref<128x8xbf16, #tpu.memory_space<vmem>>, vector<128x8xbf16>
    %cst_114 = arith.constant dense<0.000000e+00> : vector<256x8xf32>
    %501 = tpu.matmul %499, %500, %cst_114 {dimension_numbers = #tpu.dot_dimension_numbers<[1], [0], [0], [1], [0, 0, 1, 1], [], []>} : vector<256x128xbf16>, vector<128x8xbf16>, vector<256x8xf32> -> vector<256x8xf32>
    %502 = vector.extract_strided_slice %501 {offsets = [0, 0], sizes = [16, 8], strides = [1, 1]} : vector<256x8xf32> to vector<16x8xf32>
    %c0_115 = arith.constant 0 : index
    %c0_116 = arith.constant 0 : index
    %503 = vector.load %arg21[%c0_115, %c0_116] : memref<16x128xf32, #tpu.memory_space<vmem>>, vector<16x8xf32>
    tpu.vector_store %arg21[%c0_115, %c0_116], %502 {strides = array<i32>} : memref<16x128xf32, #tpu.memory_space<vmem>>, vector<16x8xf32>,
    %504 = vector.extract_strided_slice %501 {offsets = [16, 0], sizes = [16, 8], strides = [1, 1]} : vector<256x8xf32> to vector<16x8xf32>
    %c0_117 = arith.constant 0 : index
    %c8 = arith.constant 8 : index
    %505 = vector.load %arg21[%c0_117, %c8] : memref<16x128xf32, #tpu.memory_space<vmem>>, vector<16x8xf32>
    tpu.vector_store %arg21[%c0_117, %c8], %504 {strides = array<i32>} : memref<16x128xf32, #tpu.memory_space<vmem>>, vector<16x8xf32>,
    %506 = vector.extract_strided_slice %501 {offsets = [32, 0], sizes = [16, 8], strides = [1, 1]} : vector<256x8xf32> to vector<16x8xf32>
    %c0_118 = arith.constant 0 : index
    %c16 = arith.constant 16 : index
    %507 = vector.load %arg21[%c0_118, %c16] : memref<16x128xf32, #tpu.memory_space<vmem>>, vector<16x8xf32>
    tpu.vector_store %arg21[%c0_118, %c16], %506 {strides = array<i32>} : memref<16x128xf32, #tpu.memory_space<vmem>>, vector<16x8xf32>,
    %508 = vector.extract_strided_slice %501 {offsets = [48, 0], sizes = [16, 8], strides = [1, 1]} : vector<256x8xf32> to vector<16x8xf32>
    %c0_119 = arith.constant 0 : index
    %c24 = arith.constant 24 : index
    %509 = vector.load %arg21[%c0_119, %c24] : memref<16x128xf32, #tpu.memory_space<vmem>>, vector<16x8xf32>
    tpu.vector_store %arg21[%c0_119, %c24], %508 {strides = array<i32>} : memref<16x128xf32, #tpu.memory_space<vmem>>, vector<16x8xf32>,
    %510 = vector.extract_strided_slice %501 {offsets = [64, 0], sizes = [16, 8], strides = [1, 1]} : vector<256x8xf32> to vector<16x8xf32>
    %c0_120 = arith.constant 0 : index
    %c32 = arith.constant 32 : index
    %511 = vector.load %arg21[%c0_120, %c32] : memref<16x128xf32, #tpu.memory_space<vmem>>, vector<16x8xf32>
    tpu.vector_store %arg21[%c0_120, %c32], %510 {strides = array<i32>} : memref<16x128xf32, #tpu.memory_space<vmem>>, vector<16x8xf32>,
    %512 = vector.extract_strided_slice %501 {offsets = [80, 0], sizes = [16, 8], strides = [1, 1]} : vector<256x8xf32> to vector<16x8xf32>
    %c0_121 = arith.constant 0 : index
    %c40 = arith.constant 40 : index
    %513 = vector.load %arg21[%c0_121, %c40] : memref<16x128xf32, #tpu.memory_space<vmem>>, vector<16x8xf32>
    tpu.vector_store %arg21[%c0_121, %c40], %512 {strides = array<i32>} : memref<16x128xf32, #tpu.memory_space<vmem>>, vector<16x8xf32>,
    %514 = vector.extract_strided_slice %501 {offsets = [96, 0], sizes = [16, 8], strides = [1, 1]} : vector<256x8xf32> to vector<16x8xf32>
    %c0_122 = arith.constant 0 : index
    %c48 = arith.constant 48 : index
    %515 = vector.load %arg21[%c0_122, %c48] : memref<16x128xf32, #tpu.memory_space<vmem>>, vector<16x8xf32>
    tpu.vector_store %arg21[%c0_122, %c48], %514 {strides = array<i32>} : memref<16x128xf32, #tpu.memory_space<vmem>>, vector<16x8xf32>,
    %516 = vector.extract_strided_slice %501 {offsets = [112, 0], sizes = [16, 8], strides = [1, 1]} : vector<256x8xf32> to vector<16x8xf32>
    %c0_123 = arith.constant 0 : index
    %c56 = arith.constant 56 : index
    %517 = vector.load %arg21[%c0_123, %c56] : memref<16x128xf32, #tpu.memory_space<vmem>>, vector<16x8xf32>
    tpu.vector_store %arg21[%c0_123, %c56], %516 {strides = array<i32>} : memref<16x128xf32, #tpu.memory_space<vmem>>, vector<16x8xf32>,
    %518 = vector.extract_strided_slice %501 {offsets = [128, 0], sizes = [16, 8], strides = [1, 1]} : vector<256x8xf32> to vector<16x8xf32>
    %c0_124 = arith.constant 0 : index
    %c64 = arith.constant 64 : index
    %519 = vector.load %arg21[%c0_124, %c64] : memref<16x128xf32, #tpu.memory_space<vmem>>, vector<16x8xf32>
    tpu.vector_store %arg21[%c0_124, %c64], %518 {strides = array<i32>} : memref<16x128xf32, #tpu.memory_space<vmem>>, vector<16x8xf32>,
    %520 = vector.extract_strided_slice %501 {offsets = [144, 0], sizes = [16, 8], strides = [1, 1]} : vector<256x8xf32> to vector<16x8xf32>
    %c0_125 = arith.constant 0 : index
    %c72 = arith.constant 72 : index
    %521 = vector.load %arg21[%c0_125, %c72] : memref<16x128xf32, #tpu.memory_space<vmem>>, vector<16x8xf32>
    tpu.vector_store %arg21[%c0_125, %c72], %520 {strides = array<i32>} : memref<16x128xf32, #tpu.memory_space<vmem>>, vector<16x8xf32>,
    %522 = vector.extract_strided_slice %501 {offsets = [160, 0], sizes = [16, 8], strides = [1, 1]} : vector<256x8xf32> to vector<16x8xf32>
    %c0_126 = arith.constant 0 : index
    %c80 = arith.constant 80 : index
    %523 = vector.load %arg21[%c0_126, %c80] : memref<16x128xf32, #tpu.memory_space<vmem>>, vector<16x8xf32>
    tpu.vector_store %arg21[%c0_126, %c80], %522 {strides = array<i32>} : memref<16x128xf32, #tpu.memory_space<vmem>>, vector<16x8xf32>,
    %524 = vector.extract_strided_slice %501 {offsets = [176, 0], sizes = [16, 8], strides = [1, 1]} : vector<256x8xf32> to vector<16x8xf32>
    %c0_127 = arith.constant 0 : index
    %c88 = arith.constant 88 : index
    %525 = vector.load %arg21[%c0_127, %c88] : memref<16x128xf32, #tpu.memory_space<vmem>>, vector<16x8xf32>
    tpu.vector_store %arg21[%c0_127, %c88], %524 {strides = array<i32>} : memref<16x128xf32, #tpu.memory_space<vmem>>, vector<16x8xf32>,
    %526 = vector.extract_strided_slice %501 {offsets = [192, 0], sizes = [16, 8], strides = [1, 1]} : vector<256x8xf32> to vector<16x8xf32>
    %c0_128 = arith.constant 0 : index
    %c96 = arith.constant 96 : index
    %527 = vector.load %arg21[%c0_128, %c96] : memref<16x128xf32, #tpu.memory_space<vmem>>, vector<16x8xf32>
    tpu.vector_store %arg21[%c0_128, %c96], %526 {strides = array<i32>} : memref<16x128xf32, #tpu.memory_space<vmem>>, vector<16x8xf32>,
    %528 = vector.extract_strided_slice %501 {offsets = [208, 0], sizes = [16, 8], strides = [1, 1]} : vector<256x8xf32> to vector<16x8xf32>
    %c0_129 = arith.constant 0 : index
    %c104 = arith.constant 104 : index
    %529 = vector.load %arg21[%c0_129, %c104] : memref<16x128xf32, #tpu.memory_space<vmem>>, vector<16x8xf32>
    tpu.vector_store %arg21[%c0_129, %c104], %528 {strides = array<i32>} : memref<16x128xf32, #tpu.memory_space<vmem>>, vector<16x8xf32>,
    %530 = vector.extract_strided_slice %501 {offsets = [224, 0], sizes = [16, 8], strides = [1, 1]} : vector<256x8xf32> to vector<16x8xf32>
    %c0_130 = arith.constant 0 : index
    %c112 = arith.constant 112 : index
    %531 = vector.load %arg21[%c0_130, %c112] : memref<16x128xf32, #tpu.memory_space<vmem>>, vector<16x8xf32>
    tpu.vector_store %arg21[%c0_130, %c112], %530 {strides = array<i32>} : memref<16x128xf32, #tpu.memory_space<vmem>>, vector<16x8xf32>,
    %532 = vector.extract_strided_slice %501 {offsets = [240, 0], sizes = [16, 8], strides = [1, 1]} : vector<256x8xf32> to vector<16x8xf32>
    %c0_131 = arith.constant 0 : index
    %c120 = arith.constant 120 : index
    %533 = vector.load %arg21[%c0_131, %c120] : memref<16x128xf32, #tpu.memory_space<vmem>>, vector<16x8xf32>
    tpu.vector_store %arg21[%c0_131, %c120], %532 {strides = array<i32>} : memref<16x128xf32, #tpu.memory_space<vmem>>, vector<16x8xf32>,
    %c0_132 = arith.constant 0 : index
    %c0_133 = arith.constant 0 : index
    %534 = vector.load %arg21[%c0_132, %c0_133] : memref<16x128xf32, #tpu.memory_space<vmem>>, vector<16x128xf32>
    %c0_134 = arith.constant 0 : index
    %c0_135 = arith.constant 0 : index
    %535 = vector.load %arg17[%c0_134, %c0_135] : memref<1x128xf32, #tpu.memory_space<vmem>>, vector<1x128xf32>
    %536 = vector.broadcast %535 : vector<1x128xf32> to vector<16x128xf32>
    %537 = arith.addf %534, %536 : vector<16x128xf32>
    %538 = math.tanh %537 : vector<16x128xf32>
    %539 = arith.truncf %538 : vector<16x128xf32> to vector<16x128xbf16>
    %c0_136 = arith.constant 0 : index
    %c0_137 = arith.constant 0 : index
    %540 = vector.load %arg18[%c0_136, %c0_137] : memref<128x128xbf16, #tpu.memory_space<vmem>>, vector<128x128xbf16>
    %cst_138 = arith.constant dense<0.000000e+00> : vector<16x128xf32>
    %541 = tpu.matmul %539, %540, %cst_138 {dimension_numbers = #tpu.dot_dimension_numbers<[1], [0], [0], [1], [0, 0, 1, 1], [], []>} : vector<16x128xbf16>, vector<128x128xbf16>, vector<16x128xf32> -> vector<16x128xf32>
    %c0_139 = arith.constant 0 : index
    %c0_140 = arith.constant 0 : index
    %542 = vector.load %arg19[%c0_139, %c0_140] : memref<1x128xf32, #tpu.memory_space<vmem>>, vector<1x128xf32>
    %543 = vector.broadcast %542 : vector<1x128xf32> to vector<16x128xf32>
    %544 = arith.addf %541, %543 : vector<16x128xf32>
    %545 = math.tanh %544 : vector<16x128xf32>
    %c0_141 = arith.constant 0 : index
    %c0_142 = arith.constant 0 : index
    %546 = vector.load %arg8[%c0_141, %c0_142] : memref<128x128xbf16, #tpu.memory_space<vmem>>, vector<128x128xbf16>
    %cst_143 = arith.constant dense<0.000000e+00> : vector<16x128xf32>
    %547 = tpu.matmul %249, %546, %cst_143 {dimension_numbers = #tpu.dot_dimension_numbers<[1], [0], [0], [1], [0, 0, 1, 1], [], []>} : vector<16x128xbf16>, vector<128x128xbf16>, vector<16x128xf32> -> vector<16x128xf32>
    %c0_144 = arith.constant 0 : index
    %c0_145 = arith.constant 0 : index
    %548 = vector.load %arg9[%c0_144, %c0_145] : memref<1x128xf32, #tpu.memory_space<vmem>>, vector<1x128xf32>
    %549 = vector.broadcast %548 : vector<1x128xf32> to vector<16x128xf32>
    %550 = arith.addf %547, %549 : vector<16x128xf32>
    %551 = math.tanh %550 : vector<16x128xf32>
    %c0_146 = arith.constant 0 : index
    %c0_147 = arith.constant 0 : index
    %552 = vector.load %arg10[%c0_146, %c0_147] : memref<128x128xbf16, #tpu.memory_space<vmem>>, vector<128x128xbf16>
    %cst_148 = arith.constant dense<0.000000e+00> : vector<16x128xf32>
    %553 = tpu.matmul %498, %552, %cst_148 {dimension_numbers = #tpu.dot_dimension_numbers<[1], [0], [0], [1], [0, 0, 1, 1], [], []>} : vector<16x128xbf16>, vector<128x128xbf16>, vector<16x128xf32> -> vector<16x128xf32>
    %c0_149 = arith.constant 0 : index
    %c0_150 = arith.constant 0 : index
    %554 = vector.load %arg11[%c0_149, %c0_150] : memref<1x128xf32, #tpu.memory_space<vmem>>, vector<1x128xf32>
    %555 = vector.broadcast %554 : vector<1x128xf32> to vector<16x128xf32>
    %556 = arith.addf %553, %555 : vector<16x128xf32>
    %557 = math.tanh %556 : vector<16x128xf32>
    %558 = arith.addf %551, %557 : vector<16x128xf32>
    %559 = arith.truncf %558 : vector<16x128xf32> to vector<16x128xbf16>
    %c0_151 = arith.constant 0 : index
    %c0_152 = arith.constant 0 : index
    %560 = vector.load %arg12[%c0_151, %c0_152] : memref<128x128xbf16, #tpu.memory_space<vmem>>, vector<128x128xbf16>
    %cst_153 = arith.constant dense<0.000000e+00> : vector<16x128xf32>
    %561 = tpu.matmul %559, %560, %cst_153 {dimension_numbers = #tpu.dot_dimension_numbers<[1], [0], [0], [1], [0, 0, 1, 1], [], []>} : vector<16x128xbf16>, vector<128x128xbf16>, vector<16x128xf32> -> vector<16x128xf32>
    %c0_154 = arith.constant 0 : index
    %c0_155 = arith.constant 0 : index
    %562 = vector.load %arg13[%c0_154, %c0_155] : memref<1x128xf32, #tpu.memory_space<vmem>>, vector<1x128xf32>
    %563 = vector.broadcast %562 : vector<1x128xf32> to vector<16x128xf32>
    %564 = arith.addf %561, %563 : vector<16x128xf32>
    %565 = math.tanh %564 : vector<16x128xf32>
    %cst_156 = arith.constant dense<0xFF800000> : vector<16xf32>
    %566 = vector.multi_reduction <maximumf>, %565, %cst_156 [1] : vector<16x128xf32> to vector<16xf32>
    %567 = vector.shape_cast %566 : vector<16xf32> to vector<16x1xf32>
    %568 = vector.broadcast %567 : vector<16x1xf32> to vector<16x128xf32>
    %569 = arith.subf %565, %568 : vector<16x128xf32>
    %570 = math.exp %569 : vector<16x128xf32>
    %cst_157 = arith.constant dense<0.000000e+00> : vector<16xf32>
    %571 = vector.multi_reduction <add>, %570, %cst_157 [1] : vector<16x128xf32> to vector<16xf32>
    %572 = vector.shape_cast %571 : vector<16xf32> to vector<16x1xf32>
    %573 = tpu.reciprocal %572 {approx = true} : vector<16x1xf32> -> vector<16x1xf32>
    %574 = vector.broadcast %573 : vector<16x1xf32> to vector<16x128xf32>
    %575 = arith.mulf %570, %574 : vector<16x128xf32>
    %576 = arith.mulf %575, %248 : vector<16x128xf32>
    %577 = arith.truncf %576 : vector<16x128xf32> to vector<16x128xbf16>
    %578 = tpu.concatenate %249, %577 in 1 : vector<16x128xbf16>, vector<16x128xbf16> -> vector<16x256xbf16>
    %c0_158 = arith.constant 0 : index
    %c0_159 = arith.constant 0 : index
    %579 = vector.load %arg14[%c0_158, %c0_159] : memref<256x256xbf16, #tpu.memory_space<vmem>>, vector<256x256xbf16>
    %cst_160 = arith.constant dense<0.000000e+00> : vector<16x256xf32>
    %580 = tpu.matmul %578, %579, %cst_160 {dimension_numbers = #tpu.dot_dimension_numbers<[1], [0], [0], [1], [0, 0, 1, 1], [], []>} : vector<16x256xbf16>, vector<256x256xbf16>, vector<16x256xf32> -> vector<16x256xf32>
    %c0_161 = arith.constant 0 : index
    %c0_162 = arith.constant 0 : index
    %581 = vector.load %arg15[%c0_161, %c0_162] : memref<1x256xf32, #tpu.memory_space<vmem>>, vector<1x256xf32>
    %582 = vector.broadcast %581 : vector<1x256xf32> to vector<16x256xf32>
    %583 = arith.addf %580, %582 : vector<16x256xf32>
    %584 = vector.extract_strided_slice %583 {offsets = [0, 0], sizes = [16, 128], strides = [1, 1]} : vector<16x256xf32> to vector<16x128xf32>
    %c0_163 = arith.constant 0 : index
    %c0_164 = arith.constant 0 : index
    %585 = vector.load %arg20[%c0_163, %c0_164] : memref<16x256xf32, #tpu.memory_space<vmem>>, vector<16x128xf32>
    tpu.vector_store %arg20[%c0_163, %c0_164], %584 {strides = array<i32>} : memref<16x256xf32, #tpu.memory_space<vmem>>, vector<16x128xf32>,
    %586 = vector.extract_strided_slice %583 {offsets = [0, 128], sizes = [16, 128], strides = [1, 1]} : vector<16x256xf32> to vector<16x128xf32>
    %587 = arith.addf %586, %545 : vector<16x128xf32>
    %c0_165 = arith.constant 0 : index
    %c128 = arith.constant 128 : index
    %588 = vector.load %arg20[%c0_165, %c128] : memref<16x256xf32, #tpu.memory_space<vmem>>, vector<16x128xf32>
    tpu.vector_store %arg20[%c0_165, %c128], %587 {strides = array<i32>} : memref<16x256xf32, #tpu.memory_space<vmem>>, vector<16x128xf32>,
    return
  }
}

</mosaic_0001>

<llo_original>
// kernel: kvmm_forward.1
$region0: #{kvmm_forward.1}
  #allocation0 [shape = 'u32[]', space=smem, size = 0x4, offset = 0x4, fixed_abs, tag = 'smem constant byte address 0x4 - core index']
  #allocation1 [shape = 'u32[72,128]{1,0:T(1,128)}', space=vmem, size = 0x9000, scoped, tag = 'internal scratch']
  #allocation2 [shape = 'f32[16,128]{1,0:T(8,128)}', space=vmem, size = 0x2000, scoped, tag = 'scratch operand']
  %s0 = inlined_call_operand.vmem [shape: bf16[16,128], index: 0, kind: input, shape index: {}]
  %s1 = inlined_call_operand.vmem [shape: bf16[256,128], index: 1, kind: input, shape index: {}]
  %s2 = inlined_call_operand.vmem [shape: bf16[128,512], index: 2, kind: input, shape index: {}]
  %s3 = inlined_call_operand.vmem [shape: bf16[128,512], index: 3, kind: input, shape index: {}]
  %s4 = inlined_call_operand.vmem [shape: f32[1,512], index: 4, kind: input, shape index: {}]
  %s5 = inlined_call_operand.vmem [shape: bf16[128,512], index: 5, kind: input, shape index: {}]
  %s6 = inlined_call_operand.vmem [shape: bf16[128,512], index: 6, kind: input, shape index: {}]
  %s7 = inlined_call_operand.vmem [shape: f32[1,512], index: 7, kind: input, shape index: {}]
  %s8 = inlined_call_operand.vmem [shape: bf16[128,128], index: 8, kind: input, shape index: {}]
  %s9 = inlined_call_operand.vmem [shape: f32[1,128], index: 9, kind: input, shape index: {}]
  %s10 = inlined_call_operand.vmem [shape: bf16[128,128], index: 10, kind: input, shape index: {}]
  %s11 = inlined_call_operand.vmem [shape: f32[1,128], index: 11, kind: input, shape index: {}]
  %s12 = inlined_call_operand.vmem [shape: bf16[128,128], index: 12, kind: input, shape index: {}]
  %s13 = inlined_call_operand.vmem [shape: f32[1,128], index: 13, kind: input, shape index: {}]
  %s14 = inlined_call_operand.vmem [shape: bf16[256,256], index: 14, kind: input, shape index: {}]
  %s15 = inlined_call_operand.vmem [shape: f32[1,256], index: 15, kind: input, shape index: {}]
  %s16 = inlined_call_operand.vmem [shape: bf16[128,8], index: 16, kind: input, shape index: {}]
  %s17 = inlined_call_operand.vmem [shape: f32[1,128], index: 17, kind: input, shape index: {}]
  %s18 = inlined_call_operand.vmem [shape: bf16[128,128], index: 18, kind: input, shape index: {}]
  %s19 = inlined_call_operand.vmem [shape: f32[1,128], index: 19, kind: input, shape index: {}]
  %s20 = inlined_call_operand.vmem [shape: f32[16,256], index: 20, kind: output, shape index: {}]
  %s21 = sld [smem:[#allocation0]]
  $region90: #{kvmm_forward.1} parent=0
    _
  %s23 = ssub.s32 1, %s21
  %s24 = scalar_select 0, %s23, %s21
  // Predicated region
  $region2: #{kvmm_forward.1} parent=0 // pred_check
    _
  $region3: #{kvmm_forward.1} parent=0 // pred_check_branch
    %26 = sbr.rel (0) target = $region5
  $region4: #{kvmm_forward.1} parent=0 // pred_region
    _
  $region5: #{kvmm_forward.1} parent=0 // pred_fallthru
    _
  // Predicated region
  $region6: #{kvmm_forward.1} parent=0 // pred_check
    _
  $region7: #{kvmm_forward.1} parent=0 // pred_check_branch
    %28 = sbr.rel (0) target = $region9
  $region8: #{kvmm_forward.1} parent=0 // pred_region
    _
  $region9: #{kvmm_forward.1} parent=0 // pred_fallthru
    _
  // Predicated region
  $region10: #{kvmm_forward.1} parent=0 // pred_check
    _
  $region11: #{kvmm_forward.1} parent=0 // pred_check_branch
    %30 = sbr.rel (0) target = $region13
  $region12: #{kvmm_forward.1} parent=0 // pred_region
    _
  $region13: #{kvmm_forward.1} parent=0 // pred_fallthru
    _
  // Predicated region
  $region14: #{kvmm_forward.1} parent=0 // pred_check
    _
  $region15: #{kvmm_forward.1} parent=0 // pred_check_branch
    %32 = sbr.rel (0) target = $region17
  $region16: #{kvmm_forward.1} parent=0 // pred_region
    _
  $region17: #{kvmm_forward.1} parent=0 // pred_fallthru
    _
  // Predicated region
  $region18: #{kvmm_forward.1} parent=0 // pred_check
    _
  $region19: #{kvmm_forward.1} parent=0 // pred_check_branch
    %34 = sbr.rel (0) target = $region21
  $region20: #{kvmm_forward.1} parent=0 // pred_region
    _
  $region21: #{kvmm_forward.1} parent=0 // pred_fallthru
    _
  // Predicated region
  $region22: #{kvmm_forward.1} parent=0 // pred_check
    _
  $region23: #{kvmm_forward.1} parent=0 // pred_check_branch
    %36 = sbr.rel (0) target = $region25
  $region24: #{kvmm_forward.1} parent=0 // pred_region
    _
  $region25: #{kvmm_forward.1} parent=0 // pred_fallthru
    _
  // Predicated region
  $region26: #{kvmm_forward.1} parent=0 // pred_check
    _
  $region27: #{kvmm_forward.1} parent=0 // pred_check_branch
    %38 = sbr.rel (0) target = $region29
  $region28: #{kvmm_forward.1} parent=0 // pred_region
    _
  $region29: #{kvmm_forward.1} parent=0 // pred_fallthru
    _
  // Predicated region
  $region30: #{kvmm_forward.1} parent=0 // pred_check
    _
  $region31: #{kvmm_forward.1} parent=0 // pred_check_branch
    %40 = sbr.rel (0) target = $region33
  $region32: #{kvmm_forward.1} parent=0 // pred_region
    _
  $region33: #{kvmm_forward.1} parent=0 // pred_fallthru
    _
  // Predicated region
  $region34: #{kvmm_forward.1} parent=0 // pred_check
    _
  $region35: #{kvmm_forward.1} parent=0 // pred_check_branch
    %42 = sbr.rel (0) target = $region37
  $region36: #{kvmm_forward.1} parent=0 // pred_region
    _
  $region37: #{kvmm_forward.1} parent=0 // pred_fallthru
    _
  // Predicated region
  $region38: #{kvmm_forward.1} parent=0 // pred_check
    _
  $region39: #{kvmm_forward.1} parent=0 // pred_check_branch
    %44 = sbr.rel (0) target = $region41
  $region40: #{kvmm_forward.1} parent=0 // pred_region
    _
  $region41: #{kvmm_forward.1} parent=0 // pred_fallthru
    _
  // Predicated region
  $region42: #{kvmm_forward.1} parent=0 // pred_check
    _
  $region43: #{kvmm_forward.1} parent=0 // pred_check_branch
    %46 = sbr.rel (0) target = $region45
  $region44: #{kvmm_forward.1} parent=0 // pred_region
    _
  $region45: #{kvmm_forward.1} parent=0 // pred_fallthru
    _
  // Predicated region
  $region46: #{kvmm_forward.1} parent=0 // pred_check
    _
  $region47: #{kvmm_forward.1} parent=0 // pred_check_branch
    %48 = sbr.rel (0) target = $region49
  $region48: #{kvmm_forward.1} parent=0 // pred_region
    _
  $region49: #{kvmm_forward.1} parent=0 // pred_fallthru
    _
  // Predicated region
  $region50: #{kvmm_forward.1} parent=0 // pred_check
    _
  $region51: #{kvmm_forward.1} parent=0 // pred_check_branch
    %50 = sbr.rel (0) target = $region53
  $region52: #{kvmm_forward.1} parent=0 // pred_region
    _
  $region53: #{kvmm_forward.1} parent=0 // pred_fallthru
    _
  // Predicated region
  $region54: #{kvmm_forward.1} parent=0 // pred_check
    _
  $region55: #{kvmm_forward.1} parent=0 // pred_check_branch
    %52 = sbr.rel (0) target = $region57
  $region56: #{kvmm_forward.1} parent=0 // pred_region
    _
  $region57: #{kvmm_forward.1} parent=0 // pred_fallthru
    _
  // Predicated region
  $region58: #{kvmm_forward.1} parent=0 // pred_check
    _
  $region59: #{kvmm_forward.1} parent=0 // pred_check_branch
    %54 = sbr.rel (0) target = $region61
  $region60: #{kvmm_forward.1} parent=0 // pred_region
    _
  $region61: #{kvmm_forward.1} parent=0 // pred_fallthru
    _
  // Predicated region
  $region62: #{kvmm_forward.1} parent=0 // pred_check
    _
  $region63: #{kvmm_forward.1} parent=0 // pred_check_branch
    %56 = sbr.rel (0) target = $region65
  $region64: #{kvmm_forward.1} parent=0 // pred_region
    _
  $region65: #{kvmm_forward.1} parent=0 // pred_fallthru
    _
  // Predicated region
  $region66: #{kvmm_forward.1} parent=0 // pred_check
    _
  $region67: #{kvmm_forward.1} parent=0 // pred_check_branch
    %58 = sbr.rel (0) target = $region69
  $region68: #{kvmm_forward.1} parent=0 // pred_region
    _
  $region69: #{kvmm_forward.1} parent=0 // pred_fallthru
    _
  // Predicated region
  $region70: #{kvmm_forward.1} parent=0 // pred_check
    _
  $region71: #{kvmm_forward.1} parent=0 // pred_check_branch
    %60 = sbr.rel (0) target = $region73
  $region72: #{kvmm_forward.1} parent=0 // pred_region
    _
  $region73: #{kvmm_forward.1} parent=0 // pred_fallthru
    _
  // Predicated region
  $region74: #{kvmm_forward.1} parent=0 // pred_check
    _
  $region75: #{kvmm_forward.1} parent=0 // pred_check_branch
    %62 = sbr.rel (0) target = $region77
  $region76: #{kvmm_forward.1} parent=0 // pred_region
    _
  $region77: #{kvmm_forward.1} parent=0 // pred_fallthru
    _
  // Predicated region
  $region78: #{kvmm_forward.1} parent=0 // pred_check
    _
  $region79: #{kvmm_forward.1} parent=0 // pred_check_branch
    %64 = sbr.rel (0) target = $region81
  $region80: #{kvmm_forward.1} parent=0 // pred_region
    _
  $region81: #{kvmm_forward.1} parent=0 // pred_fallthru
    _
  %v66 = vld [vmem:[%s0] sm:$0xf]
  %v67 = vld [vmem:[%s0 + $0x4] sm:$0xf]
  %v68 = vld [vmem:[%s2] sm:$0xff]
  %v69 = vld [vmem:[%s2 + $0x8] sm:$0xff]
  %v70 = vld [vmem:[%s2 + $0x10] sm:$0xff]
  %v71 = vld [vmem:[%s2 + $0x18] sm:$0xff]
  %v72 = vld [vmem:[%s2 + $0x20] sm:$0xff]
  %v73 = vld [vmem:[%s2 + $0x28] sm:$0xff]
  %v74 = vld [vmem:[%s2 + $0x30] sm:$0xff]
  %v75 = vld [vmem:[%s2 + $0x38] sm:$0xff]
  %v76 = vld [vmem:[%s2 + $0x40] sm:$0xff]
  %v77 = vld [vmem:[%s2 + $0x48] sm:$0xff]
  %v78 = vld [vmem:[%s2 + $0x50] sm:$0xff]
  %v79 = vld [vmem:[%s2 + $0x58] sm:$0xff]
  %v80 = vld [vmem:[%s2 + $0x60] sm:$0xff]
  %v81 = vld [vmem:[%s2 + $0x68] sm:$0xff]
  %v82 = vld [vmem:[%s2 + $0x70] sm:$0xff]
  %v83 = vld [vmem:[%s2 + $0x78] sm:$0xff]
  %v84 = vld [vmem:[%s2 + $0x80] sm:$0xff]
  %v85 = vld [vmem:[%s2 + $0x88] sm:$0xff]
  %v86 = vld [vmem:[%s2 + $0x90] sm:$0xff]
  %v87 = vld [vmem:[%s2 + $0x98] sm:$0xff]
  %v88 = vld [vmem:[%s2 + $0xa0] sm:$0xff]
  %v89 = vld [vmem:[%s2 + $0xa8] sm:$0xff]
  %v90 = vld [vmem:[%s2 + $0xb0] sm:$0xff]
  %v91 = vld [vmem:[%s2 + $0xb8] sm:$0xff]
  %v92 = vld [vmem:[%s2 + $0xc0] sm:$0xff]
  %v93 = vld [vmem:[%s2 + $0xc8] sm:$0xff]
  %v94 = vld [vmem:[%s2 + $0xd0] sm:$0xff]
  %v95 = vld [vmem:[%s2 + $0xd8] sm:$0xff]
  %v96 = vld [vmem:[%s2 + $0xe0] sm:$0xff]
  %v97 = vld [vmem:[%s2 + $0xe8] sm:$0xff]
  %v98 = vld [vmem:[%s2 + $0xf0] sm:$0xff]
  %v99 = vld [vmem:[%s2 + $0xf8] sm:$0xff]
  %v100 = vld [vmem:[%s4] sm:$0xf]
  %v102 = vperm.slane %v100, 0
  %v103 = vperm.slane %v100, 1
  %v104 = vperm.slane %v100, 2
  %v105 = vperm.slane %v100, 3
  %v112 = vunpack.c.l.b16 %v66
  %v113 = vunpack.c.l.b16 %v67
  %v114 = vpack.c.b16 %v113, %v112
  %v148 = vunpack.c.l.b16 %v68
  %v149 = vunpack.c.h.b16 %v68
  %v150 = vunpack.c.l.b16 %v69
  %v151 = vunpack.c.h.b16 %v69
  %v152 = vunpack.c.l.b16 %v70
  %v153 = vunpack.c.h.b16 %v70
  %v154 = vunpack.c.l.b16 %v71
  %v155 = vunpack.c.h.b16 %v71
  %v156 = vunpack.c.l.b16 %v72
  %v157 = vunpack.c.h.b16 %v72
  %v158 = vunpack.c.l.b16 %v73
  %v159 = vunpack.c.h.b16 %v73
  %v160 = vunpack.c.l.b16 %v74
  %v161 = vunpack.c.h.b16 %v74
  %v162 = vunpack.c.l.b16 %v75
  %v163 = vunpack.c.h.b16 %v75
  %v164 = vunpack.c.l.b16 %v76
  %v165 = vunpack.c.h.b16 %v76
  %v166 = vunpack.c.l.b16 %v77
  %v167 = vunpack.c.h.b16 %v77
  %v168 = vunpack.c.l.b16 %v78
  %v169 = vunpack.c.h.b16 %v78
  %v170 = vunpack.c.l.b16 %v79
  %v171 = vunpack.c.h.b16 %v79
  %v172 = vunpack.c.l.b16 %v80
  %v173 = vunpack.c.h.b16 %v80
  %v174 = vunpack.c.l.b16 %v81
  %v175 = vunpack.c.h.b16 %v81
  %v176 = vunpack.c.l.b16 %v82
  %v177 = vunpack.c.h.b16 %v82
  %v178 = vunpack.c.l.b16 %v83
  %v179 = vunpack.c.h.b16 %v83
  %v180 = vunpack.c.l.b16 %v84
  %v181 = vunpack.c.h.b16 %v84
  %v182 = vunpack.c.l.b16 %v85
  %v183 = vunpack.c.h.b16 %v85
  %v184 = vunpack.c.l.b16 %v86
  %v185 = vunpack.c.h.b16 %v86
  %v186 = vunpack.c.l.b16 %v87
  %v187 = vunpack.c.h.b16 %v87
  %v188 = vunpack.c.l.b16 %v88
  %v189 = vunpack.c.h.b16 %v88
  %v190 = vunpack.c.l.b16 %v89
  %v191 = vunpack.c.h.b16 %v89
  %v192 = vunpack.c.l.b16 %v90
  %v193 = vunpack.c.h.b16 %v90
  %v194 = vunpack.c.l.b16 %v91
  %v195 = vunpack.c.h.b16 %v91
  %v196 = vunpack.c.l.b16 %v92
  %v197 = vunpack.c.h.b16 %v92
  %v198 = vunpack.c.l.b16 %v93
  %v199 = vunpack.c.h.b16 %v93
  %v200 = vunpack.c.l.b16 %v94
  %v201 = vunpack.c.h.b16 %v94
  %v202 = vunpack.c.l.b16 %v95
  %v203 = vunpack.c.h.b16 %v95
  %v204 = vunpack.c.l.b16 %v96
  %v205 = vunpack.c.h.b16 %v96
  %v206 = vunpack.c.l.b16 %v97
  %v207 = vunpack.c.h.b16 %v97
  %v208 = vunpack.c.l.b16 %v98
  %v209 = vunpack.c.h.b16 %v98
  %v210 = vunpack.c.l.b16 %v99
  %v211 = vunpack.c.h.b16 %v99
  %v212 = vpack.c.b16 %v152, %v148
  %v213 = vpack.c.b16 %v153, %v149
  %v214 = vpack.c.b16 %v154, %v150
  %v215 = vpack.c.b16 %v155, %v151
  %v216 = vpack.c.b16 %v160, %v156
  %v217 = vpack.c.b16 %v161, %v157
  %v218 = vpack.c.b16 %v162, %v158
  %v219 = vpack.c.b16 %v163, %v159
  %v220 = vpack.c.b16 %v168, %v164
  %v221 = vpack.c.b16 %v169, %v165
  %v222 = vpack.c.b16 %v170, %v166
  %v223 = vpack.c.b16 %v171, %v167
  %v224 = vpack.c.b16 %v176, %v172
  %v225 = vpack.c.b16 %v177, %v173
  %v226 = vpack.c.b16 %v178, %v174
  %v227 = vpack.c.b16 %v179, %v175
  %v228 = vpack.c.b16 %v184, %v180
  %v229 = vpack.c.b16 %v185, %v181
  %v230 = vpack.c.b16 %v186, %v182
  %v231 = vpack.c.b16 %v187, %v183
  %v232 = vpack.c.b16 %v192, %v188
  %v233 = vpack.c.b16 %v193, %v189
  %v234 = vpack.c.b16 %v194, %v190
  %v235 = vpack.c.b16 %v195, %v191
  %v236 = vpack.c.b16 %v200, %v196
  %v237 = vpack.c.b16 %v201, %v197
  %v238 = vpack.c.b16 %v202, %v198
  %v239 = vpack.c.b16 %v203, %v199
  %v240 = vpack.c.b16 %v208, %v204
  %v241 = vpack.c.b16 %v209, %v205
  %v242 = vpack.c.b16 %v210, %v206
  %v243 = vpack.c.b16 %v211, %v207
  %276 = vmatpush.bf16.msra.mxu0 %v240
  %277 = vmatpush.bf16.msra.mxu0 %v236
  %278 = vmatpush.bf16.msra.mxu0 %v232
  %279 = vmatpush.bf16.msra.mxu0 %v228
  %280 = vmatpush.bf16.msra.mxu0 %v224
  %281 = vmatpush.bf16.msra.mxu0 %v220
  %282 = vmatpush.bf16.msra.mxu0 %v216
  %283 = vmatpush.bf16.msra.mxu0 %v212
  %284 = vmatmul.bf16.gmra.mxu0 %v114
  %v285 = vpop.f32.mrf.mxu0
  %v286 = vadd.f32 %v102, %v285
  %v287 = vpop.f32.mrf.mxu0
  %v288 = vadd.f32 %v102, %v287
  %289 = vdwg.mxu0
  %290 = vmatpush.bf16.msra.mxu0 %v241
  %291 = vmatpush.bf16.msra.mxu0 %v237
  %292 = vmatpush.bf16.msra.mxu0 %v233
  %293 = vmatpush.bf16.msra.mxu0 %v229
  %294 = vmatpush.bf16.msra.mxu0 %v225
  %295 = vmatpush.bf16.msra.mxu0 %v221
  %296 = vmatpush.bf16.msra.mxu0 %v217
  %297 = vmatpush.bf16.msra.mxu0 %v213
  %298 = vmatmul.bf16.gmra.mxu0 %v114
  %v299 = vpop.f32.mrf.mxu0
  %v300 = vadd.f32 %v103, %v299
  %v301 = vpop.f32.mrf.mxu0
  %v302 = vadd.f32 %v103, %v301
  %303 = vdwg.mxu0
  %304 = vmatpush.bf16.msra.mxu0 %v242
  %305 = vmatpush.bf16.msra.mxu0 %v238
  %306 = vmatpush.bf16.msra.mxu0 %v234
  %307 = vmatpush.bf16.msra.mxu0 %v230
  %308 = vmatpush.bf16.msra.mxu0 %v226
  %309 = vmatpush.bf16.msra.mxu0 %v222
  %310 = vmatpush.bf16.msra.mxu0 %v218
  %311 = vmatpush.bf16.msra.mxu0 %v214
  %312 = vmatmul.bf16.gmra.mxu0 %v114
  %v313 = vpop.f32.mrf.mxu0
  %v314 = vadd.f32 %v104, %v313
  %v315 = vpop.f32.mrf.mxu0
  %v316 = vadd.f32 %v104, %v315
  %317 = vdwg.mxu0
  %318 = vmatpush.bf16.msra.mxu0 %v243
  %319 = vmatpush.bf16.msra.mxu0 %v239
  %320 = vmatpush.bf16.msra.mxu0 %v235
  %321 = vmatpush.bf16.msra.mxu0 %v231
  %322 = vmatpush.bf16.msra.mxu0 %v227
  %323 = vmatpush.bf16.msra.mxu0 %v223
  %324 = vmatpush.bf16.msra.mxu0 %v219
  %325 = vmatpush.bf16.msra.mxu0 %v215
  %326 = vmatmul.bf16.gmra.mxu0 %v114
  %v327 = vpop.f32.mrf.mxu0
  %v328 = vadd.f32 %v105, %v327
  %v329 = vpop.f32.mrf.mxu0
  %v330 = vadd.f32 %v105, %v329
  %331 = vdwg.mxu0
  %v332 = vld [vmem:[%s3] sm:$0xff]
  %v333 = vld [vmem:[%s3 + $0x8] sm:$0xff]
  %v334 = vld [vmem:[%s3 + $0x10] sm:$0xff]
  %v335 = vld [vmem:[%s3 + $0x18] sm:$0xff]
  %v336 = vld [vmem:[%s3 + $0x20] sm:$0xff]
  %v337 = vld [vmem:[%s3 + $0x28] sm:$0xff]
  %v338 = vld [vmem:[%s3 + $0x30] sm:$0xff]
  %v339 = vld [vmem:[%s3 + $0x38] sm:$0xff]
  %v340 = vld [vmem:[%s3 + $0x40] sm:$0xff]
  %v341 = vld [vmem:[%s3 + $0x48] sm:$0xff]
  %v342 = vld [vmem:[%s3 + $0x50] sm:$0xff]
  %v343 = vld [vmem:[%s3 + $0x58] sm:$0xff]
  %v344 = vld [vmem:[%s3 + $0x60] sm:$0xff]
  %v345 = vld [vmem:[%s3 + $0x68] sm:$0xff]
  %v346 = vld [vmem:[%s3 + $0x70] sm:$0xff]
  %v347 = vld [vmem:[%s3 + $0x78] sm:$0xff]
  %v348 = vld [vmem:[%s3 + $0x80] sm:$0xff]
  %v349 = vld [vmem:[%s3 + $0x88] sm:$0xff]
  %v350 = vld [vmem:[%s3 + $0x90] sm:$0xff]
  %v351 = vld [vmem:[%s3 + $0x98] sm:$0xff]
  %v352 = vld [vmem:[%s3 + $0xa0] sm:$0xff]
  %v353 = vld [vmem:[%s3 + $0xa8] sm:$0xff]
  %v354 = vld [vmem:[%s3 + $0xb0] sm:$0xff]
  %v355 = vld [vmem:[%s3 + $0xb8] sm:$0xff]
  %v356 = vld [vmem:[%s3 + $0xc0] sm:$0xff]
  %v357 = vld [vmem:[%s3 + $0xc8] sm:$0xff]
  %v358 = vld [vmem:[%s3 + $0xd0] sm:$0xff]
  %v359 = vld [vmem:[%s3 + $0xd8] sm:$0xff]
  %v360 = vld [vmem:[%s3 + $0xe0] sm:$0xff]
  %v361 = vld [vmem:[%s3 + $0xe8] sm:$0xff]
  %v362 = vld [vmem:[%s3 + $0xf0] sm:$0xff]
  %v363 = vld [vmem:[%s3 + $0xf8] sm:$0xff]
  %v396 = vunpack.c.l.b16 %v332
  %v397 = vunpack.c.h.b16 %v332
  %v398 = vunpack.c.l.b16 %v333
  %v399 = vunpack.c.h.b16 %v333
  %v400 = vunpack.c.l.b16 %v334
  %v401 = vunpack.c.h.b16 %v334
  %v402 = vunpack.c.l.b16 %v335
  %v403 = vunpack.c.h.b16 %v335
  %v404 = vunpack.c.l.b16 %v336
  %v405 = vunpack.c.h.b16 %v336
  %v406 = vunpack.c.l.b16 %v337
  %v407 = vunpack.c.h.b16 %v337
  %v408 = vunpack.c.l.b16 %v338
  %v409 = vunpack.c.h.b16 %v338
  %v410 = vunpack.c.l.b16 %v339
  %v411 = vunpack.c.h.b16 %v339
  %v412 = vunpack.c.l.b16 %v340
  %v413 = vunpack.c.h.b16 %v340
  %v414 = vunpack.c.l.b16 %v341
  %v415 = vunpack.c.h.b16 %v341
  %v416 = vunpack.c.l.b16 %v342
  %v417 = vunpack.c.h.b16 %v342
  %v418 = vunpack.c.l.b16 %v343
  %v419 = vunpack.c.h.b16 %v343
  %v420 = vunpack.c.l.b16 %v344
  %v421 = vunpack.c.h.b16 %v344
  %v422 = vunpack.c.l.b16 %v345
  %v423 = vunpack.c.h.b16 %v345
  %v424 = vunpack.c.l.b16 %v346
  %v425 = vunpack.c.h.b16 %v346
  %v426 = vunpack.c.l.b16 %v347
  %v427 = vunpack.c.h.b16 %v347
  %v428 = vunpack.c.l.b16 %v348
  %v429 = vunpack.c.h.b16 %v348
  %v430 = vunpack.c.l.b16 %v349
  %v431 = vunpack.c.h.b16 %v349
  %v432 = vunpack.c.l.b16 %v350
  %v433 = vunpack.c.h.b16 %v350
  %v434 = vunpack.c.l.b16 %v351
  %v435 = vunpack.c.h.b16 %v351
  %v436 = vunpack.c.l.b16 %v352
  %v437 = vunpack.c.h.b16 %v352
  %v438 = vunpack.c.l.b16 %v353
  %v439 = vunpack.c.h.b16 %v353
  %v440 = vunpack.c.l.b16 %v354
  %v441 = vunpack.c.h.b16 %v354
  %v442 = vunpack.c.l.b16 %v355
  %v443 = vunpack.c.h.b16 %v355
  %v444 = vunpack.c.l.b16 %v356
  %v445 = vunpack.c.h.b16 %v356
  %v446 = vunpack.c.l.b16 %v357
  %v447 = vunpack.c.h.b16 %v357
  %v448 = vunpack.c.l.b16 %v358
  %v449 = vunpack.c.h.b16 %v358
  %v450 = vunpack.c.l.b16 %v359
  %v451 = vunpack.c.h.b16 %v359
  %v452 = vunpack.c.l.b16 %v360
  %v453 = vunpack.c.h.b16 %v360
  %v454 = vunpack.c.l.b16 %v361
  %v455 = vunpack.c.h.b16 %v361
  %v456 = vunpack.c.l.b16 %v362
  %v457 = vunpack.c.h.b16 %v362
  %v458 = vunpack.c.l.b16 %v363
  %v459 = vunpack.c.h.b16 %v363
  %v460 = vpack.c.b16 %v400, %v396
  %v461 = vpack.c.b16 %v401, %v397
  %v462 = vpack.c.b16 %v402, %v398
  %v463 = vpack.c.b16 %v403, %v399
  %v464 = vpack.c.b16 %v408, %v404
  %v465 = vpack.c.b16 %v409, %v405
  %v466 = vpack.c.b16 %v410, %v406
  %v467 = vpack.c.b16 %v411, %v407
  %v468 = vpack.c.b16 %v416, %v412
  %v469 = vpack.c.b16 %v417, %v413
  %v470 = vpack.c.b16 %v418, %v414
  %v471 = vpack.c.b16 %v419, %v415
  %v472 = vpack.c.b16 %v424, %v420
  %v473 = vpack.c.b16 %v425, %v421
  %v474 = vpack.c.b16 %v426, %v422
  %v475 = vpack.c.b16 %v427, %v423
  %v476 = vpack.c.b16 %v432, %v428
  %v477 = vpack.c.b16 %v433, %v429
  %v478 = vpack.c.b16 %v434, %v430
  %v479 = vpack.c.b16 %v435, %v431
  %v480 = vpack.c.b16 %v440, %v436
  %v481 = vpack.c.b16 %v441, %v437
  %v482 = vpack.c.b16 %v442, %v438
  %v483 = vpack.c.b16 %v443, %v439
  %v484 = vpack.c.b16 %v448, %v444
  %v485 = vpack.c.b16 %v449, %v445
  %v486 = vpack.c.b16 %v450, %v446
  %v487 = vpack.c.b16 %v451, %v447
  %v488 = vpack.c.b16 %v456, %v452
  %v489 = vpack.c.b16 %v457, %v453
  %v490 = vpack.c.b16 %v458, %v454
  %v491 = vpack.c.b16 %v459, %v455
  %524 = vmatpush.bf16.msra.mxu0 %v488
  %525 = vmatpush.bf16.msra.mxu0 %v484
  %526 = vmatpush.bf16.msra.mxu0 %v480
  %527 = vmatpush.bf16.msra.mxu0 %v476
  %528 = vmatpush.bf16.msra.mxu0 %v472
  %529 = vmatpush.bf16.msra.mxu0 %v468
  %530 = vmatpush.bf16.msra.mxu0 %v464
  %531 = vmatpush.bf16.msra.mxu0 %v460
  %532 = vmatmul.bf16.gmra.mxu0 0
  %v533 = vpop.f32.mrf.mxu0
  %v534 = vadd.f32 0.0, %v533
  %v535 = vpop.f32.mrf.mxu0
  %536 = vdwg.mxu0
  %537 = vmatpush.bf16.msra.mxu0 %v489
  %538 = vmatpush.bf16.msra.mxu0 %v485
  %539 = vmatpush.bf16.msra.mxu0 %v481
  %540 = vmatpush.bf16.msra.mxu0 %v477
  %541 = vmatpush.bf16.msra.mxu0 %v473
  %542 = vmatpush.bf16.msra.mxu0 %v469
  %543 = vmatpush.bf16.msra.mxu0 %v465
  %544 = vmatpush.bf16.msra.mxu0 %v461
  %545 = vmatmul.bf16.gmra.mxu0 0
  %v546 = vpop.f32.mrf.mxu0
  %v547 = vadd.f32 0.0, %v546
  %v548 = vpop.f32.mrf.mxu0
  %549 = vdwg.mxu0
  %550 = vmatpush.bf16.msra.mxu0 %v490
  %551 = vmatpush.bf16.msra.mxu0 %v486
  %552 = vmatpush.bf16.msra.mxu0 %v482
  %553 = vmatpush.bf16.msra.mxu0 %v478
  %554 = vmatpush.bf16.msra.mxu0 %v474
  %555 = vmatpush.bf16.msra.mxu0 %v470
  %556 = vmatpush.bf16.msra.mxu0 %v466
  %557 = vmatpush.bf16.msra.mxu0 %v462
  %558 = vmatmul.bf16.gmra.mxu0 0
  %v559 = vpop.f32.mrf.mxu0
  %v560 = vadd.f32 0.0, %v559
  %v561 = vpop.f32.mrf.mxu0
  %562 = vdwg.mxu0
  %563 = vmatpush.bf16.msra.mxu0 %v491
  %564 = vmatpush.bf16.msra.mxu0 %v487
  %565 = vmatpush.bf16.msra.mxu0 %v483
  %566 = vmatpush.bf16.msra.mxu0 %v479
  %567 = vmatpush.bf16.msra.mxu0 %v475
  %568 = vmatpush.bf16.msra.mxu0 %v471
  %569 = vmatpush.bf16.msra.mxu0 %v467
  %570 = vmatpush.bf16.msra.mxu0 %v463
  %571 = vmatmul.bf16.gmra.mxu0 0
  %v572 = vpop.f32.mrf.mxu0
  %v573 = vadd.f32 0.0, %v572
  %v574 = vpop.f32.mrf.mxu0
  %575 = vdwg.mxu0
  %v576 = vadd.f32 %v286, %v534
  %v577 = vadd.f32 %v300, %v547
  %v578 = vadd.f32 %v314, %v560
  %v579 = vadd.f32 %v328, %v573
  %v580 = vxor.u32 %v576, 2147483648
  %v581 = vmul.f32 %v580, 1.442695
  %v582 = vpow.pop %v581
  %v583 = vadd.f32 %v582, 1.0
  %v584 = vrcp.pop %v583
  %v585 = vmul.f32 %v583, %v584
  %v586 = vsub.f32 1.0, %v585
  %v587 = vmul.f32 %v584, %v586
  %v588 = vadd.f32 %v584, %v587
  %vm589 = vweird.f32 %v583
  %vm590 = vweird.f32 %v584
  %vm591 = vmor %vm589, %vm590
  %v592 = vsel %vm591, %v584, %v588
  %v593 = vand.u32 2147483647, %v583
  %vm594 = vcmp.eq.f32.partialorder %v593, 8.507059e+37
  %v595 = vand.u32 %v583, 2147483648
  %v596 = vor.u32 1.1754944e-38, %v595
  %v597 = vsel %vm594, %v596, %v592
  %v598 = vmul.f32 1.0, %v597
  %v599 = vxor.u32 %v577, 2147483648
  %v600 = vmul.f32 %v599, 1.442695
  %v601 = vpow.pop %v600
  %v602 = vadd.f32 %v601, 1.0
  %v603 = vrcp.pop %v602
  %v604 = vmul.f32 %v602, %v603
  %v605 = vsub.f32 1.0, %v604
  %v606 = vmul.f32 %v603, %v605
  %v607 = vadd.f32 %v603, %v606
  %vm608 = vweird.f32 %v602
  %vm609 = vweird.f32 %v603
  %vm610 = vmor %vm608, %vm609
  %v611 = vsel %vm610, %v603, %v607
  %v612 = vand.u32 2147483647, %v602
  %vm613 = vcmp.eq.f32.partialorder %v612, 8.507059e+37
  %v614 = vand.u32 %v602, 2147483648
  %v615 = vor.u32 1.1754944e-38, %v614
  %v616 = vsel %vm613, %v615, %v611
  %v617 = vmul.f32 1.0, %v616
  %v618 = vtanh.pop %v578
  %v619 = vxor.u32 %v579, 2147483648
  %v620 = vmul.f32 %v619, 1.442695
  %v621 = vpow.pop %v620
  %v622 = vadd.f32 %v621, 1.0
  %v623 = vrcp.pop %v622
  %v624 = vmul.f32 %v622, %v623
  %v625 = vsub.f32 1.0, %v624
  %v626 = vmul.f32 %v623, %v625
  %v627 = vadd.f32 %v623, %v626
  %vm628 = vweird.f32 %v622
  %vm629 = vweird.f32 %v623
  %vm630 = vmor %vm628, %vm629
  %v631 = vsel %vm630, %v623, %v627
  %v632 = vand.u32 2147483647, %v622
  %vm633 = vcmp.eq.f32.partialorder %v632, 8.507059e+37
  %v634 = vand.u32 %v622, 2147483648
  %v635 = vor.u32 1.1754944e-38, %v634
  %v636 = vsel %vm633, %v635, %v631
  %v637 = vmul.f32 1.0, %v636
  %v638 = vmul.f32 %v617, 0.0
  %v639 = vmul.f32 %v598, %v618
  %v640 = vadd.f32 %v638, %v639
  %v641 = vtanh.pop %v640
  %v642 = vmul.f32 %v637, %v641
  %v643 = vpack.c.bf16 %v642, %v642
  %644 = vmatpush.bf16.msra.mxu0 %v488
  %645 = vmatpush.bf16.msra.mxu0 %v484
  %646 = vmatpush.bf16.msra.mxu0 %v480
  %647 = vmatpush.bf16.msra.mxu0 %v476
  %648 = vmatpush.bf16.msra.mxu0 %v472
  %649 = vmatpush.bf16.msra.mxu0 %v468
  %650 = vmatpush.bf16.msra.mxu0 %v464
  %651 = vmatpush.bf16.msra.mxu0 %v460
  %652 = vmatmul.bf16.gmra.mxu0 %v643
  %v653 = vpop.f32.mrf.mxu0
  %v654 = vadd.f32 0.0, %v653
  %v655 = vpop.f32.mrf.mxu0
  %656 = vdwg.mxu0
  %657 = vmatpush.bf16.msra.mxu0 %v489
  %658 = vmatpush.bf16.msra.mxu0 %v485
  %659 = vmatpush.bf16.msra.mxu0 %v481
  %660 = vmatpush.bf16.msra.mxu0 %v477
  %661 = vmatpush.bf16.msra.mxu0 %v473
  %662 = vmatpush.bf16.msra.mxu0 %v469
  %663 = vmatpush.bf16.msra.mxu0 %v465
  %664 = vmatpush.bf16.msra.mxu0 %v461
  %665 = vmatmul.bf16.gmra.mxu0 %v643
  %v666 = vpop.f32.mrf.mxu0
  %v667 = vadd.f32 0.0, %v666
  %v668 = vpop.f32.mrf.mxu0
  %669 = vdwg.mxu0
  %670 = vmatpush.bf16.msra.mxu0 %v490
  %671 = vmatpush.bf16.msra.mxu0 %v486
  %672 = vmatpush.bf16.msra.mxu0 %v482
  %673 = vmatpush.bf16.msra.mxu0 %v478
  %674 = vmatpush.bf16.msra.mxu0 %v474
  %675 = vmatpush.bf16.msra.mxu0 %v470
  %676 = vmatpush.bf16.msra.mxu0 %v466
  %677 = vmatpush.bf16.msra.mxu0 %v462
  %678 = vmatmul.bf16.gmra.mxu0 %v643
  %v679 = vpop.f32.mrf.mxu0
  %v680 = vadd.f32 0.0, %v679
  %v681 = vpop.f32.mrf.mxu0
  %682 = vdwg.mxu0
  %683 = vmatpush.bf16.msra.mxu0 %v491
  %684 = vmatpush.bf16.msra.mxu0 %v487
  %685 = vmatpush.bf16.msra.mxu0 %v483
  %686 = vmatpush.bf16.msra.mxu0 %v479
  %687 = vmatpush.bf16.msra.mxu0 %v475
  %688 = vmatpush.bf16.msra.mxu0 %v471
  %689 = vmatpush.bf16.msra.mxu0 %v467
  %690 = vmatpush.bf16.msra.mxu0 %v463
  %691 = vmatmul.bf16.gmra.mxu0 %v643
  %v692 = vpop.f32.mrf.mxu0
  %v693 = vadd.f32 0.0, %v692
  %v694 = vpop.f32.mrf.mxu0
  %695 = vdwg.mxu0
  %v700 = vrot.slane %v654, 6
  %v701 = vrot.slane %v667, 6
  %v702 = vrot.slane %v680, 6
  %v703 = vrot.slane %v693, 6
  %v708 = vadd.f32 %v286, %v700
  %v709 = vadd.f32 %v300, %v701
  %v710 = vadd.f32 %v314, %v702
  %v711 = vadd.f32 %v328, %v703
  %v712 = vxor.u32 %v708, 2147483648
  %v713 = vmul.f32 %v712, 1.442695
  %v714 = vpow.pop %v713
  %v715 = vadd.f32 %v714, 1.0
  %v716 = vrcp.pop %v715
  %v717 = vmul.f32 %v715, %v716
  %v718 = vsub.f32 1.0, %v717
  %v719 = vmul.f32 %v716, %v718
  %v720 = vadd.f32 %v716, %v719
  %vm721 = vweird.f32 %v715
  %vm722 = vweird.f32 %v716
  %vm723 = vmor %vm721, %vm722
  %v724 = vsel %vm723, %v716, %v720
  %v725 = vand.u32 2147483647, %v715
  %vm726 = vcmp.eq.f32.partialorder %v725, 8.507059e+37
  %v727 = vand.u32 %v715, 2147483648
  %v728 = vor.u32 1.1754944e-38, %v727
  %v729 = vsel %vm726, %v728, %v724
  %v730 = vmul.f32 1.0, %v729
  %v731 = vxor.u32 %v709, 2147483648
  %v732 = vmul.f32 %v731, 1.442695
  %v733 = vpow.pop %v732
  %v734 = vadd.f32 %v733, 1.0
  %v735 = vrcp.pop %v734
  %v736 = vmul.f32 %v734, %v735
  %v737 = vsub.f32 1.0, %v736
  %v738 = vmul.f32 %v735, %v737
  %v739 = vadd.f32 %v735, %v738
  %vm740 = vweird.f32 %v734
  %vm741 = vweird.f32 %v735
  %vm742 = vmor %vm740, %vm741
  %v743 = vsel %vm742, %v735, %v739
  %v744 = vand.u32 2147483647, %v734
  %vm745 = vcmp.eq.f32.partialorder %v744, 8.507059e+37
  %v746 = vand.u32 %v734, 2147483648
  %v747 = vor.u32 1.1754944e-38, %v746
  %v748 = vsel %vm745, %v747, %v743
  %v749 = vmul.f32 1.0, %v748
  %v750 = vtanh.pop %v710
  %v751 = vxor.u32 %v711, 2147483648
  %v752 = vmul.f32 %v751, 1.442695
  %v753 = vpow.pop %v752
  %v754 = vadd.f32 %v753, 1.0
  %v755 = vrcp.pop %v754
  %v756 = vmul.f32 %v754, %v755
  %v757 = vsub.f32 1.0, %v756
  %v758 = vmul.f32 %v755, %v757
  %v759 = vadd.f32 %v755, %v758
  %vm760 = vweird.f32 %v754
  %vm761 = vweird.f32 %v755
  %vm762 = vmor %vm760, %vm761
  %v763 = vsel %vm762, %v755, %v759
  %v764 = vand.u32 2147483647, %v754
  %vm765 = vcmp.eq.f32.partialorder %v764, 8.507059e+37
  %v766 = vand.u32 %v754, 2147483648
  %v767 = vor.u32 1.1754944e-38, %v766
  %v768 = vsel %vm765, %v767, %v763
  %v769 = vmul.f32 1.0, %v768
  %v771 = vrot.slane %v640, 6
  %v773 = vmul.f32 %v749, %v771
  %v774 = vmul.f32 %v730, %v750
  %v775 = vadd.f32 %v773, %v774
  %v776 = vtanh.pop %v775
  %v777 = vmul.f32 %v769, %v776
  %v778 = vpack.c.bf16 %v777, %v777
  %v780 = vrot.slane %v778, 1
  %782 = vmatpush.bf16.msra.mxu0 %v488
  %783 = vmatpush.bf16.msra.mxu0 %v484
  %784 = vmatpush.bf16.msra.mxu0 %v480
  %785 = vmatpush.bf16.msra.mxu0 %v476
  %786 = vmatpush.bf16.msra.mxu0 %v472
  %787 = vmatpush.bf16.msra.mxu0 %v468
  %788 = vmatpush.bf16.msra.mxu0 %v464
  %789 = vmatpush.bf16.msra.mxu0 %v460
  %790 = vmatmul.bf16.gmra.mxu0 %v780
  %v791 = vpop.f32.mrf.mxu0
  %v792 = vadd.f32 0.0, %v791
  %v793 = vpop.f32.mrf.mxu0
  %794 = vdwg.mxu0
  %795 = vmatpush.bf16.msra.mxu0 %v489
  %796 = vmatpush.bf16.msra.mxu0 %v485
  %797 = vmatpush.bf16.msra.mxu0 %v481
  %798 = vmatpush.bf16.msra.mxu0 %v477
  %799 = vmatpush.bf16.msra.mxu0 %v473
  %800 = vmatpush.bf16.msra.mxu0 %v469
  %801 = vmatpush.bf16.msra.mxu0 %v465
  %802 = vmatpush.bf16.msra.mxu0 %v461
  %803 = vmatmul.bf16.gmra.mxu0 %v780
  %v804 = vpop.f32.mrf.mxu0
  %v805 = vadd.f32 0.0, %v804
  %v806 = vpop.f32.mrf.mxu0
  %807 = vdwg.mxu0
  %808 = vmatpush.bf16.msra.mxu0 %v490
  %809 = vmatpush.bf16.msra.mxu0 %v486
  %810 = vmatpush.bf16.msra.mxu0 %v482
  %811 = vmatpush.bf16.msra.mxu0 %v478
  %812 = vmatpush.bf16.msra.mxu0 %v474
  %813 = vmatpush.bf16.msra.mxu0 %v470
  %814 = vmatpush.bf16.msra.mxu0 %v466
  %815 = vmatpush.bf16.msra.mxu0 %v462
  %816 = vmatmul.bf16.gmra.mxu0 %v780
  %v817 = vpop.f32.mrf.mxu0
  %v818 = vadd.f32 0.0, %v817
  %v819 = vpop.f32.mrf.mxu0
  %820 = vdwg.mxu0
  %821 = vmatpush.bf16.msra.mxu0 %v491
  %822 = vmatpush.bf16.msra.mxu0 %v487
  %823 = vmatpush.bf16.msra.mxu0 %v483
  %824 = vmatpush.bf16.msra.mxu0 %v479
  %825 = vmatpush.bf16.msra.mxu0 %v475
  %826 = vmatpush.bf16.msra.mxu0 %v471
  %827 = vmatpush.bf16.msra.mxu0 %v467
  %828 = vmatpush.bf16.msra.mxu0 %v463
  %829 = vmatmul.bf16.gmra.mxu0 %v780
  %v830 = vpop.f32.mrf.mxu0
  %v831 = vadd.f32 0.0, %v830
  %v832 = vpop.f32.mrf.mxu0
  %833 = vdwg.mxu0
  %v838 = vrot.slane %v792, 4
  %v839 = vrot.slane %v805, 4
  %v840 = vrot.slane %v818, 4
  %v841 = vrot.slane %v831, 4
  %v846 = vadd.f32 %v286, %v838
  %v847 = vadd.f32 %v300, %v839
  %v848 = vadd.f32 %v314, %v840
  %v849 = vadd.f32 %v328, %v841
  %v850 = vxor.u32 %v846, 2147483648
  %v851 = vmul.f32 %v850, 1.442695
  %v852 = vpow.pop %v851
  %v853 = vadd.f32 %v852, 1.0
  %v854 = vrcp.pop %v853
  %v855 = vmul.f32 %v853, %v854
  %v856 = vsub.f32 1.0, %v855
  %v857 = vmul.f32 %v854, %v856
  %v858 = vadd.f32 %v854, %v857
  %vm859 = vweird.f32 %v853
  %vm860 = vweird.f32 %v854
  %vm861 = vmor %vm859, %vm860
  %v862 = vsel %vm861, %v854, %v858
  %v863 = vand.u32 2147483647, %v853
  %vm864 = vcmp.eq.f32.partialorder %v863, 8.507059e+37
  %v865 = vand.u32 %v853, 2147483648
  %v866 = vor.u32 1.1754944e-38, %v865
  %v867 = vsel %vm864, %v866, %v862
  %v868 = vmul.f32 1.0, %v867
  %v869 = vxor.u32 %v847, 2147483648
  %v870 = vmul.f32 %v869, 1.442695
  %v871 = vpow.pop %v870
  %v872 = vadd.f32 %v871, 1.0
  %v873 = vrcp.pop %v872
  %v874 = vmul.f32 %v872, %v873
  %v875 = vsub.f32 1.0, %v874
  %v876 = vmul.f32 %v873, %v875
  %v877 = vadd.f32 %v873, %v876
  %vm878 = vweird.f32 %v872
  %vm879 = vweird.f32 %v873
  %vm880 = vmor %vm878, %vm879
  %v881 = vsel %vm880, %v873, %v877
  %v882 = vand.u32 2147483647, %v872
  %vm883 = vcmp.eq.f32.partialorder %v882, 8.507059e+37
  %v884 = vand.u32 %v872, 2147483648
  %v885 = vor.u32 1.1754944e-38, %v884
  %v886 = vsel %vm883, %v885, %v881
  %v887 = vmul.f32 1.0, %v886
  %v888 = vtanh.pop %v848
  %v889 = vxor.u32 %v849, 2147483648
  %v890 = vmul.f32 %v889, 1.442695
  %v891 = vpow.pop %v890
  %v892 = vadd.f32 %v891, 1.0
  %v893 = vrcp.pop %v892
  %v894 = vmul.f32 %v892, %v893
  %v895 = vsub.f32 1.0, %v894
  %v896 = vmul.f32 %v893, %v895
  %v897 = vadd.f32 %v893, %v896
  %vm898 = vweird.f32 %v892
  %vm899 = vweird.f32 %v893
  %vm900 = vmor %vm898, %vm899
  %v901 = vsel %vm900, %v893, %v897
  %v902 = vand.u32 2147483647, %v892
  %vm903 = vcmp.eq.f32.partialorder %v902, 8.507059e+37
  %v904 = vand.u32 %v892, 2147483648
  %v905 = vor.u32 1.1754944e-38, %v904
  %v906 = vsel %vm903, %v905, %v901
  %v907 = vmul.f32 1.0, %v906
  %v909 = vrot.slane %v775, 6
  %v911 = vmul.f32 %v887, %v909
  %v912 = vmul.f32 %v868, %v888
  %v913 = vadd.f32 %v911, %v912
  %v914 = vtanh.pop %v913
  %v915 = vmul.f32 %v907, %v914
  %v916 = vpack.c.bf16 %v915, %v915
  %v918 = vrot.slane %v916, 2
  %920 = vmatpush.bf16.msra.mxu0 %v488
  %921 = vmatpush.bf16.msra.mxu0 %v484
  %922 = vmatpush.bf16.msra.mxu0 %v480
  %923 = vmatpush.bf16.msra.mxu0 %v476
  %924 = vmatpush.bf16.msra.mxu0 %v472
  %925 = vmatpush.bf16.msra.mxu0 %v468
  %926 = vmatpush.bf16.msra.mxu0 %v464
  %927 = vmatpush.bf16.msra.mxu0 %v460
  %928 = vmatmul.bf16.gmra.mxu0 %v918
  %v929 = vpop.f32.mrf.mxu0
  %v930 = vadd.f32 0.0, %v929
  %v931 = vpop.f32.mrf.mxu0
  %932 = vdwg.mxu0
  %933 = vmatpush.bf16.msra.mxu0 %v489
  %934 = vmatpush.bf16.msra.mxu0 %v485
  %935 = vmatpush.bf16.msra.mxu0 %v481
  %936 = vmatpush.bf16.msra.mxu0 %v477
  %937 = vmatpush.bf16.msra.mxu0 %v473
  %938 = vmatpush.bf16.msra.mxu0 %v469
  %939 = vmatpush.bf16.msra.mxu0 %v465
  %940 = vmatpush.bf16.msra.mxu0 %v461
  %941 = vmatmul.bf16.gmra.mxu0 %v918
  %v942 = vpop.f32.mrf.mxu0
  %v943 = vadd.f32 0.0, %v942
  %v944 = vpop.f32.mrf.mxu0
  %945 = vdwg.mxu0
  %946 = vmatpush.bf16.msra.mxu0 %v490
  %947 = vmatpush.bf16.msra.mxu0 %v486
  %948 = vmatpush.bf16.msra.mxu0 %v482
  %949 = vmatpush.bf16.msra.mxu0 %v478
  %950 = vmatpush.bf16.msra.mxu0 %v474
  %951 = vmatpush.bf16.msra.mxu0 %v470
  %952 = vmatpush.bf16.msra.mxu0 %v466
  %953 = vmatpush.bf16.msra.mxu0 %v462
  %954 = vmatmul.bf16.gmra.mxu0 %v918
  %v955 = vpop.f32.mrf.mxu0
  %v956 = vadd.f32 0.0, %v955
  %v957 = vpop.f32.mrf.mxu0
  %958 = vdwg.mxu0
  %959 = vmatpush.bf16.msra.mxu0 %v491
  %960 = vmatpush.bf16.msra.mxu0 %v487
  %961 = vmatpush.bf16.msra.mxu0 %v483
  %962 = vmatpush.bf16.msra.mxu0 %v479
  %963 = vmatpush.bf16.msra.mxu0 %v475
  %964 = vmatpush.bf16.msra.mxu0 %v471
  %965 = vmatpush.bf16.msra.mxu0 %v467
  %966 = vmatpush.bf16.msra.mxu0 %v463
  %967 = vmatmul.bf16.gmra.mxu0 %v918
  %v968 = vpop.f32.mrf.mxu0
  %v969 = vadd.f32 0.0, %v968
  %v970 = vpop.f32.mrf.mxu0
  %971 = vdwg.mxu0
  %v976 = vrot.slane %v930, 2
  %v977 = vrot.slane %v943, 2
  %v978 = vrot.slane %v956, 2
  %v979 = vrot.slane %v969, 2
  %v984 = vadd.f32 %v286, %v976
  %v985 = vadd.f32 %v300, %v977
  %v986 = vadd.f32 %v314, %v978
  %v987 = vadd.f32 %v328, %v979
  %v988 = vxor.u32 %v984, 2147483648
  %v989 = vmul.f32 %v988, 1.442695
  %v990 = vpow.pop %v989
  %v991 = vadd.f32 %v990, 1.0
  %v992 = vrcp.pop %v991
  %v993 = vmul.f32 %v991, %v992
  %v994 = vsub.f32 1.0, %v993
  %v995 = vmul.f32 %v992, %v994
  %v996 = vadd.f32 %v992, %v995
  %vm997 = vweird.f32 %v991
  %vm998 = vweird.f32 %v992
  %vm999 = vmor %vm997, %vm998
  %v1000 = vsel %vm999, %v992, %v996
  %v1001 = vand.u32 2147483647, %v991
  %vm1002 = vcmp.eq.f32.partialorder %v1001, 8.507059e+37
  %v1003 = vand.u32 %v991, 2147483648
  %v1004 = vor.u32 1.1754944e-38, %v1003
  %v1005 = vsel %vm1002, %v1004, %v1000
  %v1006 = vmul.f32 1.0, %v1005
  %v1007 = vxor.u32 %v985, 2147483648
  %v1008 = vmul.f32 %v1007, 1.442695
  %v1009 = vpow.pop %v1008
  %v1010 = vadd.f32 %v1009, 1.0
  %v1011 = vrcp.pop %v1010
  %v1012 = vmul.f32 %v1010, %v1011
  %v1013 = vsub.f32 1.0, %v1012
  %v1014 = vmul.f32 %v1011, %v1013
  %v1015 = vadd.f32 %v1011, %v1014
  %vm1016 = vweird.f32 %v1010
  %vm1017 = vweird.f32 %v1011
  %vm1018 = vmor %vm1016, %vm1017
  %v1019 = vsel %vm1018, %v1011, %v1015
  %v1020 = vand.u32 2147483647, %v1010
  %vm1021 = vcmp.eq.f32.partialorder %v1020, 8.507059e+37
  %v1022 = vand.u32 %v1010, 2147483648
  %v1023 = vor.u32 1.1754944e-38, %v1022
  %v1024 = vsel %vm1021, %v1023, %v1019
  %v1025 = vmul.f32 1.0, %v1024
  %v1026 = vtanh.pop %v986
  %v1027 = vxor.u32 %v987, 2147483648
  %v1028 = vmul.f32 %v1027, 1.442695
  %v1029 = vpow.pop %v1028
  %v1030 = vadd.f32 %v1029, 1.0
  %v1031 = vrcp.pop %v1030
  %v1032 = vmul.f32 %v1030, %v1031
  %v1033 = vsub.f32 1.0, %v1032
  %v1034 = vmul.f32 %v1031, %v1033
  %v1035 = vadd.f32 %v1031, %v1034
  %vm1036 = vweird.f32 %v1030
  %vm1037 = vweird.f32 %v1031
  %vm1038 = vmor %vm1036, %vm1037
  %v1039 = vsel %vm1038, %v1031, %v1035
  %v1040 = vand.u32 2147483647, %v1030
  %vm1041 = vcmp.eq.f32.partialorder %v1040, 8.507059e+37
  %v1042 = vand.u32 %v1030, 2147483648
  %v1043 = vor.u32 1.1754944e-38, %v1042
  %v1044 = vsel %vm1041, %v1043, %v1039
  %v1045 = vmul.f32 1.0, %v1044
  %v1047 = vrot.slane %v913, 6
  %v1049 = vmul.f32 %v1025, %v1047
  %v1050 = vmul.f32 %v1006, %v1026
  %v1051 = vadd.f32 %v1049, %v1050
  %v1052 = vtanh.pop %v1051
  %v1053 = vmul.f32 %v1045, %v1052
  %v1054 = vpack.c.bf16 %v1053, %v1053
  %v1056 = vrot.slane %v1054, 3
  %1058 = vmatpush.bf16.msra.mxu0 %v488
  %1059 = vmatpush.bf16.msra.mxu0 %v484
  %1060 = vmatpush.bf16.msra.mxu0 %v480
  %1061 = vmatpush.bf16.msra.mxu0 %v476
  %1062 = vmatpush.bf16.msra.mxu0 %v472
  %1063 = vmatpush.bf16.msra.mxu0 %v468
  %1064 = vmatpush.bf16.msra.mxu0 %v464
  %1065 = vmatpush.bf16.msra.mxu0 %v460
  %1066 = vmatmul.bf16.gmra.mxu0 %v1056
  %v1067 = vpop.f32.mrf.mxu0
  %v1068 = vadd.f32 0.0, %v1067
  %v1069 = vpop.f32.mrf.mxu0
  %1070 = vdwg.mxu0
  %1071 = vmatpush.bf16.msra.mxu0 %v489
  %1072 = vmatpush.bf16.msra.mxu0 %v485
  %1073 = vmatpush.bf16.msra.mxu0 %v481
  %1074 = vmatpush.bf16.msra.mxu0 %v477
  %1075 = vmatpush.bf16.msra.mxu0 %v473
  %1076 = vmatpush.bf16.msra.mxu0 %v469
  %1077 = vmatpush.bf16.msra.mxu0 %v465
  %1078 = vmatpush.bf16.msra.mxu0 %v461
  %1079 = vmatmul.bf16.gmra.mxu0 %v1056
  %v1080 = vpop.f32.mrf.mxu0
  %v1081 = vadd.f32 0.0, %v1080
  %v1082 = vpop.f32.mrf.mxu0
  %1083 = vdwg.mxu0
  %1084 = vmatpush.bf16.msra.mxu0 %v490
  %1085 = vmatpush.bf16.msra.mxu0 %v486
  %1086 = vmatpush.bf16.msra.mxu0 %v482
  %1087 = vmatpush.bf16.msra.mxu0 %v478
  %1088 = vmatpush.bf16.msra.mxu0 %v474
  %1089 = vmatpush.bf16.msra.mxu0 %v470
  %1090 = vmatpush.bf16.msra.mxu0 %v466
  %1091 = vmatpush.bf16.msra.mxu0 %v462
  %1092 = vmatmul.bf16.gmra.mxu0 %v1056
  %v1093 = vpop.f32.mrf.mxu0
  %v1094 = vadd.f32 0.0, %v1093
  %v1095 = vpop.f32.mrf.mxu0
  %1096 = vdwg.mxu0
  %1097 = vmatpush.bf16.msra.mxu0 %v491
  %1098 = vmatpush.bf16.msra.mxu0 %v487
  %1099 = vmatpush.bf16.msra.mxu0 %v483
  %1100 = vmatpush.bf16.msra.mxu0 %v479
  %1101 = vmatpush.bf16.msra.mxu0 %v475
  %1102 = vmatpush.bf16.msra.mxu0 %v471
  %1103 = vmatpush.bf16.msra.mxu0 %v467
  %1104 = vmatpush.bf16.msra.mxu0 %v463
  %1105 = vmatmul.bf16.gmra.mxu0 %v1056
  %v1106 = vpop.f32.mrf.mxu0
  %v1107 = vadd.f32 0.0, %v1106
  %v1108 = vpop.f32.mrf.mxu0
  %1109 = vdwg.mxu0
  %v1110 = vadd.f32 %v288, %v1068
  %v1111 = vadd.f32 %v302, %v1081
  %v1112 = vadd.f32 %v316, %v1094
  %v1113 = vadd.f32 %v330, %v1107
  %v1114 = vxor.u32 %v1110, 2147483648
  %v1115 = vmul.f32 %v1114, 1.442695
  %v1116 = vpow.pop %v1115
  %v1117 = vadd.f32 %v1116, 1.0
  %v1118 = vrcp.pop %v1117
  %v1119 = vmul.f32 %v1117, %v1118
  %v1120 = vsub.f32 1.0, %v1119
  %v1121 = vmul.f32 %v1118, %v1120
  %v1122 = vadd.f32 %v1118, %v1121
  %vm1123 = vweird.f32 %v1117
  %vm1124 = vweird.f32 %v1118
  %vm1125 = vmor %vm1123, %vm1124
  %v1126 = vsel %vm1125, %v1118, %v1122
  %v1127 = vand.u32 2147483647, %v1117
  %vm1128 = vcmp.eq.f32.partialorder %v1127, 8.507059e+37
  %v1129 = vand.u32 %v1117, 2147483648
  %v1130 = vor.u32 1.1754944e-38, %v1129
  %v1131 = vsel %vm1128, %v1130, %v1126
  %v1132 = vmul.f32 1.0, %v1131
  %v1133 = vxor.u32 %v1111, 2147483648
  %v1134 = vmul.f32 %v1133, 1.442695
  %v1135 = vpow.pop %v1134
  %v1136 = vadd.f32 %v1135, 1.0
  %v1137 = vrcp.pop %v1136
  %v1138 = vmul.f32 %v1136, %v1137
  %v1139 = vsub.f32 1.0, %v1138
  %v1140 = vmul.f32 %v1137, %v1139
  %v1141 = vadd.f32 %v1137, %v1140
  %vm1142 = vweird.f32 %v1136
  %vm1143 = vweird.f32 %v1137
  %vm1144 = vmor %vm1142, %vm1143
  %v1145 = vsel %vm1144, %v1137, %v1141
  %v1146 = vand.u32 2147483647, %v1136
  %vm1147 = vcmp.eq.f32.partialorder %v1146, 8.507059e+37
  %v1148 = vand.u32 %v1136, 2147483648
  %v1149 = vor.u32 1.1754944e-38, %v1148
  %v1150 = vsel %vm1147, %v1149, %v1145
  %v1151 = vmul.f32 1.0, %v1150
  %v1152 = vtanh.pop %v1112
  %v1153 = vxor.u32 %v1113, 2147483648
  %v1154 = vmul.f32 %v1153, 1.442695
  %v1155 = vpow.pop %v1154
  %v1156 = vadd.f32 %v1155, 1.0
  %v1157 = vrcp.pop %v1156
  %v1158 = vmul.f32 %v1156, %v1157
  %v1159 = vsub.f32 1.0, %v1158
  %v1160 = vmul.f32 %v1157, %v1159
  %v1161 = vadd.f32 %v1157, %v1160
  %vm1162 = vweird.f32 %v1156
  %vm1163 = vweird.f32 %v1157
  %vm1164 = vmor %vm1162, %vm1163
  %v1165 = vsel %vm1164, %v1157, %v1161
  %v1166 = vand.u32 2147483647, %v1156
  %vm1167 = vcmp.eq.f32.partialorder %v1166, 8.507059e+37
  %v1168 = vand.u32 %v1156, 2147483648
  %v1169 = vor.u32 1.1754944e-38, %v1168
  %v1170 = vsel %vm1167, %v1169, %v1165
  %v1171 = vmul.f32 1.0, %v1170
  %v1173 = vrot.slane %v1051, 6
  %v1175 = vmul.f32 %v1151, %v1173
  %v1176 = vmul.f32 %v1132, %v1152
  %v1177 = vadd.f32 %v1175, %v1176
  %v1178 = vtanh.pop %v1177
  %v1179 = vmul.f32 %v1171, %v1178
  %v1180 = vpack.c.bf16 %v1179, %v1179
  %1181 = vmatpush.bf16.msra.mxu0 %v488
  %1182 = vmatpush.bf16.msra.mxu0 %v484
  %1183 = vmatpush.bf16.msra.mxu0 %v480
  %1184 = vmatpush.bf16.msra.mxu0 %v476
  %1185 = vmatpush.bf16.msra.mxu0 %v472
  %1186 = vmatpush.bf16.msra.mxu0 %v468
  %1187 = vmatpush.bf16.msra.mxu0 %v464
  %1188 = vmatpush.bf16.msra.mxu0 %v460
  %1189 = vmatmul.bf16.gmra.mxu0 %v1180
  %v1190 = vpop.f32.mrf.mxu0
  %v1191 = vadd.f32 0.0, %v1190
  %v1192 = vpop.f32.mrf.mxu0
  %1193 = vdwg.mxu0
  %1194 = vmatpush.bf16.msra.mxu0 %v489
  %1195 = vmatpush.bf16.msra.mxu0 %v485
  %1196 = vmatpush.bf16.msra.mxu0 %v481
  %1197 = vmatpush.bf16.msra.mxu0 %v477
  %1198 = vmatpush.bf16.msra.mxu0 %v473
  %1199 = vmatpush.bf16.msra.mxu0 %v469
  %1200 = vmatpush.bf16.msra.mxu0 %v465
  %1201 = vmatpush.bf16.msra.mxu0 %v461
  %1202 = vmatmul.bf16.gmra.mxu0 %v1180
  %v1203 = vpop.f32.mrf.mxu0
  %v1204 = vadd.f32 0.0, %v1203
  %v1205 = vpop.f32.mrf.mxu0
  %1206 = vdwg.mxu0
  %1207 = vmatpush.bf16.msra.mxu0 %v490
  %1208 = vmatpush.bf16.msra.mxu0 %v486
  %1209 = vmatpush.bf16.msra.mxu0 %v482
  %1210 = vmatpush.bf16.msra.mxu0 %v478
  %1211 = vmatpush.bf16.msra.mxu0 %v474
  %1212 = vmatpush.bf16.msra.mxu0 %v470
  %1213 = vmatpush.bf16.msra.mxu0 %v466
  %1214 = vmatpush.bf16.msra.mxu0 %v462
  %1215 = vmatmul.bf16.gmra.mxu0 %v1180
  %v1216 = vpop.f32.mrf.mxu0
  %v1217 = vadd.f32 0.0, %v1216
  %v1218 = vpop.f32.mrf.mxu0
  %1219 = vdwg.mxu0
  %1220 = vmatpush.bf16.msra.mxu0 %v491
  %1221 = vmatpush.bf16.msra.mxu0 %v487
  %1222 = vmatpush.bf16.msra.mxu0 %v483
  %1223 = vmatpush.bf16.msra.mxu0 %v479
  %1224 = vmatpush.bf16.msra.mxu0 %v475
  %1225 = vmatpush.bf16.msra.mxu0 %v471
  %1226 = vmatpush.bf16.msra.mxu0 %v467
  %1227 = vmatpush.bf16.msra.mxu0 %v463
  %1228 = vmatmul.bf16.gmra.mxu0 %v1180
  %v1229 = vpop.f32.mrf.mxu0
  %v1230 = vadd.f32 0.0, %v1229
  %v1231 = vpop.f32.mrf.mxu0
  %1232 = vdwg.mxu0
  %v1237 = vrot.slane %v1191, 6
  %v1238 = vrot.slane %v1204, 6
  %v1239 = vrot.slane %v1217, 6
  %v1240 = vrot.slane %v1230, 6
  %v1245 = vadd.f32 %v288, %v1237
  %v1246 = vadd.f32 %v302, %v1238
  %v1247 = vadd.f32 %v316, %v1239
  %v1248 = vadd.f32 %v330, %v1240
  %v1249 = vxor.u32 %v1245, 2147483648
  %v1250 = vmul.f32 %v1249, 1.442695
  %v1251 = vpow.pop %v1250
  %v1252 = vadd.f32 %v1251, 1.0
  %v1253 = vrcp.pop %v1252
  %v1254 = vmul.f32 %v1252, %v1253
  %v1255 = vsub.f32 1.0, %v1254
  %v1256 = vmul.f32 %v1253, %v1255
  %v1257 = vadd.f32 %v1253, %v1256
  %vm1258 = vweird.f32 %v1252
  %vm1259 = vweird.f32 %v1253
  %vm1260 = vmor %vm1258, %vm1259
  %v1261 = vsel %vm1260, %v1253, %v1257
  %v1262 = vand.u32 2147483647, %v1252
  %vm1263 = vcmp.eq.f32.partialorder %v1262, 8.507059e+37
  %v1264 = vand.u32 %v1252, 2147483648
  %v1265 = vor.u32 1.1754944e-38, %v1264
  %v1266 = vsel %vm1263, %v1265, %v1261
  %v1267 = vmul.f32 1.0, %v1266
  %v1268 = vxor.u32 %v1246, 2147483648
  %v1269 = vmul.f32 %v1268, 1.442695
  %v1270 = vpow.pop %v1269
  %v1271 = vadd.f32 %v1270, 1.0
  %v1272 = vrcp.pop %v1271
  %v1273 = vmul.f32 %v1271, %v1272
  %v1274 = vsub.f32 1.0, %v1273
  %v1275 = vmul.f32 %v1272, %v1274
  %v1276 = vadd.f32 %v1272, %v1275
  %vm1277 = vweird.f32 %v1271
  %vm1278 = vweird.f32 %v1272
  %vm1279 = vmor %vm1277, %vm1278
  %v1280 = vsel %vm1279, %v1272, %v1276
  %v1281 = vand.u32 2147483647, %v1271
  %vm1282 = vcmp.eq.f32.partialorder %v1281, 8.507059e+37
  %v1283 = vand.u32 %v1271, 2147483648
  %v1284 = vor.u32 1.1754944e-38, %v1283
  %v1285 = vsel %vm1282, %v1284, %v1280
  %v1286 = vmul.f32 1.0, %v1285
  %v1287 = vtanh.pop %v1247
  %v1288 = vxor.u32 %v1248, 2147483648
  %v1289 = vmul.f32 %v1288, 1.442695
  %v1290 = vpow.pop %v1289
  %v1291 = vadd.f32 %v1290, 1.0
  %v1292 = vrcp.pop %v1291
  %v1293 = vmul.f32 %v1291, %v1292
  %v1294 = vsub.f32 1.0, %v1293
  %v1295 = vmul.f32 %v1292, %v1294
  %v1296 = vadd.f32 %v1292, %v1295
  %vm1297 = vweird.f32 %v1291
  %vm1298 = vweird.f32 %v1292
  %vm1299 = vmor %vm1297, %vm1298
  %v1300 = vsel %vm1299, %v1292, %v1296
  %v1301 = vand.u32 2147483647, %v1291
  %vm1302 = vcmp.eq.f32.partialorder %v1301, 8.507059e+37
  %v1303 = vand.u32 %v1291, 2147483648
  %v1304 = vor.u32 1.1754944e-38, %v1303
  %v1305 = vsel %vm1302, %v1304, %v1300
  %v1306 = vmul.f32 1.0, %v1305
  %v1308 = vrot.slane %v1177, 6
  %v1310 = vmul.f32 %v1286, %v1308
  %v1311 = vmul.f32 %v1267, %v1287
  %v1312 = vadd.f32 %v1310, %v1311
  %v1313 = vtanh.pop %v1312
  %v1314 = vmul.f32 %v1306, %v1313
  %v1315 = vpack.c.bf16 %v1314, %v1314
  %v1317 = vrot.slane %v1315, 1
  %1319 = vmatpush.bf16.msra.mxu0 %v488
  %1320 = vmatpush.bf16.msra.mxu0 %v484
  %1321 = vmatpush.bf16.msra.mxu0 %v480
  %1322 = vmatpush.bf16.msra.mxu0 %v476
  %1323 = vmatpush.bf16.msra.mxu0 %v472
  %1324 = vmatpush.bf16.msra.mxu0 %v468
  %1325 = vmatpush.bf16.msra.mxu0 %v464
  %1326 = vmatpush.bf16.msra.mxu0 %v460
  %1327 = vmatmul.bf16.gmra.mxu0 %v1317
  %v1328 = vpop.f32.mrf.mxu0
  %v1329 = vadd.f32 0.0, %v1328
  %v1330 = vpop.f32.mrf.mxu0
  %1331 = vdwg.mxu0
  %1332 = vmatpush.bf16.msra.mxu0 %v489
  %1333 = vmatpush.bf16.msra.mxu0 %v485
  %1334 = vmatpush.bf16.msra.mxu0 %v481
  %1335 = vmatpush.bf16.msra.mxu0 %v477
  %1336 = vmatpush.bf16.msra.mxu0 %v473
  %1337 = vmatpush.bf16.msra.mxu0 %v469
  %1338 = vmatpush.bf16.msra.mxu0 %v465
  %1339 = vmatpush.bf16.msra.mxu0 %v461
  %1340 = vmatmul.bf16.gmra.mxu0 %v1317
  %v1341 = vpop.f32.mrf.mxu0
  %v1342 = vadd.f32 0.0, %v1341
  %v1343 = vpop.f32.mrf.mxu0
  %1344 = vdwg.mxu0
  %1345 = vmatpush.bf16.msra.mxu0 %v490
  %1346 = vmatpush.bf16.msra.mxu0 %v486
  %1347 = vmatpush.bf16.msra.mxu0 %v482
  %1348 = vmatpush.bf16.msra.mxu0 %v478
  %1349 = vmatpush.bf16.msra.mxu0 %v474
  %1350 = vmatpush.bf16.msra.mxu0 %v470
  %1351 = vmatpush.bf16.msra.mxu0 %v466
  %1352 = vmatpush.bf16.msra.mxu0 %v462
  %1353 = vmatmul.bf16.gmra.mxu0 %v1317
  %v1354 = vpop.f32.mrf.mxu0
  %v1355 = vadd.f32 0.0, %v1354
  %v1356 = vpop.f32.mrf.mxu0
  %1357 = vdwg.mxu0
  %1358 = vmatpush.bf16.msra.mxu0 %v491
  %1359 = vmatpush.bf16.msra.mxu0 %v487
  %1360 = vmatpush.bf16.msra.mxu0 %v483
  %1361 = vmatpush.bf16.msra.mxu0 %v479
  %1362 = vmatpush.bf16.msra.mxu0 %v475
  %1363 = vmatpush.bf16.msra.mxu0 %v471
  %1364 = vmatpush.bf16.msra.mxu0 %v467
  %1365 = vmatpush.bf16.msra.mxu0 %v463
  %1366 = vmatmul.bf16.gmra.mxu0 %v1317
  %v1367 = vpop.f32.mrf.mxu0
  %v1368 = vadd.f32 0.0, %v1367
  %v1369 = vpop.f32.mrf.mxu0
  %1370 = vdwg.mxu0
  %v1375 = vrot.slane %v1329, 4
  %v1376 = vrot.slane %v1342, 4
  %v1377 = vrot.slane %v1355, 4
  %v1378 = vrot.slane %v1368, 4
  %v1383 = vadd.f32 %v288, %v1375
  %v1384 = vadd.f32 %v302, %v1376
  %v1385 = vadd.f32 %v316, %v1377
  %v1386 = vadd.f32 %v330, %v1378
  %v1387 = vxor.u32 %v1383, 2147483648
  %v1388 = vmul.f32 %v1387, 1.442695
  %v1389 = vpow.pop %v1388
  %v1390 = vadd.f32 %v1389, 1.0
  %v1391 = vrcp.pop %v1390
  %v1392 = vmul.f32 %v1390, %v1391
  %v1393 = vsub.f32 1.0, %v1392
  %v1394 = vmul.f32 %v1391, %v1393
  %v1395 = vadd.f32 %v1391, %v1394
  %vm1396 = vweird.f32 %v1390
  %vm1397 = vweird.f32 %v1391
  %vm1398 = vmor %vm1396, %vm1397
  %v1399 = vsel %vm1398, %v1391, %v1395
  %v1400 = vand.u32 2147483647, %v1390
  %vm1401 = vcmp.eq.f32.partialorder %v1400, 8.507059e+37
  %v1402 = vand.u32 %v1390, 2147483648
  %v1403 = vor.u32 1.1754944e-38, %v1402
  %v1404 = vsel %vm1401, %v1403, %v1399
  %v1405 = vmul.f32 1.0, %v1404
  %v1406 = vxor.u32 %v1384, 2147483648
  %v1407 = vmul.f32 %v1406, 1.442695
  %v1408 = vpow.pop %v1407
  %v1409 = vadd.f32 %v1408, 1.0
  %v1410 = vrcp.pop %v1409
  %v1411 = vmul.f32 %v1409, %v1410
  %v1412 = vsub.f32 1.0, %v1411
  %v1413 = vmul.f32 %v1410, %v1412
  %v1414 = vadd.f32 %v1410, %v1413
  %vm1415 = vweird.f32 %v1409
  %vm1416 = vweird.f32 %v1410
  %vm1417 = vmor %vm1415, %vm1416
  %v1418 = vsel %vm1417, %v1410, %v1414
  %v1419 = vand.u32 2147483647, %v1409
  %vm1420 = vcmp.eq.f32.partialorder %v1419, 8.507059e+37
  %v1421 = vand.u32 %v1409, 2147483648
  %v1422 = vor.u32 1.1754944e-38, %v1421
  %v1423 = vsel %vm1420, %v1422, %v1418
  %v1424 = vmul.f32 1.0, %v1423
  %v1425 = vtanh.pop %v1385
  %v1426 = vxor.u32 %v1386, 2147483648
  %v1427 = vmul.f32 %v1426, 1.442695
  %v1428 = vpow.pop %v1427
  %v1429 = vadd.f32 %v1428, 1.0
  %v1430 = vrcp.pop %v1429
  %v1431 = vmul.f32 %v1429, %v1430
  %v1432 = vsub.f32 1.0, %v1431
  %v1433 = vmul.f32 %v1430, %v1432
  %v1434 = vadd.f32 %v1430, %v1433
  %vm1435 = vweird.f32 %v1429
  %vm1436 = vweird.f32 %v1430
  %vm1437 = vmor %vm1435, %vm1436
  %v1438 = vsel %vm1437, %v1430, %v1434
  %v1439 = vand.u32 2147483647, %v1429
  %vm1440 = vcmp.eq.f32.partialorder %v1439, 8.507059e+37
  %v1441 = vand.u32 %v1429, 2147483648
  %v1442 = vor.u32 1.1754944e-38, %v1441
  %v1443 = vsel %vm1440, %v1442, %v1438
  %v1444 = vmul.f32 1.0, %v1443
  %v1446 = vrot.slane %v1312, 6
  %v1448 = vmul.f32 %v1424, %v1446
  %v1449 = vmul.f32 %v1405, %v1425
  %v1450 = vadd.f32 %v1448, %v1449
  %v1451 = vtanh.pop %v1450
  %v1452 = vmul.f32 %v1444, %v1451
  %v1453 = vpack.c.bf16 %v1452, %v1452
  %v1455 = vrot.slane %v1453, 2
  %1457 = vmatpush.bf16.msra.mxu0 %v488
  %1458 = vmatpush.bf16.msra.mxu0 %v484
  %1459 = vmatpush.bf16.msra.mxu0 %v480
  %1460 = vmatpush.bf16.msra.mxu0 %v476
  %1461 = vmatpush.bf16.msra.mxu0 %v472
  %1462 = vmatpush.bf16.msra.mxu0 %v468
  %1463 = vmatpush.bf16.msra.mxu0 %v464
  %1464 = vmatpush.bf16.msra.mxu0 %v460
  %1465 = vmatmul.bf16.gmra.mxu0 %v1455
  %v1466 = vpop.f32.mrf.mxu0
  %v1467 = vadd.f32 0.0, %v1466
  %v1468 = vpop.f32.mrf.mxu0
  %1469 = vdwg.mxu0
  %1470 = vmatpush.bf16.msra.mxu0 %v489
  %1471 = vmatpush.bf16.msra.mxu0 %v485
  %1472 = vmatpush.bf16.msra.mxu0 %v481
  %1473 = vmatpush.bf16.msra.mxu0 %v477
  %1474 = vmatpush.bf16.msra.mxu0 %v473
  %1475 = vmatpush.bf16.msra.mxu0 %v469
  %1476 = vmatpush.bf16.msra.mxu0 %v465
  %1477 = vmatpush.bf16.msra.mxu0 %v461
  %1478 = vmatmul.bf16.gmra.mxu0 %v1455
  %v1479 = vpop.f32.mrf.mxu0
  %v1480 = vadd.f32 0.0, %v1479
  %v1481 = vpop.f32.mrf.mxu0
  %1482 = vdwg.mxu0
  %1483 = vmatpush.bf16.msra.mxu0 %v490
  %1484 = vmatpush.bf16.msra.mxu0 %v486
  %1485 = vmatpush.bf16.msra.mxu0 %v482
  %1486 = vmatpush.bf16.msra.mxu0 %v478
  %1487 = vmatpush.bf16.msra.mxu0 %v474
  %1488 = vmatpush.bf16.msra.mxu0 %v470
  %1489 = vmatpush.bf16.msra.mxu0 %v466
  %1490 = vmatpush.bf16.msra.mxu0 %v462
  %1491 = vmatmul.bf16.gmra.mxu0 %v1455
  %v1492 = vpop.f32.mrf.mxu0
  %v1493 = vadd.f32 0.0, %v1492
  %v1494 = vpop.f32.mrf.mxu0
  %1495 = vdwg.mxu0
  %1496 = vmatpush.bf16.msra.mxu0 %v491
  %1497 = vmatpush.bf16.msra.mxu0 %v487
  %1498 = vmatpush.bf16.msra.mxu0 %v483
  %1499 = vmatpush.bf16.msra.mxu0 %v479
  %1500 = vmatpush.bf16.msra.mxu0 %v475
  %1501 = vmatpush.bf16.msra.mxu0 %v471
  %1502 = vmatpush.bf16.msra.mxu0 %v467
  %1503 = vmatpush.bf16.msra.mxu0 %v463
  %1504 = vmatmul.bf16.gmra.mxu0 %v1455
  %v1505 = vpop.f32.mrf.mxu0
  %v1506 = vadd.f32 0.0, %v1505
  %v1507 = vpop.f32.mrf.mxu0
  %1508 = vdwg.mxu0
  %v1513 = vrot.slane %v1467, 2
  %v1514 = vrot.slane %v1480, 2
  %v1515 = vrot.slane %v1493, 2
  %v1516 = vrot.slane %v1506, 2
  %v1521 = vadd.f32 %v288, %v1513
  %v1522 = vadd.f32 %v302, %v1514
  %v1523 = vadd.f32 %v316, %v1515
  %v1524 = vadd.f32 %v330, %v1516
  %v1525 = vxor.u32 %v1521, 2147483648
  %v1526 = vmul.f32 %v1525, 1.442695
  %v1527 = vpow.pop %v1526
  %v1528 = vadd.f32 %v1527, 1.0
  %v1529 = vrcp.pop %v1528
  %v1530 = vmul.f32 %v1528, %v1529
  %v1531 = vsub.f32 1.0, %v1530
  %v1532 = vmul.f32 %v1529, %v1531
  %v1533 = vadd.f32 %v1529, %v1532
  %vm1534 = vweird.f32 %v1528
  %vm1535 = vweird.f32 %v1529
  %vm1536 = vmor %vm1534, %vm1535
  %v1537 = vsel %vm1536, %v1529, %v1533
  %v1538 = vand.u32 2147483647, %v1528
  %vm1539 = vcmp.eq.f32.partialorder %v1538, 8.507059e+37
  %v1540 = vand.u32 %v1528, 2147483648
  %v1541 = vor.u32 1.1754944e-38, %v1540
  %v1542 = vsel %vm1539, %v1541, %v1537
  %v1543 = vmul.f32 1.0, %v1542
  %v1544 = vxor.u32 %v1522, 2147483648
  %v1545 = vmul.f32 %v1544, 1.442695
  %v1546 = vpow.pop %v1545
  %v1547 = vadd.f32 %v1546, 1.0
  %v1548 = vrcp.pop %v1547
  %v1549 = vmul.f32 %v1547, %v1548
  %v1550 = vsub.f32 1.0, %v1549
  %v1551 = vmul.f32 %v1548, %v1550
  %v1552 = vadd.f32 %v1548, %v1551
  %vm1553 = vweird.f32 %v1547
  %vm1554 = vweird.f32 %v1548
  %vm1555 = vmor %vm1553, %vm1554
  %v1556 = vsel %vm1555, %v1548, %v1552
  %v1557 = vand.u32 2147483647, %v1547
  %vm1558 = vcmp.eq.f32.partialorder %v1557, 8.507059e+37
  %v1559 = vand.u32 %v1547, 2147483648
  %v1560 = vor.u32 1.1754944e-38, %v1559
  %v1561 = vsel %vm1558, %v1560, %v1556
  %v1562 = vmul.f32 1.0, %v1561
  %v1563 = vtanh.pop %v1523
  %v1564 = vxor.u32 %v1524, 2147483648
  %v1565 = vmul.f32 %v1564, 1.442695
  %v1566 = vpow.pop %v1565
  %v1567 = vadd.f32 %v1566, 1.0
  %v1568 = vrcp.pop %v1567
  %v1569 = vmul.f32 %v1567, %v1568
  %v1570 = vsub.f32 1.0, %v1569
  %v1571 = vmul.f32 %v1568, %v1570
  %v1572 = vadd.f32 %v1568, %v1571
  %vm1573 = vweird.f32 %v1567
  %vm1574 = vweird.f32 %v1568
  %vm1575 = vmor %vm1573, %vm1574
  %v1576 = vsel %vm1575, %v1568, %v1572
  %v1577 = vand.u32 2147483647, %v1567
  %vm1578 = vcmp.eq.f32.partialorder %v1577, 8.507059e+37
  %v1579 = vand.u32 %v1567, 2147483648
  %v1580 = vor.u32 1.1754944e-38, %v1579
  %v1581 = vsel %vm1578, %v1580, %v1576
  %v1582 = vmul.f32 1.0, %v1581
  %v1584 = vrot.slane %v1450, 6
  %v1586 = vmul.f32 %v1562, %v1584
  %v1587 = vmul.f32 %v1543, %v1563
  %v1588 = vadd.f32 %v1586, %v1587
  %v1589 = vtanh.pop %v1588
  %v1590 = vmul.f32 %v1582, %v1589
  %vm1591 = vcmask 1041408
  %v1592 = vsel %vm1591, %v642, %v777
  %vm1593 = vcmask 1043456
  %v1594 = vsel %vm1593, %v1592, %v915
  %vm1595 = vcmask 1045504
  %v1596 = vsel %vm1595, %v1594, %v1053
  %v1597 = vsel %vm1591, %v1179, %v1314
  %v1598 = vsel %vm1593, %v1597, %v1452
  %v1599 = vsel %vm1595, %v1598, %v1590
  %v1600 = vpack.c.bf16 %v1596, %v1596
  %v1601 = vpack.c.bf16 %v1599, %v1599
  %v1602 = vld [vmem:[%s5] sm:$0xff]
  %v1603 = vld [vmem:[%s5 + $0x8] sm:$0xff]
  %v1604 = vld [vmem:[%s5 + $0x10] sm:$0xff]
  %v1605 = vld [vmem:[%s5 + $0x18] sm:$0xff]
  %v1606 = vld [vmem:[%s5 + $0x20] sm:$0xff]
  %v1607 = vld [vmem:[%s5 + $0x28] sm:$0xff]
  %v1608 = vld [vmem:[%s5 + $0x30] sm:$0xff]
  %v1609 = vld [vmem:[%s5 + $0x38] sm:$0xff]
  %v1610 = vld [vmem:[%s5 + $0x40] sm:$0xff]
  %v1611 = vld [vmem:[%s5 + $0x48] sm:$0xff]
  %v1612 = vld [vmem:[%s5 + $0x50] sm:$0xff]
  %v1613 = vld [vmem:[%s5 + $0x58] sm:$0xff]
  %v1614 = vld [vmem:[%s5 + $0x60] sm:$0xff]
  %v1615 = vld [vmem:[%s5 + $0x68] sm:$0xff]
  %v1616 = vld [vmem:[%s5 + $0x70] sm:$0xff]
  %v1617 = vld [vmem:[%s5 + $0x78] sm:$0xff]
  %v1618 = vld [vmem:[%s5 + $0x80] sm:$0xff]
  %v1619 = vld [vmem:[%s5 + $0x88] sm:$0xff]
  %v1620 = vld [vmem:[%s5 + $0x90] sm:$0xff]
  %v1621 = vld [vmem:[%s5 + $0x98] sm:$0xff]
  %v1622 = vld [vmem:[%s5 + $0xa0] sm:$0xff]
  %v1623 = vld [vmem:[%s5 + $0xa8] sm:$0xff]
  %v1624 = vld [vmem:[%s5 + $0xb0] sm:$0xff]
  %v1625 = vld [vmem:[%s5 + $0xb8] sm:$0xff]
  %v1626 = vld [vmem:[%s5 + $0xc0] sm:$0xff]
  %v1627 = vld [vmem:[%s5 + $0xc8] sm:$0xff]
  %v1628 = vld [vmem:[%s5 + $0xd0] sm:$0xff]
  %v1629 = vld [vmem:[%s5 + $0xd8] sm:$0xff]
  %v1630 = vld [vmem:[%s5 + $0xe0] sm:$0xff]
  %v1631 = vld [vmem:[%s5 + $0xe8] sm:$0xff]
  %v1632 = vld [vmem:[%s5 + $0xf0] sm:$0xff]
  %v1633 = vld [vmem:[%s5 + $0xf8] sm:$0xff]
  %v1634 = vld [vmem:[%s7] sm:$0xf]
  %v1636 = vperm.slane %v1634, 0
  %v1637 = vperm.slane %v1634, 1
  %v1638 = vperm.slane %v1634, 2
  %v1639 = vperm.slane %v1634, 3
  %v1646 = vunpack.c.l.b16 %v1600
  %v1647 = vunpack.c.l.b16 %v1601
  %v1648 = vpack.c.b16 %v1647, %v1646
  %v1682 = vunpack.c.l.b16 %v1602
  %v1683 = vunpack.c.h.b16 %v1602
  %v1684 = vunpack.c.l.b16 %v1603
  %v1685 = vunpack.c.h.b16 %v1603
  %v1686 = vunpack.c.l.b16 %v1604
  %v1687 = vunpack.c.h.b16 %v1604
  %v1688 = vunpack.c.l.b16 %v1605
  %v1689 = vunpack.c.h.b16 %v1605
  %v1690 = vunpack.c.l.b16 %v1606
  %v1691 = vunpack.c.h.b16 %v1606
  %v1692 = vunpack.c.l.b16 %v1607
  %v1693 = vunpack.c.h.b16 %v1607
  %v1694 = vunpack.c.l.b16 %v1608
  %v1695 = vunpack.c.h.b16 %v1608
  %v1696 = vunpack.c.l.b16 %v1609
  %v1697 = vunpack.c.h.b16 %v1609
  %v1698 = vunpack.c.l.b16 %v1610
  %v1699 = vunpack.c.h.b16 %v1610
  %v1700 = vunpack.c.l.b16 %v1611
  %v1701 = vunpack.c.h.b16 %v1611
  %v1702 = vunpack.c.l.b16 %v1612
  %v1703 = vunpack.c.h.b16 %v1612
  %v1704 = vunpack.c.l.b16 %v1613
  %v1705 = vunpack.c.h.b16 %v1613
  %v1706 = vunpack.c.l.b16 %v1614
  %v1707 = vunpack.c.h.b16 %v1614
  %v1708 = vunpack.c.l.b16 %v1615
  %v1709 = vunpack.c.h.b16 %v1615
  %v1710 = vunpack.c.l.b16 %v1616
  %v1711 = vunpack.c.h.b16 %v1616
  %v1712 = vunpack.c.l.b16 %v1617
  %v1713 = vunpack.c.h.b16 %v1617
  %v1714 = vunpack.c.l.b16 %v1618
  %v1715 = vunpack.c.h.b16 %v1618
  %v1716 = vunpack.c.l.b16 %v1619
  %v1717 = vunpack.c.h.b16 %v1619
  %v1718 = vunpack.c.l.b16 %v1620
  %v1719 = vunpack.c.h.b16 %v1620
  %v1720 = vunpack.c.l.b16 %v1621
  %v1721 = vunpack.c.h.b16 %v1621
  %v1722 = vunpack.c.l.b16 %v1622
  %v1723 = vunpack.c.h.b16 %v1622
  %v1724 = vunpack.c.l.b16 %v1623
  %v1725 = vunpack.c.h.b16 %v1623
  %v1726 = vunpack.c.l.b16 %v1624
  %v1727 = vunpack.c.h.b16 %v1624
  %v1728 = vunpack.c.l.b16 %v1625
  %v1729 = vunpack.c.h.b16 %v1625
  %v1730 = vunpack.c.l.b16 %v1626
  %v1731 = vunpack.c.h.b16 %v1626
  %v1732 = vunpack.c.l.b16 %v1627
  %v1733 = vunpack.c.h.b16 %v1627
  %v1734 = vunpack.c.l.b16 %v1628
  %v1735 = vunpack.c.h.b16 %v1628
  %v1736 = vunpack.c.l.b16 %v1629
  %v1737 = vunpack.c.h.b16 %v1629
  %v1738 = vunpack.c.l.b16 %v1630
  %v1739 = vunpack.c.h.b16 %v1630
  %v1740 = vunpack.c.l.b16 %v1631
  %v1741 = vunpack.c.h.b16 %v1631
  %v1742 = vunpack.c.l.b16 %v1632
  %v1743 = vunpack.c.h.b16 %v1632
  %v1744 = vunpack.c.l.b16 %v1633
  %v1745 = vunpack.c.h.b16 %v1633
  %v1746 = vpack.c.b16 %v1686, %v1682
  %v1747 = vpack.c.b16 %v1687, %v1683
  %v1748 = vpack.c.b16 %v1688, %v1684
  %v1749 = vpack.c.b16 %v1689, %v1685
  %v1750 = vpack.c.b16 %v1694, %v1690
  %v1751 = vpack.c.b16 %v1695, %v1691
  %v1752 = vpack.c.b16 %v1696, %v1692
  %v1753 = vpack.c.b16 %v1697, %v1693
  %v1754 = vpack.c.b16 %v1702, %v1698
  %v1755 = vpack.c.b16 %v1703, %v1699
  %v1756 = vpack.c.b16 %v1704, %v1700
  %v1757 = vpack.c.b16 %v1705, %v1701
  %v1758 = vpack.c.b16 %v1710, %v1706
  %v1759 = vpack.c.b16 %v1711, %v1707
  %v1760 = vpack.c.b16 %v1712, %v1708
  %v1761 = vpack.c.b16 %v1713, %v1709
  %v1762 = vpack.c.b16 %v1718, %v1714
  %v1763 = vpack.c.b16 %v1719, %v1715
  %v1764 = vpack.c.b16 %v1720, %v1716
  %v1765 = vpack.c.b16 %v1721, %v1717
  %v1766 = vpack.c.b16 %v1726, %v1722
  %v1767 = vpack.c.b16 %v1727, %v1723
  %v1768 = vpack.c.b16 %v1728, %v1724
  %v1769 = vpack.c.b16 %v1729, %v1725
  %v1770 = vpack.c.b16 %v1734, %v1730
  %v1771 = vpack.c.b16 %v1735, %v1731
  %v1772 = vpack.c.b16 %v1736, %v1732
  %v1773 = vpack.c.b16 %v1737, %v1733
  %v1774 = vpack.c.b16 %v1742, %v1738
  %v1775 = vpack.c.b16 %v1743, %v1739
  %v1776 = vpack.c.b16 %v1744, %v1740
  %v1777 = vpack.c.b16 %v1745, %v1741
  %1810 = vmatpush.bf16.msra.mxu0 %v1774
  %1811 = vmatpush.bf16.msra.mxu0 %v1770
  %1812 = vmatpush.bf16.msra.mxu0 %v1766
  %1813 = vmatpush.bf16.msra.mxu0 %v1762
  %1814 = vmatpush.bf16.msra.mxu0 %v1758
  %1815 = vmatpush.bf16.msra.mxu0 %v1754
  %1816 = vmatpush.bf16.msra.mxu0 %v1750
  %1817 = vmatpush.bf16.msra.mxu0 %v1746
  %1818 = vmatmul.bf16.gmra.mxu0 %v1648
  %v1819 = vpop.f32.mrf.mxu0
  %v1820 = vadd.f32 %v1636, %v1819
  %v1821 = vpop.f32.mrf.mxu0
  %v1822 = vadd.f32 %v1636, %v1821
  %1823 = vdwg.mxu0
  %1824 = vmatpush.bf16.msra.mxu0 %v1775
  %1825 = vmatpush.bf16.msra.mxu0 %v1771
  %1826 = vmatpush.bf16.msra.mxu0 %v1767
  %1827 = vmatpush.bf16.msra.mxu0 %v1763
  %1828 = vmatpush.bf16.msra.mxu0 %v1759
  %1829 = vmatpush.bf16.msra.mxu0 %v1755
  %1830 = vmatpush.bf16.msra.mxu0 %v1751
  %1831 = vmatpush.bf16.msra.mxu0 %v1747
  %1832 = vmatmul.bf16.gmra.mxu0 %v1648
  %v1833 = vpop.f32.mrf.mxu0
  %v1834 = vadd.f32 %v1637, %v1833
  %v1835 = vpop.f32.mrf.mxu0
  %v1836 = vadd.f32 %v1637, %v1835
  %1837 = vdwg.mxu0
  %1838 = vmatpush.bf16.msra.mxu0 %v1776
  %1839 = vmatpush.bf16.msra.mxu0 %v1772
  %1840 = vmatpush.bf16.msra.mxu0 %v1768
  %1841 = vmatpush.bf16.msra.mxu0 %v1764
  %1842 = vmatpush.bf16.msra.mxu0 %v1760
  %1843 = vmatpush.bf16.msra.mxu0 %v1756
  %1844 = vmatpush.bf16.msra.mxu0 %v1752
  %1845 = vmatpush.bf16.msra.mxu0 %v1748
  %1846 = vmatmul.bf16.gmra.mxu0 %v1648
  %v1847 = vpop.f32.mrf.mxu0
  %v1848 = vadd.f32 %v1638, %v1847
  %v1849 = vpop.f32.mrf.mxu0
  %v1850 = vadd.f32 %v1638, %v1849
  %1851 = vdwg.mxu0
  %1852 = vmatpush.bf16.msra.mxu0 %v1777
  %1853 = vmatpush.bf16.msra.mxu0 %v1773
  %1854 = vmatpush.bf16.msra.mxu0 %v1769
  %1855 = vmatpush.bf16.msra.mxu0 %v1765
  %1856 = vmatpush.bf16.msra.mxu0 %v1761
  %1857 = vmatpush.bf16.msra.mxu0 %v1757
  %1858 = vmatpush.bf16.msra.mxu0 %v1753
  %1859 = vmatpush.bf16.msra.mxu0 %v1749
  %1860 = vmatmul.bf16.gmra.mxu0 %v1648
  %v1861 = vpop.f32.mrf.mxu0
  %v1862 = vadd.f32 %v1639, %v1861
  %v1863 = vpop.f32.mrf.mxu0
  %v1864 = vadd.f32 %v1639, %v1863
  %1865 = vdwg.mxu0
  %v1866 = vld [vmem:[%s6] sm:$0xff]
  %v1867 = vld [vmem:[%s6 + $0x8] sm:$0xff]
  %v1868 = vld [vmem:[%s6 + $0x10] sm:$0xff]
  %v1869 = vld [vmem:[%s6 + $0x18] sm:$0xff]
  %v1870 = vld [vmem:[%s6 + $0x20] sm:$0xff]
  %v1871 = vld [vmem:[%s6 + $0x28] sm:$0xff]
  %v1872 = vld [vmem:[%s6 + $0x30] sm:$0xff]
  %v1873 = vld [vmem:[%s6 + $0x38] sm:$0xff]
  %v1874 = vld [vmem:[%s6 + $0x40] sm:$0xff]
  %v1875 = vld [vmem:[%s6 + $0x48] sm:$0xff]
  %v1876 = vld [vmem:[%s6 + $0x50] sm:$0xff]
  %v1877 = vld [vmem:[%s6 + $0x58] sm:$0xff]
  %v1878 = vld [vmem:[%s6 + $0x60] sm:$0xff]
  %v1879 = vld [vmem:[%s6 + $0x68] sm:$0xff]
  %v1880 = vld [vmem:[%s6 + $0x70] sm:$0xff]
  %v1881 = vld [vmem:[%s6 + $0x78] sm:$0xff]
  %v1882 = vld [vmem:[%s6 + $0x80] sm:$0xff]
  %v1883 = vld [vmem:[%s6 + $0x88] sm:$0xff]
  %v1884 = vld [vmem:[%s6 + $0x90] sm:$0xff]
  %v1885 = vld [vmem:[%s6 + $0x98] sm:$0xff]
  %v1886 = vld [vmem:[%s6 + $0xa0] sm:$0xff]
  %v1887 = vld [vmem:[%s6 + $0xa8] sm:$0xff]
  %v1888 = vld [vmem:[%s6 + $0xb0] sm:$0xff]
  %v1889 = vld [vmem:[%s6 + $0xb8] sm:$0xff]
  %v1890 = vld [vmem:[%s6 + $0xc0] sm:$0xff]
  %v1891 = vld [vmem:[%s6 + $0xc8] sm:$0xff]
  %v1892 = vld [vmem:[%s6 + $0xd0] sm:$0xff]
  %v1893 = vld [vmem:[%s6 + $0xd8] sm:$0xff]
  %v1894 = vld [vmem:[%s6 + $0xe0] sm:$0xff]
  %v1895 = vld [vmem:[%s6 + $0xe8] sm:$0xff]
  %v1896 = vld [vmem:[%s6 + $0xf0] sm:$0xff]
  %v1897 = vld [vmem:[%s6 + $0xf8] sm:$0xff]
  %v1930 = vunpack.c.l.b16 %v1866
  %v1931 = vunpack.c.h.b16 %v1866
  %v1932 = vunpack.c.l.b16 %v1867
  %v1933 = vunpack.c.h.b16 %v1867
  %v1934 = vunpack.c.l.b16 %v1868
  %v1935 = vunpack.c.h.b16 %v1868
  %v1936 = vunpack.c.l.b16 %v1869
  %v1937 = vunpack.c.h.b16 %v1869
  %v1938 = vunpack.c.l.b16 %v1870
  %v1939 = vunpack.c.h.b16 %v1870
  %v1940 = vunpack.c.l.b16 %v1871
  %v1941 = vunpack.c.h.b16 %v1871
  %v1942 = vunpack.c.l.b16 %v1872
  %v1943 = vunpack.c.h.b16 %v1872
  %v1944 = vunpack.c.l.b16 %v1873
  %v1945 = vunpack.c.h.b16 %v1873
  %v1946 = vunpack.c.l.b16 %v1874
  %v1947 = vunpack.c.h.b16 %v1874
  %v1948 = vunpack.c.l.b16 %v1875
  %v1949 = vunpack.c.h.b16 %v1875
  %v1950 = vunpack.c.l.b16 %v1876
  %v1951 = vunpack.c.h.b16 %v1876
  %v1952 = vunpack.c.l.b16 %v1877
  %v1953 = vunpack.c.h.b16 %v1877
  %v1954 = vunpack.c.l.b16 %v1878
  %v1955 = vunpack.c.h.b16 %v1878
  %v1956 = vunpack.c.l.b16 %v1879
  %v1957 = vunpack.c.h.b16 %v1879
  %v1958 = vunpack.c.l.b16 %v1880
  %v1959 = vunpack.c.h.b16 %v1880
  %v1960 = vunpack.c.l.b16 %v1881
  %v1961 = vunpack.c.h.b16 %v1881
  %v1962 = vunpack.c.l.b16 %v1882
  %v1963 = vunpack.c.h.b16 %v1882
  %v1964 = vunpack.c.l.b16 %v1883
  %v1965 = vunpack.c.h.b16 %v1883
  %v1966 = vunpack.c.l.b16 %v1884
  %v1967 = vunpack.c.h.b16 %v1884
  %v1968 = vunpack.c.l.b16 %v1885
  %v1969 = vunpack.c.h.b16 %v1885
  %v1970 = vunpack.c.l.b16 %v1886
  %v1971 = vunpack.c.h.b16 %v1886
  %v1972 = vunpack.c.l.b16 %v1887
  %v1973 = vunpack.c.h.b16 %v1887
  %v1974 = vunpack.c.l.b16 %v1888
  %v1975 = vunpack.c.h.b16 %v1888
  %v1976 = vunpack.c.l.b16 %v1889
  %v1977 = vunpack.c.h.b16 %v1889
  %v1978 = vunpack.c.l.b16 %v1890
  %v1979 = vunpack.c.h.b16 %v1890
  %v1980 = vunpack.c.l.b16 %v1891
  %v1981 = vunpack.c.h.b16 %v1891
  %v1982 = vunpack.c.l.b16 %v1892
  %v1983 = vunpack.c.h.b16 %v1892
  %v1984 = vunpack.c.l.b16 %v1893
  %v1985 = vunpack.c.h.b16 %v1893
  %v1986 = vunpack.c.l.b16 %v1894
  %v1987 = vunpack.c.h.b16 %v1894
  %v1988 = vunpack.c.l.b16 %v1895
  %v1989 = vunpack.c.h.b16 %v1895
  %v1990 = vunpack.c.l.b16 %v1896
  %v1991 = vunpack.c.h.b16 %v1896
  %v1992 = vunpack.c.l.b16 %v1897
  %v1993 = vunpack.c.h.b16 %v1897
  %v1994 = vpack.c.b16 %v1934, %v1930
  %v1995 = vpack.c.b16 %v1935, %v1931
  %v1996 = vpack.c.b16 %v1936, %v1932
  %v1997 = vpack.c.b16 %v1937, %v1933
  %v1998 = vpack.c.b16 %v1942, %v1938
  %v1999 = vpack.c.b16 %v1943, %v1939
  %v2000 = vpack.c.b16 %v1944, %v1940
  %v2001 = vpack.c.b16 %v1945, %v1941
  %v2002 = vpack.c.b16 %v1950, %v1946
  %v2003 = vpack.c.b16 %v1951, %v1947
  %v2004 = vpack.c.b16 %v1952, %v1948
  %v2005 = vpack.c.b16 %v1953, %v1949
  %v2006 = vpack.c.b16 %v1958, %v1954
  %v2007 = vpack.c.b16 %v1959, %v1955
  %v2008 = vpack.c.b16 %v1960, %v1956
  %v2009 = vpack.c.b16 %v1961, %v1957
  %v2010 = vpack.c.b16 %v1966, %v1962
  %v2011 = vpack.c.b16 %v1967, %v1963
  %v2012 = vpack.c.b16 %v1968, %v1964
  %v2013 = vpack.c.b16 %v1969, %v1965
  %v2014 = vpack.c.b16 %v1974, %v1970
  %v2015 = vpack.c.b16 %v1975, %v1971
  %v2016 = vpack.c.b16 %v1976, %v1972
  %v2017 = vpack.c.b16 %v1977, %v1973
  %v2018 = vpack.c.b16 %v1982, %v1978
  %v2019 = vpack.c.b16 %v1983, %v1979
  %v2020 = vpack.c.b16 %v1984, %v1980
  %v2021 = vpack.c.b16 %v1985, %v1981
  %v2022 = vpack.c.b16 %v1990, %v1986
  %v2023 = vpack.c.b16 %v1991, %v1987
  %v2024 = vpack.c.b16 %v1992, %v1988
  %v2025 = vpack.c.b16 %v1993, %v1989
  %2058 = vmatpush.bf16.msra.mxu0 %v2022
  %2059 = vmatpush.bf16.msra.mxu0 %v2018
  %2060 = vmatpush.bf16.msra.mxu0 %v2014
  %2061 = vmatpush.bf16.msra.mxu0 %v2010
  %2062 = vmatpush.bf16.msra.mxu0 %v2006
  %2063 = vmatpush.bf16.msra.mxu0 %v2002
  %2064 = vmatpush.bf16.msra.mxu0 %v1998
  %2065 = vmatpush.bf16.msra.mxu0 %v1994
  %2066 = vmatmul.bf16.gmra.mxu0 0
  %v2067 = vpop.f32.mrf.mxu0
  %v2068 = vadd.f32 0.0, %v2067
  %v2069 = vpop.f32.mrf.mxu0
  %2070 = vdwg.mxu0
  %2071 = vmatpush.bf16.msra.mxu0 %v2023
  %2072 = vmatpush.bf16.msra.mxu0 %v2019
  %2073 = vmatpush.bf16.msra.mxu0 %v2015
  %2074 = vmatpush.bf16.msra.mxu0 %v2011
  %2075 = vmatpush.bf16.msra.mxu0 %v2007
  %2076 = vmatpush.bf16.msra.mxu0 %v2003
  %2077 = vmatpush.bf16.msra.mxu0 %v1999
  %2078 = vmatpush.bf16.msra.mxu0 %v1995
  %2079 = vmatmul.bf16.gmra.mxu0 0
  %v2080 = vpop.f32.mrf.mxu0
  %v2081 = vadd.f32 0.0, %v2080
  %v2082 = vpop.f32.mrf.mxu0
  %2083 = vdwg.mxu0
  %2084 = vmatpush.bf16.msra.mxu0 %v2024
  %2085 = vmatpush.bf16.msra.mxu0 %v2020
  %2086 = vmatpush.bf16.msra.mxu0 %v2016
  %2087 = vmatpush.bf16.msra.mxu0 %v2012
  %2088 = vmatpush.bf16.msra.mxu0 %v2008
  %2089 = vmatpush.bf16.msra.mxu0 %v2004
  %2090 = vmatpush.bf16.msra.mxu0 %v2000
  %2091 = vmatpush.bf16.msra.mxu0 %v1996
  %2092 = vmatmul.bf16.gmra.mxu0 0
  %v2093 = vpop.f32.mrf.mxu0
  %v2094 = vadd.f32 0.0, %v2093
  %v2095 = vpop.f32.mrf.mxu0
  %2096 = vdwg.mxu0
  %2097 = vmatpush.bf16.msra.mxu0 %v2025
  %2098 = vmatpush.bf16.msra.mxu0 %v2021
  %2099 = vmatpush.bf16.msra.mxu0 %v2017
  %2100 = vmatpush.bf16.msra.mxu0 %v2013
  %2101 = vmatpush.bf16.msra.mxu0 %v2009
  %2102 = vmatpush.bf16.msra.mxu0 %v2005
  %2103 = vmatpush.bf16.msra.mxu0 %v2001
  %2104 = vmatpush.bf16.msra.mxu0 %v1997
  %2105 = vmatmul.bf16.gmra.mxu0 0
  %v2106 = vpop.f32.mrf.mxu0
  %v2107 = vadd.f32 0.0, %v2106
  %v2108 = vpop.f32.mrf.mxu0
  %2109 = vdwg.mxu0
  %v2110 = vadd.f32 %v1820, %v2068
  %v2111 = vadd.f32 %v1834, %v2081
  %v2112 = vadd.f32 %v1848, %v2094
  %v2113 = vadd.f32 %v1862, %v2107
  %v2114 = vxor.u32 %v2110, 2147483648
  %v2115 = vmul.f32 %v2114, 1.442695
  %v2116 = vpow.pop %v2115
  %v2117 = vadd.f32 %v2116, 1.0
  %v2118 = vrcp.pop %v2117
  %v2119 = vmul.f32 %v2117, %v2118
  %v2120 = vsub.f32 1.0, %v2119
  %v2121 = vmul.f32 %v2118, %v2120
  %v2122 = vadd.f32 %v2118, %v2121
  %vm2123 = vweird.f32 %v2117
  %vm2124 = vweird.f32 %v2118
  %vm2125 = vmor %vm2123, %vm2124
  %v2126 = vsel %vm2125, %v2118, %v2122
  %v2127 = vand.u32 2147483647, %v2117
  %vm2128 = vcmp.eq.f32.partialorder %v2127, 8.507059e+37
  %v2129 = vand.u32 %v2117, 2147483648
  %v2130 = vor.u32 1.1754944e-38, %v2129
  %v2131 = vsel %vm2128, %v2130, %v2126
  %v2132 = vmul.f32 1.0, %v2131
  %v2133 = vxor.u32 %v2111, 2147483648
  %v2134 = vmul.f32 %v2133, 1.442695
  %v2135 = vpow.pop %v2134
  %v2136 = vadd.f32 %v2135, 1.0
  %v2137 = vrcp.pop %v2136
  %v2138 = vmul.f32 %v2136, %v2137
  %v2139 = vsub.f32 1.0, %v2138
  %v2140 = vmul.f32 %v2137, %v2139
  %v2141 = vadd.f32 %v2137, %v2140
  %vm2142 = vweird.f32 %v2136
  %vm2143 = vweird.f32 %v2137
  %vm2144 = vmor %vm2142, %vm2143
  %v2145 = vsel %vm2144, %v2137, %v2141
  %v2146 = vand.u32 2147483647, %v2136
  %vm2147 = vcmp.eq.f32.partialorder %v2146, 8.507059e+37
  %v2148 = vand.u32 %v2136, 2147483648
  %v2149 = vor.u32 1.1754944e-38, %v2148
  %v2150 = vsel %vm2147, %v2149, %v2145
  %v2151 = vmul.f32 1.0, %v2150
  %v2152 = vtanh.pop %v2112
  %v2153 = vxor.u32 %v2113, 2147483648
  %v2154 = vmul.f32 %v2153, 1.442695
  %v2155 = vpow.pop %v2154
  %v2156 = vadd.f32 %v2155, 1.0
  %v2157 = vrcp.pop %v2156
  %v2158 = vmul.f32 %v2156, %v2157
  %v2159 = vsub.f32 1.0, %v2158
  %v2160 = vmul.f32 %v2157, %v2159
  %v2161 = vadd.f32 %v2157, %v2160
  %vm2162 = vweird.f32 %v2156
  %vm2163 = vweird.f32 %v2157
  %vm2164 = vmor %vm2162, %vm2163
  %v2165 = vsel %vm2164, %v2157, %v2161
  %v2166 = vand.u32 2147483647, %v2156
  %vm2167 = vcmp.eq.f32.partialorder %v2166, 8.507059e+37
  %v2168 = vand.u32 %v2156, 2147483648
  %v2169 = vor.u32 1.1754944e-38, %v2168
  %v2170 = vsel %vm2167, %v2169, %v2165
  %v2171 = vmul.f32 1.0, %v2170
  %v2172 = vmul.f32 %v2151, 0.0
  %v2173 = vmul.f32 %v2132, %v2152
  %v2174 = vadd.f32 %v2172, %v2173
  %v2175 = vtanh.pop %v2174
  %v2176 = vmul.f32 %v2171, %v2175
  %v2177 = vpack.c.bf16 %v2176, %v2176
  %2178 = vmatpush.bf16.msra.mxu0 %v2022
  %2179 = vmatpush.bf16.msra.mxu0 %v2018
  %2180 = vmatpush.bf16.msra.mxu0 %v2014
  %2181 = vmatpush.bf16.msra.mxu0 %v2010
  %2182 = vmatpush.bf16.msra.mxu0 %v2006
  %2183 = vmatpush.bf16.msra.mxu0 %v2002
  %2184 = vmatpush.bf16.msra.mxu0 %v1998
  %2185 = vmatpush.bf16.msra.mxu0 %v1994
  %2186 = vmatmul.bf16.gmra.mxu0 %v2177
  %v2187 = vpop.f32.mrf.mxu0
  %v2188 = vadd.f32 0.0, %v2187
  %v2189 = vpop.f32.mrf.mxu0
  %2190 = vdwg.mxu0
  %2191 = vmatpush.bf16.msra.mxu0 %v2023
  %2192 = vmatpush.bf16.msra.mxu0 %v2019
  %2193 = vmatpush.bf16.msra.mxu0 %v2015
  %2194 = vmatpush.bf16.msra.mxu0 %v2011
  %2195 = vmatpush.bf16.msra.mxu0 %v2007
  %2196 = vmatpush.bf16.msra.mxu0 %v2003
  %2197 = vmatpush.bf16.msra.mxu0 %v1999
  %2198 = vmatpush.bf16.msra.mxu0 %v1995
  %2199 = vmatmul.bf16.gmra.mxu0 %v2177
  %v2200 = vpop.f32.mrf.mxu0
  %v2201 = vadd.f32 0.0, %v2200
  %v2202 = vpop.f32.mrf.mxu0
  %2203 = vdwg.mxu0
  %2204 = vmatpush.bf16.msra.mxu0 %v2024
  %2205 = vmatpush.bf16.msra.mxu0 %v2020
  %2206 = vmatpush.bf16.msra.mxu0 %v2016
  %2207 = vmatpush.bf16.msra.mxu0 %v2012
  %2208 = vmatpush.bf16.msra.mxu0 %v2008
  %2209 = vmatpush.bf16.msra.mxu0 %v2004
  %2210 = vmatpush.bf16.msra.mxu0 %v2000
  %2211 = vmatpush.bf16.msra.mxu0 %v1996
  %2212 = vmatmul.bf16.gmra.mxu0 %v2177
  %v2213 = vpop.f32.mrf.mxu0
  %v2214 = vadd.f32 0.0, %v2213
  %v2215 = vpop.f32.mrf.mxu0
  %2216 = vdwg.mxu0
  %2217 = vmatpush.bf16.msra.mxu0 %v2025
  %2218 = vmatpush.bf16.msra.mxu0 %v2021
  %2219 = vmatpush.bf16.msra.mxu0 %v2017
  %2220 = vmatpush.bf16.msra.mxu0 %v2013
  %2221 = vmatpush.bf16.msra.mxu0 %v2009
  %2222 = vmatpush.bf16.msra.mxu0 %v2005
  %2223 = vmatpush.bf16.msra.mxu0 %v2001
  %2224 = vmatpush.bf16.msra.mxu0 %v1997
  %2225 = vmatmul.bf16.gmra.mxu0 %v2177
  %v2226 = vpop.f32.mrf.mxu0
  %v2227 = vadd.f32 0.0, %v2226
  %v2228 = vpop.f32.mrf.mxu0
  %2229 = vdwg.mxu0
  %v2234 = vrot.slane %v2188, 6
  %v2235 = vrot.slane %v2201, 6
  %v2236 = vrot.slane %v2214, 6
  %v2237 = vrot.slane %v2227, 6
  %v2242 = vadd.f32 %v1820, %v2234
  %v2243 = vadd.f32 %v1834, %v2235
  %v2244 = vadd.f32 %v1848, %v2236
  %v2245 = vadd.f32 %v1862, %v2237
  %v2246 = vxor.u32 %v2242, 2147483648
  %v2247 = vmul.f32 %v2246, 1.442695
  %v2248 = vpow.pop %v2247
  %v2249 = vadd.f32 %v2248, 1.0
  %v2250 = vrcp.pop %v2249
  %v2251 = vmul.f32 %v2249, %v2250
  %v2252 = vsub.f32 1.0, %v2251
  %v2253 = vmul.f32 %v2250, %v2252
  %v2254 = vadd.f32 %v2250, %v2253
  %vm2255 = vweird.f32 %v2249
  %vm2256 = vweird.f32 %v2250
  %vm2257 = vmor %vm2255, %vm2256
  %v2258 = vsel %vm2257, %v2250, %v2254
  %v2259 = vand.u32 2147483647, %v2249
  %vm2260 = vcmp.eq.f32.partialorder %v2259, 8.507059e+37
  %v2261 = vand.u32 %v2249, 2147483648
  %v2262 = vor.u32 1.1754944e-38, %v2261
  %v2263 = vsel %vm2260, %v2262, %v2258
  %v2264 = vmul.f32 1.0, %v2263
  %v2265 = vxor.u32 %v2243, 2147483648
  %v2266 = vmul.f32 %v2265, 1.442695
  %v2267 = vpow.pop %v2266
  %v2268 = vadd.f32 %v2267, 1.0
  %v2269 = vrcp.pop %v2268
  %v2270 = vmul.f32 %v2268, %v2269
  %v2271 = vsub.f32 1.0, %v2270
  %v2272 = vmul.f32 %v2269, %v2271
  %v2273 = vadd.f32 %v2269, %v2272
  %vm2274 = vweird.f32 %v2268
  %vm2275 = vweird.f32 %v2269
  %vm2276 = vmor %vm2274, %vm2275
  %v2277 = vsel %vm2276, %v2269, %v2273
  %v2278 = vand.u32 2147483647, %v2268
  %vm2279 = vcmp.eq.f32.partialorder %v2278, 8.507059e+37
  %v2280 = vand.u32 %v2268, 2147483648
  %v2281 = vor.u32 1.1754944e-38, %v2280
  %v2282 = vsel %vm2279, %v2281, %v2277
  %v2283 = vmul.f32 1.0, %v2282
  %v2284 = vtanh.pop %v2244
  %v2285 = vxor.u32 %v2245, 2147483648
  %v2286 = vmul.f32 %v2285, 1.442695
  %v2287 = vpow.pop %v2286
  %v2288 = vadd.f32 %v2287, 1.0
  %v2289 = vrcp.pop %v2288
  %v2290 = vmul.f32 %v2288, %v2289
  %v2291 = vsub.f32 1.0, %v2290
  %v2292 = vmul.f32 %v2289, %v2291
  %v2293 = vadd.f32 %v2289, %v2292
  %vm2294 = vweird.f32 %v2288
  %vm2295 = vweird.f32 %v2289
  %vm2296 = vmor %vm2294, %vm2295
  %v2297 = vsel %vm2296, %v2289, %v2293
  %v2298 = vand.u32 2147483647, %v2288
  %vm2299 = vcmp.eq.f32.partialorder %v2298, 8.507059e+37
  %v2300 = vand.u32 %v2288, 2147483648
  %v2301 = vor.u32 1.1754944e-38, %v2300
  %v2302 = vsel %vm2299, %v2301, %v2297
  %v2303 = vmul.f32 1.0, %v2302
  %v2305 = vrot.slane %v2174, 6
  %v2307 = vmul.f32 %v2283, %v2305
  %v2308 = vmul.f32 %v2264, %v2284
  %v2309 = vadd.f32 %v2307, %v2308
  %v2310 = vtanh.pop %v2309
  %v2311 = vmul.f32 %v2303, %v2310
  %v2312 = vpack.c.bf16 %v2311, %v2311
  %v2314 = vrot.slane %v2312, 1
  %2316 = vmatpush.bf16.msra.mxu0 %v2022
  %2317 = vmatpush.bf16.msra.mxu0 %v2018
  %2318 = vmatpush.bf16.msra.mxu0 %v2014
  %2319 = vmatpush.bf16.msra.mxu0 %v2010
  %2320 = vmatpush.bf16.msra.mxu0 %v2006
  %2321 = vmatpush.bf16.msra.mxu0 %v2002
  %2322 = vmatpush.bf16.msra.mxu0 %v1998
  %2323 = vmatpush.bf16.msra.mxu0 %v1994
  %2324 = vmatmul.bf16.gmra.mxu0 %v2314
  %v2325 = vpop.f32.mrf.mxu0
  %v2326 = vadd.f32 0.0, %v2325
  %v2327 = vpop.f32.mrf.mxu0
  %2328 = vdwg.mxu0
  %2329 = vmatpush.bf16.msra.mxu0 %v2023
  %2330 = vmatpush.bf16.msra.mxu0 %v2019
  %2331 = vmatpush.bf16.msra.mxu0 %v2015
  %2332 = vmatpush.bf16.msra.mxu0 %v2011
  %2333 = vmatpush.bf16.msra.mxu0 %v2007
  %2334 = vmatpush.bf16.msra.mxu0 %v2003
  %2335 = vmatpush.bf16.msra.mxu0 %v1999
  %2336 = vmatpush.bf16.msra.mxu0 %v1995
  %2337 = vmatmul.bf16.gmra.mxu0 %v2314
  %v2338 = vpop.f32.mrf.mxu0
  %v2339 = vadd.f32 0.0, %v2338
  %v2340 = vpop.f32.mrf.mxu0
  %2341 = vdwg.mxu0
  %2342 = vmatpush.bf16.msra.mxu0 %v2024
  %2343 = vmatpush.bf16.msra.mxu0 %v2020
  %2344 = vmatpush.bf16.msra.mxu0 %v2016
  %2345 = vmatpush.bf16.msra.mxu0 %v2012
  %2346 = vmatpush.bf16.msra.mxu0 %v2008
  %2347 = vmatpush.bf16.msra.mxu0 %v2004
  %2348 = vmatpush.bf16.msra.mxu0 %v2000
  %2349 = vmatpush.bf16.msra.mxu0 %v1996
  %2350 = vmatmul.bf16.gmra.mxu0 %v2314
  %v2351 = vpop.f32.mrf.mxu0
  %v2352 = vadd.f32 0.0, %v2351
  %v2353 = vpop.f32.mrf.mxu0
  %2354 = vdwg.mxu0
  %2355 = vmatpush.bf16.msra.mxu0 %v2025
  %2356 = vmatpush.bf16.msra.mxu0 %v2021
  %2357 = vmatpush.bf16.msra.mxu0 %v2017
  %2358 = vmatpush.bf16.msra.mxu0 %v2013
  %2359 = vmatpush.bf16.msra.mxu0 %v2009
  %2360 = vmatpush.bf16.msra.mxu0 %v2005
  %2361 = vmatpush.bf16.msra.mxu0 %v2001
  %2362 = vmatpush.bf16.msra.mxu0 %v1997
  %2363 = vmatmul.bf16.gmra.mxu0 %v2314
  %v2364 = vpop.f32.mrf.mxu0
  %v2365 = vadd.f32 0.0, %v2364
  %v2366 = vpop.f32.mrf.mxu0
  %2367 = vdwg.mxu0
  %v2372 = vrot.slane %v2326, 4
  %v2373 = vrot.slane %v2339, 4
  %v2374 = vrot.slane %v2352, 4
  %v2375 = vrot.slane %v2365, 4
  %v2380 = vadd.f32 %v1820, %v2372
  %v2381 = vadd.f32 %v1834, %v2373
  %v2382 = vadd.f32 %v1848, %v2374
  %v2383 = vadd.f32 %v1862, %v2375
  %v2384 = vxor.u32 %v2380, 2147483648
  %v2385 = vmul.f32 %v2384, 1.442695
  %v2386 = vpow.pop %v2385
  %v2387 = vadd.f32 %v2386, 1.0
  %v2388 = vrcp.pop %v2387
  %v2389 = vmul.f32 %v2387, %v2388
  %v2390 = vsub.f32 1.0, %v2389
  %v2391 = vmul.f32 %v2388, %v2390
  %v2392 = vadd.f32 %v2388, %v2391
  %vm2393 = vweird.f32 %v2387
  %vm2394 = vweird.f32 %v2388
  %vm2395 = vmor %vm2393, %vm2394
  %v2396 = vsel %vm2395, %v2388, %v2392
  %v2397 = vand.u32 2147483647, %v2387
  %vm2398 = vcmp.eq.f32.partialorder %v2397, 8.507059e+37
  %v2399 = vand.u32 %v2387, 2147483648
  %v2400 = vor.u32 1.1754944e-38, %v2399
  %v2401 = vsel %vm2398, %v2400, %v2396
  %v2402 = vmul.f32 1.0, %v2401
  %v2403 = vxor.u32 %v2381, 2147483648
  %v2404 = vmul.f32 %v2403, 1.442695
  %v2405 = vpow.pop %v2404
  %v2406 = vadd.f32 %v2405, 1.0
  %v2407 = vrcp.pop %v2406
  %v2408 = vmul.f32 %v2406, %v2407
  %v2409 = vsub.f32 1.0, %v2408
  %v2410 = vmul.f32 %v2407, %v2409
  %v2411 = vadd.f32 %v2407, %v2410
  %vm2412 = vweird.f32 %v2406
  %vm2413 = vweird.f32 %v2407
  %vm2414 = vmor %vm2412, %vm2413
  %v2415 = vsel %vm2414, %v2407, %v2411
  %v2416 = vand.u32 2147483647, %v2406
  %vm2417 = vcmp.eq.f32.partialorder %v2416, 8.507059e+37
  %v2418 = vand.u32 %v2406, 2147483648
  %v2419 = vor.u32 1.1754944e-38, %v2418
  %v2420 = vsel %vm2417, %v2419, %v2415
  %v2421 = vmul.f32 1.0, %v2420
  %v2422 = vtanh.pop %v2382
  %v2423 = vxor.u32 %v2383, 2147483648
  %v2424 = vmul.f32 %v2423, 1.442695
  %v2425 = vpow.pop %v2424
  %v2426 = vadd.f32 %v2425, 1.0
  %v2427 = vrcp.pop %v2426
  %v2428 = vmul.f32 %v2426, %v2427
  %v2429 = vsub.f32 1.0, %v2428
  %v2430 = vmul.f32 %v2427, %v2429
  %v2431 = vadd.f32 %v2427, %v2430
  %vm2432 = vweird.f32 %v2426
  %vm2433 = vweird.f32 %v2427
  %vm2434 = vmor %vm2432, %vm2433
  %v2435 = vsel %vm2434, %v2427, %v2431
  %v2436 = vand.u32 2147483647, %v2426
  %vm2437 = vcmp.eq.f32.partialorder %v2436, 8.507059e+37
  %v2438 = vand.u32 %v2426, 2147483648
  %v2439 = vor.u32 1.1754944e-38, %v2438
  %v2440 = vsel %vm2437, %v2439, %v2435
  %v2441 = vmul.f32 1.0, %v2440
  %v2443 = vrot.slane %v2309, 6
  %v2445 = vmul.f32 %v2421, %v2443
  %v2446 = vmul.f32 %v2402, %v2422
  %v2447 = vadd.f32 %v2445, %v2446
  %v2448 = vtanh.pop %v2447
  %v2449 = vmul.f32 %v2441, %v2448
  %v2450 = vpack.c.bf16 %v2449, %v2449
  %v2452 = vrot.slane %v2450, 2
  %2454 = vmatpush.bf16.msra.mxu0 %v2022
  %2455 = vmatpush.bf16.msra.mxu0 %v2018
  %2456 = vmatpush.bf16.msra.mxu0 %v2014
  %2457 = vmatpush.bf16.msra.mxu0 %v2010
  %2458 = vmatpush.bf16.msra.mxu0 %v2006
  %2459 = vmatpush.bf16.msra.mxu0 %v2002
  %2460 = vmatpush.bf16.msra.mxu0 %v1998
  %2461 = vmatpush.bf16.msra.mxu0 %v1994
  %2462 = vmatmul.bf16.gmra.mxu0 %v2452
  %v2463 = vpop.f32.mrf.mxu0
  %v2464 = vadd.f32 0.0, %v2463
  %v2465 = vpop.f32.mrf.mxu0
  %2466 = vdwg.mxu0
  %2467 = vmatpush.bf16.msra.mxu0 %v2023
  %2468 = vmatpush.bf16.msra.mxu0 %v2019
  %2469 = vmatpush.bf16.msra.mxu0 %v2015
  %2470 = vmatpush.bf16.msra.mxu0 %v2011
  %2471 = vmatpush.bf16.msra.mxu0 %v2007
  %2472 = vmatpush.bf16.msra.mxu0 %v2003
  %2473 = vmatpush.bf16.msra.mxu0 %v1999
  %2474 = vmatpush.bf16.msra.mxu0 %v1995
  %2475 = vmatmul.bf16.gmra.mxu0 %v2452
  %v2476 = vpop.f32.mrf.mxu0
  %v2477 = vadd.f32 0.0, %v2476
  %v2478 = vpop.f32.mrf.mxu0
  %2479 = vdwg.mxu0
  %2480 = vmatpush.bf16.msra.mxu0 %v2024
  %2481 = vmatpush.bf16.msra.mxu0 %v2020
  %2482 = vmatpush.bf16.msra.mxu0 %v2016
  %2483 = vmatpush.bf16.msra.mxu0 %v2012
  %2484 = vmatpush.bf16.msra.mxu0 %v2008
  %2485 = vmatpush.bf16.msra.mxu0 %v2004
  %2486 = vmatpush.bf16.msra.mxu0 %v2000
  %2487 = vmatpush.bf16.msra.mxu0 %v1996
  %2488 = vmatmul.bf16.gmra.mxu0 %v2452
  %v2489 = vpop.f32.mrf.mxu0
  %v2490 = vadd.f32 0.0, %v2489
  %v2491 = vpop.f32.mrf.mxu0
  %2492 = vdwg.mxu0
  %2493 = vmatpush.bf16.msra.mxu0 %v2025
  %2494 = vmatpush.bf16.msra.mxu0 %v2021
  %2495 = vmatpush.bf16.msra.mxu0 %v2017
  %2496 = vmatpush.bf16.msra.mxu0 %v2013
  %2497 = vmatpush.bf16.msra.mxu0 %v2009
  %2498 = vmatpush.bf16.msra.mxu0 %v2005
  %2499 = vmatpush.bf16.msra.mxu0 %v2001
  %2500 = vmatpush.bf16.msra.mxu0 %v1997
  %2501 = vmatmul.bf16.gmra.mxu0 %v2452
  %v2502 = vpop.f32.mrf.mxu0
  %v2503 = vadd.f32 0.0, %v2502
  %v2504 = vpop.f32.mrf.mxu0
  %2505 = vdwg.mxu0
  %v2510 = vrot.slane %v2464, 2
  %v2511 = vrot.slane %v2477, 2
  %v2512 = vrot.slane %v2490, 2
  %v2513 = vrot.slane %v2503, 2
  %v2518 = vadd.f32 %v1820, %v2510
  %v2519 = vadd.f32 %v1834, %v2511
  %v2520 = vadd.f32 %v1848, %v2512
  %v2521 = vadd.f32 %v1862, %v2513
  %v2522 = vxor.u32 %v2518, 2147483648
  %v2523 = vmul.f32 %v2522, 1.442695
  %v2524 = vpow.pop %v2523
  %v2525 = vadd.f32 %v2524, 1.0
  %v2526 = vrcp.pop %v2525
  %v2527 = vmul.f32 %v2525, %v2526
  %v2528 = vsub.f32 1.0, %v2527
  %v2529 = vmul.f32 %v2526, %v2528
  %v2530 = vadd.f32 %v2526, %v2529
  %vm2531 = vweird.f32 %v2525
  %vm2532 = vweird.f32 %v2526
  %vm2533 = vmor %vm2531, %vm2532
  %v2534 = vsel %vm2533, %v2526, %v2530
  %v2535 = vand.u32 2147483647, %v2525
  %vm2536 = vcmp.eq.f32.partialorder %v2535, 8.507059e+37
  %v2537 = vand.u32 %v2525, 2147483648
  %v2538 = vor.u32 1.1754944e-38, %v2537
  %v2539 = vsel %vm2536, %v2538, %v2534
  %v2540 = vmul.f32 1.0, %v2539
  %v2541 = vxor.u32 %v2519, 2147483648
  %v2542 = vmul.f32 %v2541, 1.442695
  %v2543 = vpow.pop %v2542
  %v2544 = vadd.f32 %v2543, 1.0
  %v2545 = vrcp.pop %v2544
  %v2546 = vmul.f32 %v2544, %v2545
  %v2547 = vsub.f32 1.0, %v2546
  %v2548 = vmul.f32 %v2545, %v2547
  %v2549 = vadd.f32 %v2545, %v2548
  %vm2550 = vweird.f32 %v2544
  %vm2551 = vweird.f32 %v2545
  %vm2552 = vmor %vm2550, %vm2551
  %v2553 = vsel %vm2552, %v2545, %v2549
  %v2554 = vand.u32 2147483647, %v2544
  %vm2555 = vcmp.eq.f32.partialorder %v2554, 8.507059e+37
  %v2556 = vand.u32 %v2544, 2147483648
  %v2557 = vor.u32 1.1754944e-38, %v2556
  %v2558 = vsel %vm2555, %v2557, %v2553
  %v2559 = vmul.f32 1.0, %v2558
  %v2560 = vtanh.pop %v2520
  %v2561 = vxor.u32 %v2521, 2147483648
  %v2562 = vmul.f32 %v2561, 1.442695
  %v2563 = vpow.pop %v2562
  %v2564 = vadd.f32 %v2563, 1.0
  %v2565 = vrcp.pop %v2564
  %v2566 = vmul.f32 %v2564, %v2565
  %v2567 = vsub.f32 1.0, %v2566
  %v2568 = vmul.f32 %v2565, %v2567
  %v2569 = vadd.f32 %v2565, %v2568
  %vm2570 = vweird.f32 %v2564
  %vm2571 = vweird.f32 %v2565
  %vm2572 = vmor %vm2570, %vm2571
  %v2573 = vsel %vm2572, %v2565, %v2569
  %v2574 = vand.u32 2147483647, %v2564
  %vm2575 = vcmp.eq.f32.partialorder %v2574, 8.507059e+37
  %v2576 = vand.u32 %v2564, 2147483648
  %v2577 = vor.u32 1.1754944e-38, %v2576
  %v2578 = vsel %vm2575, %v2577, %v2573
  %v2579 = vmul.f32 1.0, %v2578
  %v2581 = vrot.slane %v2447, 6
  %v2583 = vmul.f32 %v2559, %v2581
  %v2584 = vmul.f32 %v2540, %v2560
  %v2585 = vadd.f32 %v2583, %v2584
  %v2586 = vtanh.pop %v2585
  %v2587 = vmul.f32 %v2579, %v2586
  %v2588 = vpack.c.bf16 %v2587, %v2587
  %v2590 = vrot.slane %v2588, 3
  %2592 = vmatpush.bf16.msra.mxu0 %v2022
  %2593 = vmatpush.bf16.msra.mxu0 %v2018
  %2594 = vmatpush.bf16.msra.mxu0 %v2014
  %2595 = vmatpush.bf16.msra.mxu0 %v2010
  %2596 = vmatpush.bf16.msra.mxu0 %v2006
  %2597 = vmatpush.bf16.msra.mxu0 %v2002
  %2598 = vmatpush.bf16.msra.mxu0 %v1998
  %2599 = vmatpush.bf16.msra.mxu0 %v1994
  %2600 = vmatmul.bf16.gmra.mxu0 %v2590
  %v2601 = vpop.f32.mrf.mxu0
  %v2602 = vadd.f32 0.0, %v2601
  %v2603 = vpop.f32.mrf.mxu0
  %2604 = vdwg.mxu0
  %2605 = vmatpush.bf16.msra.mxu0 %v2023
  %2606 = vmatpush.bf16.msra.mxu0 %v2019
  %2607 = vmatpush.bf16.msra.mxu0 %v2015
  %2608 = vmatpush.bf16.msra.mxu0 %v2011
  %2609 = vmatpush.bf16.msra.mxu0 %v2007
  %2610 = vmatpush.bf16.msra.mxu0 %v2003
  %2611 = vmatpush.bf16.msra.mxu0 %v1999
  %2612 = vmatpush.bf16.msra.mxu0 %v1995
  %2613 = vmatmul.bf16.gmra.mxu0 %v2590
  %v2614 = vpop.f32.mrf.mxu0
  %v2615 = vadd.f32 0.0, %v2614
  %v2616 = vpop.f32.mrf.mxu0
  %2617 = vdwg.mxu0
  %2618 = vmatpush.bf16.msra.mxu0 %v2024
  %2619 = vmatpush.bf16.msra.mxu0 %v2020
  %2620 = vmatpush.bf16.msra.mxu0 %v2016
  %2621 = vmatpush.bf16.msra.mxu0 %v2012
  %2622 = vmatpush.bf16.msra.mxu0 %v2008
  %2623 = vmatpush.bf16.msra.mxu0 %v2004
  %2624 = vmatpush.bf16.msra.mxu0 %v2000
  %2625 = vmatpush.bf16.msra.mxu0 %v1996
  %2626 = vmatmul.bf16.gmra.mxu0 %v2590
  %v2627 = vpop.f32.mrf.mxu0
  %v2628 = vadd.f32 0.0, %v2627
  %v2629 = vpop.f32.mrf.mxu0
  %2630 = vdwg.mxu0
  %2631 = vmatpush.bf16.msra.mxu0 %v2025
  %2632 = vmatpush.bf16.msra.mxu0 %v2021
  %2633 = vmatpush.bf16.msra.mxu0 %v2017
  %2634 = vmatpush.bf16.msra.mxu0 %v2013
  %2635 = vmatpush.bf16.msra.mxu0 %v2009
  %2636 = vmatpush.bf16.msra.mxu0 %v2005
  %2637 = vmatpush.bf16.msra.mxu0 %v2001
  %2638 = vmatpush.bf16.msra.mxu0 %v1997
  %2639 = vmatmul.bf16.gmra.mxu0 %v2590
  %v2640 = vpop.f32.mrf.mxu0
  %v2641 = vadd.f32 0.0, %v2640
  %v2642 = vpop.f32.mrf.mxu0
  %2643 = vdwg.mxu0
  %v2644 = vadd.f32 %v1822, %v2602
  %v2645 = vadd.f32 %v1836, %v2615
  %v2646 = vadd.f32 %v1850, %v2628
  %v2647 = vadd.f32 %v1864, %v2641
  %v2648 = vxor.u32 %v2644, 2147483648
  %v2649 = vmul.f32 %v2648, 1.442695
  %v2650 = vpow.pop %v2649
  %v2651 = vadd.f32 %v2650, 1.0
  %v2652 = vrcp.pop %v2651
  %v2653 = vmul.f32 %v2651, %v2652
  %v2654 = vsub.f32 1.0, %v2653
  %v2655 = vmul.f32 %v2652, %v2654
  %v2656 = vadd.f32 %v2652, %v2655
  %vm2657 = vweird.f32 %v2651
  %vm2658 = vweird.f32 %v2652
  %vm2659 = vmor %vm2657, %vm2658
  %v2660 = vsel %vm2659, %v2652, %v2656
  %v2661 = vand.u32 2147483647, %v2651
  %vm2662 = vcmp.eq.f32.partialorder %v2661, 8.507059e+37
  %v2663 = vand.u32 %v2651, 2147483648
  %v2664 = vor.u32 1.1754944e-38, %v2663
  %v2665 = vsel %vm2662, %v2664, %v2660
  %v2666 = vmul.f32 1.0, %v2665
  %v2667 = vxor.u32 %v2645, 2147483648
  %v2668 = vmul.f32 %v2667, 1.442695
  %v2669 = vpow.pop %v2668
  %v2670 = vadd.f32 %v2669, 1.0
  %v2671 = vrcp.pop %v2670
  %v2672 = vmul.f32 %v2670, %v2671
  %v2673 = vsub.f32 1.0, %v2672
  %v2674 = vmul.f32 %v2671, %v2673
  %v2675 = vadd.f32 %v2671, %v2674
  %vm2676 = vweird.f32 %v2670
  %vm2677 = vweird.f32 %v2671
  %vm2678 = vmor %vm2676, %vm2677
  %v2679 = vsel %vm2678, %v2671, %v2675
  %v2680 = vand.u32 2147483647, %v2670
  %vm2681 = vcmp.eq.f32.partialorder %v2680, 8.507059e+37
  %v2682 = vand.u32 %v2670, 2147483648
  %v2683 = vor.u32 1.1754944e-38, %v2682
  %v2684 = vsel %vm2681, %v2683, %v2679
  %v2685 = vmul.f32 1.0, %v2684
  %v2686 = vtanh.pop %v2646
  %v2687 = vxor.u32 %v2647, 2147483648
  %v2688 = vmul.f32 %v2687, 1.442695
  %v2689 = vpow.pop %v2688
  %v2690 = vadd.f32 %v2689, 1.0
  %v2691 = vrcp.pop %v2690
  %v2692 = vmul.f32 %v2690, %v2691
  %v2693 = vsub.f32 1.0, %v2692
  %v2694 = vmul.f32 %v2691, %v2693
  %v2695 = vadd.f32 %v2691, %v2694
  %vm2696 = vweird.f32 %v2690
  %vm2697 = vweird.f32 %v2691
  %vm2698 = vmor %vm2696, %vm2697
  %v2699 = vsel %vm2698, %v2691, %v2695
  %v2700 = vand.u32 2147483647, %v2690
  %vm2701 = vcmp.eq.f32.partialorder %v2700, 8.507059e+37
  %v2702 = vand.u32 %v2690, 2147483648
  %v2703 = vor.u32 1.1754944e-38, %v2702
  %v2704 = vsel %vm2701, %v2703, %v2699
  %v2705 = vmul.f32 1.0, %v2704
  %v2707 = vrot.slane %v2585, 6
  %v2709 = vmul.f32 %v2685, %v2707
  %v2710 = vmul.f32 %v2666, %v2686
  %v2711 = vadd.f32 %v2709, %v2710
  %v2712 = vtanh.pop %v2711
  %v2713 = vmul.f32 %v2705, %v2712
  %v2714 = vpack.c.bf16 %v2713, %v2713
  %2715 = vmatpush.bf16.msra.mxu0 %v2022
  %2716 = vmatpush.bf16.msra.mxu0 %v2018
  %2717 = vmatpush.bf16.msra.mxu0 %v2014
  %2718 = vmatpush.bf16.msra.mxu0 %v2010
  %2719 = vmatpush.bf16.msra.mxu0 %v2006
  %2720 = vmatpush.bf16.msra.mxu0 %v2002
  %2721 = vmatpush.bf16.msra.mxu0 %v1998
  %2722 = vmatpush.bf16.msra.mxu0 %v1994
  %2723 = vmatmul.bf16.gmra.mxu0 %v2714
  %v2724 = vpop.f32.mrf.mxu0
  %v2725 = vadd.f32 0.0, %v2724
  %v2726 = vpop.f32.mrf.mxu0
  %2727 = vdwg.mxu0
  %2728 = vmatpush.bf16.msra.mxu0 %v2023
  %2729 = vmatpush.bf16.msra.mxu0 %v2019
  %2730 = vmatpush.bf16.msra.mxu0 %v2015
  %2731 = vmatpush.bf16.msra.mxu0 %v2011
  %2732 = vmatpush.bf16.msra.mxu0 %v2007
  %2733 = vmatpush.bf16.msra.mxu0 %v2003
  %2734 = vmatpush.bf16.msra.mxu0 %v1999
  %2735 = vmatpush.bf16.msra.mxu0 %v1995
  %2736 = vmatmul.bf16.gmra.mxu0 %v2714
  %v2737 = vpop.f32.mrf.mxu0
  %v2738 = vadd.f32 0.0, %v2737
  %v2739 = vpop.f32.mrf.mxu0
  %2740 = vdwg.mxu0
  %2741 = vmatpush.bf16.msra.mxu0 %v2024
  %2742 = vmatpush.bf16.msra.mxu0 %v2020
  %2743 = vmatpush.bf16.msra.mxu0 %v2016
  %2744 = vmatpush.bf16.msra.mxu0 %v2012
  %2745 = vmatpush.bf16.msra.mxu0 %v2008
  %2746 = vmatpush.bf16.msra.mxu0 %v2004
  %2747 = vmatpush.bf16.msra.mxu0 %v2000
  %2748 = vmatpush.bf16.msra.mxu0 %v1996
  %2749 = vmatmul.bf16.gmra.mxu0 %v2714
  %v2750 = vpop.f32.mrf.mxu0
  %v2751 = vadd.f32 0.0, %v2750
  %v2752 = vpop.f32.mrf.mxu0
  %2753 = vdwg.mxu0
  %2754 = vmatpush.bf16.msra.mxu0 %v2025
  %2755 = vmatpush.bf16.msra.mxu0 %v2021
  %2756 = vmatpush.bf16.msra.mxu0 %v2017
  %2757 = vmatpush.bf16.msra.mxu0 %v2013
  %2758 = vmatpush.bf16.msra.mxu0 %v2009
  %2759 = vmatpush.bf16.msra.mxu0 %v2005
  %2760 = vmatpush.bf16.msra.mxu0 %v2001
  %2761 = vmatpush.bf16.msra.mxu0 %v1997
  %2762 = vmatmul.bf16.gmra.mxu0 %v2714
  %v2763 = vpop.f32.mrf.mxu0
  %v2764 = vadd.f32 0.0, %v2763
  %v2765 = vpop.f32.mrf.mxu0
  %2766 = vdwg.mxu0
  %v2771 = vrot.slane %v2725, 6
  %v2772 = vrot.slane %v2738, 6
  %v2773 = vrot.slane %v2751, 6
  %v2774 = vrot.slane %v2764, 6
  %v2779 = vadd.f32 %v1822, %v2771
  %v2780 = vadd.f32 %v1836, %v2772
  %v2781 = vadd.f32 %v1850, %v2773
  %v2782 = vadd.f32 %v1864, %v2774
  %v2783 = vxor.u32 %v2779, 2147483648
  %v2784 = vmul.f32 %v2783, 1.442695
  %v2785 = vpow.pop %v2784
  %v2786 = vadd.f32 %v2785, 1.0
  %v2787 = vrcp.pop %v2786
  %v2788 = vmul.f32 %v2786, %v2787
  %v2789 = vsub.f32 1.0, %v2788
  %v2790 = vmul.f32 %v2787, %v2789
  %v2791 = vadd.f32 %v2787, %v2790
  %vm2792 = vweird.f32 %v2786
  %vm2793 = vweird.f32 %v2787
  %vm2794 = vmor %vm2792, %vm2793
  %v2795 = vsel %vm2794, %v2787, %v2791
  %v2796 = vand.u32 2147483647, %v2786
  %vm2797 = vcmp.eq.f32.partialorder %v2796, 8.507059e+37
  %v2798 = vand.u32 %v2786, 2147483648
  %v2799 = vor.u32 1.1754944e-38, %v2798
  %v2800 = vsel %vm2797, %v2799, %v2795
  %v2801 = vmul.f32 1.0, %v2800
  %v2802 = vxor.u32 %v2780, 2147483648
  %v2803 = vmul.f32 %v2802, 1.442695
  %v2804 = vpow.pop %v2803
  %v2805 = vadd.f32 %v2804, 1.0
  %v2806 = vrcp.pop %v2805
  %v2807 = vmul.f32 %v2805, %v2806
  %v2808 = vsub.f32 1.0, %v2807
  %v2809 = vmul.f32 %v2806, %v2808
  %v2810 = vadd.f32 %v2806, %v2809
  %vm2811 = vweird.f32 %v2805
  %vm2812 = vweird.f32 %v2806
  %vm2813 = vmor %vm2811, %vm2812
  %v2814 = vsel %vm2813, %v2806, %v2810
  %v2815 = vand.u32 2147483647, %v2805
  %vm2816 = vcmp.eq.f32.partialorder %v2815, 8.507059e+37
  %v2817 = vand.u32 %v2805, 2147483648
  %v2818 = vor.u32 1.1754944e-38, %v2817
  %v2819 = vsel %vm2816, %v2818, %v2814
  %v2820 = vmul.f32 1.0, %v2819
  %v2821 = vtanh.pop %v2781
  %v2822 = vxor.u32 %v2782, 2147483648
  %v2823 = vmul.f32 %v2822, 1.442695
  %v2824 = vpow.pop %v2823
  %v2825 = vadd.f32 %v2824, 1.0
  %v2826 = vrcp.pop %v2825
  %v2827 = vmul.f32 %v2825, %v2826
  %v2828 = vsub.f32 1.0, %v2827
  %v2829 = vmul.f32 %v2826, %v2828
  %v2830 = vadd.f32 %v2826, %v2829
  %vm2831 = vweird.f32 %v2825
  %vm2832 = vweird.f32 %v2826
  %vm2833 = vmor %vm2831, %vm2832
  %v2834 = vsel %vm2833, %v2826, %v2830
  %v2835 = vand.u32 2147483647, %v2825
  %vm2836 = vcmp.eq.f32.partialorder %v2835, 8.507059e+37
  %v2837 = vand.u32 %v2825, 2147483648
  %v2838 = vor.u32 1.1754944e-38, %v2837
  %v2839 = vsel %vm2836, %v2838, %v2834
  %v2840 = vmul.f32 1.0, %v2839
  %v2842 = vrot.slane %v2711, 6
  %v2844 = vmul.f32 %v2820, %v2842
  %v2845 = vmul.f32 %v2801, %v2821
  %v2846 = vadd.f32 %v2844, %v2845
  %v2847 = vtanh.pop %v2846
  %v2848 = vmul.f32 %v2840, %v2847
  %v2849 = vpack.c.bf16 %v2848, %v2848
  %v2851 = vrot.slane %v2849, 1
  %2853 = vmatpush.bf16.msra.mxu0 %v2022
  %2854 = vmatpush.bf16.msra.mxu0 %v2018
  %2855 = vmatpush.bf16.msra.mxu0 %v2014
  %2856 = vmatpush.bf16.msra.mxu0 %v2010
  %2857 = vmatpush.bf16.msra.mxu0 %v2006
  %2858 = vmatpush.bf16.msra.mxu0 %v2002
  %2859 = vmatpush.bf16.msra.mxu0 %v1998
  %2860 = vmatpush.bf16.msra.mxu0 %v1994
  %2861 = vmatmul.bf16.gmra.mxu0 %v2851
  %v2862 = vpop.f32.mrf.mxu0
  %v2863 = vadd.f32 0.0, %v2862
  %v2864 = vpop.f32.mrf.mxu0
  %2865 = vdwg.mxu0
  %2866 = vmatpush.bf16.msra.mxu0 %v2023
  %2867 = vmatpush.bf16.msra.mxu0 %v2019
  %2868 = vmatpush.bf16.msra.mxu0 %v2015
  %2869 = vmatpush.bf16.msra.mxu0 %v2011
  %2870 = vmatpush.bf16.msra.mxu0 %v2007
  %2871 = vmatpush.bf16.msra.mxu0 %v2003
  %2872 = vmatpush.bf16.msra.mxu0 %v1999
  %2873 = vmatpush.bf16.msra.mxu0 %v1995
  %2874 = vmatmul.bf16.gmra.mxu0 %v2851
  %v2875 = vpop.f32.mrf.mxu0
  %v2876 = vadd.f32 0.0, %v2875
  %v2877 = vpop.f32.mrf.mxu0
  %2878 = vdwg.mxu0
  %2879 = vmatpush.bf16.msra.mxu0 %v2024
  %2880 = vmatpush.bf16.msra.mxu0 %v2020
  %2881 = vmatpush.bf16.msra.mxu0 %v2016
  %2882 = vmatpush.bf16.msra.mxu0 %v2012
  %2883 = vmatpush.bf16.msra.mxu0 %v2008
  %2884 = vmatpush.bf16.msra.mxu0 %v2004
  %2885 = vmatpush.bf16.msra.mxu0 %v2000
  %2886 = vmatpush.bf16.msra.mxu0 %v1996
  %2887 = vmatmul.bf16.gmra.mxu0 %v2851
  %v2888 = vpop.f32.mrf.mxu0
  %v2889 = vadd.f32 0.0, %v2888
  %v2890 = vpop.f32.mrf.mxu0
  %2891 = vdwg.mxu0
  %2892 = vmatpush.bf16.msra.mxu0 %v2025
  %2893 = vmatpush.bf16.msra.mxu0 %v2021
  %2894 = vmatpush.bf16.msra.mxu0 %v2017
  %2895 = vmatpush.bf16.msra.mxu0 %v2013
  %2896 = vmatpush.bf16.msra.mxu0 %v2009
  %2897 = vmatpush.bf16.msra.mxu0 %v2005
  %2898 = vmatpush.bf16.msra.mxu0 %v2001
  %2899 = vmatpush.bf16.msra.mxu0 %v1997
  %2900 = vmatmul.bf16.gmra.mxu0 %v2851
  %v2901 = vpop.f32.mrf.mxu0
  %v2902 = vadd.f32 0.0, %v2901
  %v2903 = vpop.f32.mrf.mxu0
  %2904 = vdwg.mxu0
  %v2909 = vrot.slane %v2863, 4
  %v2910 = vrot.slane %v2876, 4
  %v2911 = vrot.slane %v2889, 4
  %v2912 = vrot.slane %v2902, 4
  %v2917 = vadd.f32 %v1822, %v2909
  %v2918 = vadd.f32 %v1836, %v2910
  %v2919 = vadd.f32 %v1850, %v2911
  %v2920 = vadd.f32 %v1864, %v2912
  %v2921 = vxor.u32 %v2917, 2147483648
  %v2922 = vmul.f32 %v2921, 1.442695
  %v2923 = vpow.pop %v2922
  %v2924 = vadd.f32 %v2923, 1.0
  %v2925 = vrcp.pop %v2924
  %v2926 = vmul.f32 %v2924, %v2925
  %v2927 = vsub.f32 1.0, %v2926
  %v2928 = vmul.f32 %v2925, %v2927
  %v2929 = vadd.f32 %v2925, %v2928
  %vm2930 = vweird.f32 %v2924
  %vm2931 = vweird.f32 %v2925
  %vm2932 = vmor %vm2930, %vm2931
  %v2933 = vsel %vm2932, %v2925, %v2929
  %v2934 = vand.u32 2147483647, %v2924
  %vm2935 = vcmp.eq.f32.partialorder %v2934, 8.507059e+37
  %v2936 = vand.u32 %v2924, 2147483648
  %v2937 = vor.u32 1.1754944e-38, %v2936
  %v2938 = vsel %vm2935, %v2937, %v2933
  %v2939 = vmul.f32 1.0, %v2938
  %v2940 = vxor.u32 %v2918, 2147483648
  %v2941 = vmul.f32 %v2940, 1.442695
  %v2942 = vpow.pop %v2941
  %v2943 = vadd.f32 %v2942, 1.0
  %v2944 = vrcp.pop %v2943
  %v2945 = vmul.f32 %v2943, %v2944
  %v2946 = vsub.f32 1.0, %v2945
  %v2947 = vmul.f32 %v2944, %v2946
  %v2948 = vadd.f32 %v2944, %v2947
  %vm2949 = vweird.f32 %v2943
  %vm2950 = vweird.f32 %v2944
  %vm2951 = vmor %vm2949, %vm2950
  %v2952 = vsel %vm2951, %v2944, %v2948
  %v2953 = vand.u32 2147483647, %v2943
  %vm2954 = vcmp.eq.f32.partialorder %v2953, 8.507059e+37
  %v2955 = vand.u32 %v2943, 2147483648
  %v2956 = vor.u32 1.1754944e-38, %v2955
  %v2957 = vsel %vm2954, %v2956, %v2952
  %v2958 = vmul.f32 1.0, %v2957
  %v2959 = vtanh.pop %v2919
  %v2960 = vxor.u32 %v2920, 2147483648
  %v2961 = vmul.f32 %v2960, 1.442695
  %v2962 = vpow.pop %v2961
  %v2963 = vadd.f32 %v2962, 1.0
  %v2964 = vrcp.pop %v2963
  %v2965 = vmul.f32 %v2963, %v2964
  %v2966 = vsub.f32 1.0, %v2965
  %v2967 = vmul.f32 %v2964, %v2966
  %v2968 = vadd.f32 %v2964, %v2967
  %vm2969 = vweird.f32 %v2963
  %vm2970 = vweird.f32 %v2964
  %vm2971 = vmor %vm2969, %vm2970
  %v2972 = vsel %vm2971, %v2964, %v2968
  %v2973 = vand.u32 2147483647, %v2963
  %vm2974 = vcmp.eq.f32.partialorder %v2973, 8.507059e+37
  %v2975 = vand.u32 %v2963, 2147483648
  %v2976 = vor.u32 1.1754944e-38, %v2975
  %v2977 = vsel %vm2974, %v2976, %v2972
  %v2978 = vmul.f32 1.0, %v2977
  %v2980 = vrot.slane %v2846, 6
  %v2982 = vmul.f32 %v2958, %v2980
  %v2983 = vmul.f32 %v2939, %v2959
  %v2984 = vadd.f32 %v2982, %v2983
  %v2985 = vtanh.pop %v2984
  %v2986 = vmul.f32 %v2978, %v2985
  %v2987 = vpack.c.bf16 %v2986, %v2986
  %v2989 = vrot.slane %v2987, 2
  %2991 = vmatpush.bf16.msra.mxu0 %v2022
  %2992 = vmatpush.bf16.msra.mxu0 %v2018
  %2993 = vmatpush.bf16.msra.mxu0 %v2014
  %2994 = vmatpush.bf16.msra.mxu0 %v2010
  %2995 = vmatpush.bf16.msra.mxu0 %v2006
  %2996 = vmatpush.bf16.msra.mxu0 %v2002
  %2997 = vmatpush.bf16.msra.mxu0 %v1998
  %2998 = vmatpush.bf16.msra.mxu0 %v1994
  %2999 = vmatmul.bf16.gmra.mxu0 %v2989
  %v3000 = vpop.f32.mrf.mxu0
  %v3001 = vadd.f32 0.0, %v3000
  %v3002 = vpop.f32.mrf.mxu0
  %3003 = vdwg.mxu0
  %3004 = vmatpush.bf16.msra.mxu0 %v2023
  %3005 = vmatpush.bf16.msra.mxu0 %v2019
  %3006 = vmatpush.bf16.msra.mxu0 %v2015
  %3007 = vmatpush.bf16.msra.mxu0 %v2011
  %3008 = vmatpush.bf16.msra.mxu0 %v2007
  %3009 = vmatpush.bf16.msra.mxu0 %v2003
  %3010 = vmatpush.bf16.msra.mxu0 %v1999
  %3011 = vmatpush.bf16.msra.mxu0 %v1995
  %3012 = vmatmul.bf16.gmra.mxu0 %v2989
  %v3013 = vpop.f32.mrf.mxu0
  %v3014 = vadd.f32 0.0, %v3013
  %v3015 = vpop.f32.mrf.mxu0
  %3016 = vdwg.mxu0
  %3017 = vmatpush.bf16.msra.mxu0 %v2024
  %3018 = vmatpush.bf16.msra.mxu0 %v2020
  %3019 = vmatpush.bf16.msra.mxu0 %v2016
  %3020 = vmatpush.bf16.msra.mxu0 %v2012
  %3021 = vmatpush.bf16.msra.mxu0 %v2008
  %3022 = vmatpush.bf16.msra.mxu0 %v2004
  %3023 = vmatpush.bf16.msra.mxu0 %v2000
  %3024 = vmatpush.bf16.msra.mxu0 %v1996
  %3025 = vmatmul.bf16.gmra.mxu0 %v2989
  %v3026 = vpop.f32.mrf.mxu0
  %v3027 = vadd.f32 0.0, %v3026
  %v3028 = vpop.f32.mrf.mxu0
  %3029 = vdwg.mxu0
  %3030 = vmatpush.bf16.msra.mxu0 %v2025
  %3031 = vmatpush.bf16.msra.mxu0 %v2021
  %3032 = vmatpush.bf16.msra.mxu0 %v2017
  %3033 = vmatpush.bf16.msra.mxu0 %v2013
  %3034 = vmatpush.bf16.msra.mxu0 %v2009
  %3035 = vmatpush.bf16.msra.mxu0 %v2005
  %3036 = vmatpush.bf16.msra.mxu0 %v2001
  %3037 = vmatpush.bf16.msra.mxu0 %v1997
  %3038 = vmatmul.bf16.gmra.mxu0 %v2989
  %v3039 = vpop.f32.mrf.mxu0
  %v3040 = vadd.f32 0.0, %v3039
  %v3041 = vpop.f32.mrf.mxu0
  %3042 = vdwg.mxu0
  %v3047 = vrot.slane %v3001, 2
  %v3048 = vrot.slane %v3014, 2
  %v3049 = vrot.slane %v3027, 2
  %v3050 = vrot.slane %v3040, 2
  %v3055 = vadd.f32 %v1822, %v3047
  %v3056 = vadd.f32 %v1836, %v3048
  %v3057 = vadd.f32 %v1850, %v3049
  %v3058 = vadd.f32 %v1864, %v3050
  %v3059 = vxor.u32 %v3055, 2147483648
  %v3060 = vmul.f32 %v3059, 1.442695
  %v3061 = vpow.pop %v3060
  %v3062 = vadd.f32 %v3061, 1.0
  %v3063 = vrcp.pop %v3062
  %v3064 = vmul.f32 %v3062, %v3063
  %v3065 = vsub.f32 1.0, %v3064
  %v3066 = vmul.f32 %v3063, %v3065
  %v3067 = vadd.f32 %v3063, %v3066
  %vm3068 = vweird.f32 %v3062
  %vm3069 = vweird.f32 %v3063
  %vm3070 = vmor %vm3068, %vm3069
  %v3071 = vsel %vm3070, %v3063, %v3067
  %v3072 = vand.u32 2147483647, %v3062
  %vm3073 = vcmp.eq.f32.partialorder %v3072, 8.507059e+37
  %v3074 = vand.u32 %v3062, 2147483648
  %v3075 = vor.u32 1.1754944e-38, %v3074
  %v3076 = vsel %vm3073, %v3075, %v3071
  %v3077 = vmul.f32 1.0, %v3076
  %v3078 = vxor.u32 %v3056, 2147483648
  %v3079 = vmul.f32 %v3078, 1.442695
  %v3080 = vpow.pop %v3079
  %v3081 = vadd.f32 %v3080, 1.0
  %v3082 = vrcp.pop %v3081
  %v3083 = vmul.f32 %v3081, %v3082
  %v3084 = vsub.f32 1.0, %v3083
  %v3085 = vmul.f32 %v3082, %v3084
  %v3086 = vadd.f32 %v3082, %v3085
  %vm3087 = vweird.f32 %v3081
  %vm3088 = vweird.f32 %v3082
  %vm3089 = vmor %vm3087, %vm3088
  %v3090 = vsel %vm3089, %v3082, %v3086
  %v3091 = vand.u32 2147483647, %v3081
  %vm3092 = vcmp.eq.f32.partialorder %v3091, 8.507059e+37
  %v3093 = vand.u32 %v3081, 2147483648
  %v3094 = vor.u32 1.1754944e-38, %v3093
  %v3095 = vsel %vm3092, %v3094, %v3090
  %v3096 = vmul.f32 1.0, %v3095
  %v3097 = vtanh.pop %v3057
  %v3098 = vxor.u32 %v3058, 2147483648
  %v3099 = vmul.f32 %v3098, 1.442695
  %v3100 = vpow.pop %v3099
  %v3101 = vadd.f32 %v3100, 1.0
  %v3102 = vrcp.pop %v3101
  %v3103 = vmul.f32 %v3101, %v3102
  %v3104 = vsub.f32 1.0, %v3103
  %v3105 = vmul.f32 %v3102, %v3104
  %v3106 = vadd.f32 %v3102, %v3105
  %vm3107 = vweird.f32 %v3101
  %vm3108 = vweird.f32 %v3102
  %vm3109 = vmor %vm3107, %vm3108
  %v3110 = vsel %vm3109, %v3102, %v3106
  %v3111 = vand.u32 2147483647, %v3101
  %vm3112 = vcmp.eq.f32.partialorder %v3111, 8.507059e+37
  %v3113 = vand.u32 %v3101, 2147483648
  %v3114 = vor.u32 1.1754944e-38, %v3113
  %v3115 = vsel %vm3112, %v3114, %v3110
  %v3116 = vmul.f32 1.0, %v3115
  %v3118 = vrot.slane %v2984, 6
  %v3120 = vmul.f32 %v3096, %v3118
  %v3121 = vmul.f32 %v3077, %v3097
  %v3122 = vadd.f32 %v3120, %v3121
  %v3123 = vtanh.pop %v3122
  %v3124 = vmul.f32 %v3116, %v3123
  %v3125 = vsel %vm1591, %v2176, %v2311
  %v3126 = vsel %vm1593, %v3125, %v2449
  %v3127 = vsel %vm1595, %v3126, %v2587
  %v3128 = vsel %vm1591, %v2713, %v2848
  %v3129 = vsel %vm1593, %v3128, %v2986
  %v3130 = vsel %vm1595, %v3129, %v3124
  %v3131 = vpack.c.bf16 %v3130, %v3127
  %v3132 = vld [vmem:[%s1] sm:$0xf]
  %v3133 = vld [vmem:[%s1 + $0x4] sm:$0xf]
  %v3134 = vld [vmem:[%s1 + $0x8] sm:$0xf]
  %v3135 = vld [vmem:[%s1 + $0xc] sm:$0xf]
  %v3136 = vld [vmem:[%s1 + $0x10] sm:$0xf]
  %v3137 = vld [vmem:[%s1 + $0x14] sm:$0xf]
  %v3138 = vld [vmem:[%s1 + $0x18] sm:$0xf]
  %v3139 = vld [vmem:[%s1 + $0x1c] sm:$0xf]
  %v3140 = vld [vmem:[%s1 + $0x20] sm:$0xf]
  %v3141 = vld [vmem:[%s1 + $0x24] sm:$0xf]
  %v3142 = vld [vmem:[%s1 + $0x28] sm:$0xf]
  %v3143 = vld [vmem:[%s1 + $0x2c] sm:$0xf]
  %v3144 = vld [vmem:[%s1 + $0x30] sm:$0xf]
  %v3145 = vld [vmem:[%s1 + $0x34] sm:$0xf]
  %v3146 = vld [vmem:[%s1 + $0x38] sm:$0xf]
  %v3147 = vld [vmem:[%s1 + $0x3c] sm:$0xf]
  %v3148 = vld [vmem:[%s1 + $0x40] sm:$0xf]
  %v3149 = vld [vmem:[%s1 + $0x44] sm:$0xf]
  %v3150 = vld [vmem:[%s1 + $0x48] sm:$0xf]
  %v3151 = vld [vmem:[%s1 + $0x4c] sm:$0xf]
  %v3152 = vld [vmem:[%s1 + $0x50] sm:$0xf]
  %v3153 = vld [vmem:[%s1 + $0x54] sm:$0xf]
  %v3154 = vld [vmem:[%s1 + $0x58] sm:$0xf]
  %v3155 = vld [vmem:[%s1 + $0x5c] sm:$0xf]
  %v3156 = vld [vmem:[%s1 + $0x60] sm:$0xf]
  %v3157 = vld [vmem:[%s1 + $0x64] sm:$0xf]
  %v3158 = vld [vmem:[%s1 + $0x68] sm:$0xf]
  %v3159 = vld [vmem:[%s1 + $0x6c] sm:$0xf]
  %v3160 = vld [vmem:[%s1 + $0x70] sm:$0xf]
  %v3161 = vld [vmem:[%s1 + $0x74] sm:$0xf]
  %v3162 = vld [vmem:[%s1 + $0x78] sm:$0xf]
  %v3163 = vld [vmem:[%s1 + $0x7c] sm:$0xf]
  %v3164 = vld [vmem:[%s16] sm:$0xf]
  %v3165 = vld [vmem:[%s16 + $0x4] sm:$0xf]
  %v3166 = vld [vmem:[%s16 + $0x8] sm:$0xf]
  %v3167 = vld [vmem:[%s16 + $0xc] sm:$0xf]
  %v3168 = vld [vmem:[%s16 + $0x10] sm:$0xf]
  %v3169 = vld [vmem:[%s16 + $0x14] sm:$0xf]
  %v3170 = vld [vmem:[%s16 + $0x18] sm:$0xf]
  %v3171 = vld [vmem:[%s16 + $0x1c] sm:$0xf]
  %v3172 = vld [vmem:[%s16 + $0x20] sm:$0xf]
  %v3173 = vld [vmem:[%s16 + $0x24] sm:$0xf]
  %v3174 = vld [vmem:[%s16 + $0x28] sm:$0xf]
  %v3175 = vld [vmem:[%s16 + $0x2c] sm:$0xf]
  %v3176 = vld [vmem:[%s16 + $0x30] sm:$0xf]
  %v3177 = vld [vmem:[%s16 + $0x34] sm:$0xf]
  %v3178 = vld [vmem:[%s16 + $0x38] sm:$0xf]
  %v3179 = vld [vmem:[%s16 + $0x3c] sm:$0xf]
  %v3212 = vunpack.c.l.b16 %v3132
  %v3213 = vunpack.c.l.b16 %v3133
  %v3214 = vunpack.c.l.b16 %v3134
  %v3215 = vunpack.c.l.b16 %v3135
  %v3216 = vunpack.c.l.b16 %v3136
  %v3217 = vunpack.c.l.b16 %v3137
  %v3218 = vunpack.c.l.b16 %v3138
  %v3219 = vunpack.c.l.b16 %v3139
  %v3220 = vunpack.c.l.b16 %v3140
  %v3221 = vunpack.c.l.b16 %v3141
  %v3222 = vunpack.c.l.b16 %v3142
  %v3223 = vunpack.c.l.b16 %v3143
  %v3224 = vunpack.c.l.b16 %v3144
  %v3225 = vunpack.c.l.b16 %v3145
  %v3226 = vunpack.c.l.b16 %v3146
  %v3227 = vunpack.c.l.b16 %v3147
  %v3228 = vunpack.c.l.b16 %v3148
  %v3229 = vunpack.c.l.b16 %v3149
  %v3230 = vunpack.c.l.b16 %v3150
  %v3231 = vunpack.c.l.b16 %v3151
  %v3232 = vunpack.c.l.b16 %v3152
  %v3233 = vunpack.c.l.b16 %v3153
  %v3234 = vunpack.c.l.b16 %v3154
  %v3235 = vunpack.c.l.b16 %v3155
  %v3236 = vunpack.c.l.b16 %v3156
  %v3237 = vunpack.c.l.b16 %v3157
  %v3238 = vunpack.c.l.b16 %v3158
  %v3239 = vunpack.c.l.b16 %v3159
  %v3240 = vunpack.c.l.b16 %v3160
  %v3241 = vunpack.c.l.b16 %v3161
  %v3242 = vunpack.c.l.b16 %v3162
  %v3243 = vunpack.c.l.b16 %v3163
  %v3244 = vpack.c.b16 %v3213, %v3212
  %v3245 = vpack.c.b16 %v3215, %v3214
  %v3246 = vpack.c.b16 %v3217, %v3216
  %v3247 = vpack.c.b16 %v3219, %v3218
  %v3248 = vpack.c.b16 %v3221, %v3220
  %v3249 = vpack.c.b16 %v3223, %v3222
  %v3250 = vpack.c.b16 %v3225, %v3224
  %v3251 = vpack.c.b16 %v3227, %v3226
  %v3252 = vpack.c.b16 %v3229, %v3228
  %v3253 = vpack.c.b16 %v3231, %v3230
  %v3254 = vpack.c.b16 %v3233, %v3232
  %v3255 = vpack.c.b16 %v3235, %v3234
  %v3256 = vpack.c.b16 %v3237, %v3236
  %v3257 = vpack.c.b16 %v3239, %v3238
  %v3258 = vpack.c.b16 %v3241, %v3240
  %v3259 = vpack.c.b16 %v3243, %v3242
  %v3292 = vunpack.c.l.b16 %v3164
  %v3293 = vunpack.c.l.b16 %v3165
  %v3294 = vunpack.c.l.b16 %v3166
  %v3295 = vunpack.c.l.b16 %v3167
  %v3296 = vunpack.c.l.b16 %v3168
  %v3297 = vunpack.c.l.b16 %v3169
  %v3298 = vunpack.c.l.b16 %v3170
  %v3299 = vunpack.c.l.b16 %v3171
  %v3300 = vunpack.c.l.b16 %v3172
  %v3301 = vunpack.c.l.b16 %v3173
  %v3302 = vunpack.c.l.b16 %v3174
  %v3303 = vunpack.c.l.b16 %v3175
  %v3304 = vunpack.c.l.b16 %v3176
  %v3305 = vunpack.c.l.b16 %v3177
  %v3306 = vunpack.c.l.b16 %v3178
  %v3307 = vunpack.c.l.b16 %v3179
  %v3308 = vpack.c.b16 %v3293, %v3292
  %v3309 = vpack.c.b16 %v3295, %v3294
  %v3310 = vpack.c.b16 %v3297, %v3296
  %v3311 = vpack.c.b16 %v3299, %v3298
  %v3312 = vpack.c.b16 %v3301, %v3300
  %v3313 = vpack.c.b16 %v3303, %v3302
  %v3314 = vpack.c.b16 %v3305, %v3304
  %v3315 = vpack.c.b16 %v3307, %v3306
  %3324 = vmatpush.bf16.msra.mxu0 %v3315
  %3325 = vmatpush.bf16.msra.mxu0 %v3314
  %3326 = vmatpush.bf16.msra.mxu0 %v3313
  %3327 = vmatpush.bf16.msra.mxu0 %v3312
  %3328 = vmatpush.bf16.msra.mxu0 %v3311
  %3329 = vmatpush.bf16.msra.mxu0 %v3310
  %3330 = vmatpush.bf16.msra.mxu0 %v3309
  %3331 = vmatpush.bf16.msra.mxu0 %v3308
  %3332 = vmatmul.bf16.gmra.mxu0 %v3244
  %v3333 = vpop.f32.mrf.mxu0
  %v3334 = vadd.f32 0.0, %v3333
  %v3335 = vpop.f32.mrf.mxu0
  %v3336 = vadd.f32 0.0, %v3335
  %3337 = vmatmul.bf16.gmra.mxu0 %v3245
  %v3338 = vpop.f32.mrf.mxu0
  %v3339 = vadd.f32 0.0, %v3338
  %v3340 = vpop.f32.mrf.mxu0
  %v3341 = vadd.f32 0.0, %v3340
  %3342 = vmatmul.bf16.gmra.mxu0 %v3246
  %v3343 = vpop.f32.mrf.mxu0
  %v3344 = vadd.f32 0.0, %v3343
  %v3345 = vpop.f32.mrf.mxu0
  %v3346 = vadd.f32 0.0, %v3345
  %3347 = vmatmul.bf16.gmra.mxu0 %v3247
  %v3348 = vpop.f32.mrf.mxu0
  %v3349 = vadd.f32 0.0, %v3348
  %v3350 = vpop.f32.mrf.mxu0
  %v3351 = vadd.f32 0.0, %v3350
  %3352 = vmatmul.bf16.gmra.mxu0 %v3248
  %v3353 = vpop.f32.mrf.mxu0
  %v3354 = vadd.f32 0.0, %v3353
  %v3355 = vpop.f32.mrf.mxu0
  %v3356 = vadd.f32 0.0, %v3355
  %3357 = vmatmul.bf16.gmra.mxu0 %v3249
  %v3358 = vpop.f32.mrf.mxu0
  %v3359 = vadd.f32 0.0, %v3358
  %v3360 = vpop.f32.mrf.mxu0
  %v3361 = vadd.f32 0.0, %v3360
  %3362 = vmatmul.bf16.gmra.mxu0 %v3250
  %v3363 = vpop.f32.mrf.mxu0
  %v3364 = vadd.f32 0.0, %v3363
  %v3365 = vpop.f32.mrf.mxu0
  %v3366 = vadd.f32 0.0, %v3365
  %3367 = vmatmul.bf16.gmra.mxu0 %v3251
  %v3368 = vpop.f32.mrf.mxu0
  %v3369 = vadd.f32 0.0, %v3368
  %v3370 = vpop.f32.mrf.mxu0
  %v3371 = vadd.f32 0.0, %v3370
  %3372 = vmatmul.bf16.gmra.mxu0 %v3252
  %v3373 = vpop.f32.mrf.mxu0
  %v3374 = vadd.f32 0.0, %v3373
  %v3375 = vpop.f32.mrf.mxu0
  %v3376 = vadd.f32 0.0, %v3375
  %3377 = vmatmul.bf16.gmra.mxu0 %v3253
  %v3378 = vpop.f32.mrf.mxu0
  %v3379 = vadd.f32 0.0, %v3378
  %v3380 = vpop.f32.mrf.mxu0
  %v3381 = vadd.f32 0.0, %v3380
  %3382 = vmatmul.bf16.gmra.mxu0 %v3254
  %v3383 = vpop.f32.mrf.mxu0
  %v3384 = vadd.f32 0.0, %v3383
  %v3385 = vpop.f32.mrf.mxu0
  %v3386 = vadd.f32 0.0, %v3385
  %3387 = vmatmul.bf16.gmra.mxu0 %v3255
  %v3388 = vpop.f32.mrf.mxu0
  %v3389 = vadd.f32 0.0, %v3388
  %v3390 = vpop.f32.mrf.mxu0
  %v3391 = vadd.f32 0.0, %v3390
  %3392 = vmatmul.bf16.gmra.mxu0 %v3256
  %v3393 = vpop.f32.mrf.mxu0
  %v3394 = vadd.f32 0.0, %v3393
  %v3395 = vpop.f32.mrf.mxu0
  %v3396 = vadd.f32 0.0, %v3395
  %3397 = vmatmul.bf16.gmra.mxu0 %v3257
  %v3398 = vpop.f32.mrf.mxu0
  %v3399 = vadd.f32 0.0, %v3398
  %v3400 = vpop.f32.mrf.mxu0
  %v3401 = vadd.f32 0.0, %v3400
  %3402 = vmatmul.bf16.gmra.mxu0 %v3258
  %v3403 = vpop.f32.mrf.mxu0
  %v3404 = vadd.f32 0.0, %v3403
  %v3405 = vpop.f32.mrf.mxu0
  %v3406 = vadd.f32 0.0, %v3405
  %3407 = vmatmul.bf16.gmra.mxu0 %v3259
  %v3408 = vpop.f32.mrf.mxu0
  %v3409 = vadd.f32 0.0, %v3408
  %v3410 = vpop.f32.mrf.mxu0
  %v3411 = vadd.f32 0.0, %v3410
  %3412 = vdwg.mxu0
  %vm3413 = vcmask 64512
  %3414 = vst.msk [vmem:[#allocation2] sm:$0xff] %vm3413, %v3334
  %3415 = vst.msk [vmem:[#allocation2 + $0x8] sm:$0xff] %vm3413, %v3336
  %3418 = vrot.lane.b32.xlu0 %v3339, 8
  %v3419 = vpop.permute.xlu0 %3418
  %3420 = vrot.lane.b32.xlu0 %v3341, 8
  %v3421 = vpop.permute.xlu0 %3420
  %vm3424 = vcmask 130112
  %3425 = vst.msk [vmem:[#allocation2] sm:$0xff] %vm3424, %v3419
  %3426 = vst.msk [vmem:[#allocation2 + $0x8] sm:$0xff] %vm3424, %v3421
  %3429 = vrot.lane.b32.xlu0 %v3344, 16
  %v3430 = vpop.permute.xlu0 %3429
  %3431 = vrot.lane.b32.xlu0 %v3346, 16
  %v3432 = vpop.permute.xlu0 %3431
  %vm3435 = vcmask 195712
  %3436 = vst.msk [vmem:[#allocation2] sm:$0xff] %vm3435, %v3430
  %3437 = vst.msk [vmem:[#allocation2 + $0x8] sm:$0xff] %vm3435, %v3432
  %3440 = vrot.lane.b32.xlu0 %v3349, 24
  %v3441 = vpop.permute.xlu0 %3440
  %3442 = vrot.lane.b32.xlu0 %v3351, 24
  %v3443 = vpop.permute.xlu0 %3442
  %vm3446 = vcmask 261312
  %3447 = vst.msk [vmem:[#allocation2] sm:$0xff] %vm3446, %v3441
  %3448 = vst.msk [vmem:[#allocation2 + $0x8] sm:$0xff] %vm3446, %v3443
  %3451 = vrot.lane.b32.xlu0 %v3354, 32
  %v3452 = vpop.permute.xlu0 %3451
  %3453 = vrot.lane.b32.xlu0 %v3356, 32
  %v3454 = vpop.permute.xlu0 %3453
  %vm3457 = vcmask 326912
  %3458 = vst.msk [vmem:[#allocation2] sm:$0xff] %vm3457, %v3452
  %3459 = vst.msk [vmem:[#allocation2 + $0x8] sm:$0xff] %vm3457, %v3454
  %3462 = vrot.lane.b32.xlu0 %v3359, 40
  %v3463 = vpop.permute.xlu0 %3462
  %3464 = vrot.lane.b32.xlu0 %v3361, 40
  %v3465 = vpop.permute.xlu0 %3464
  %vm3468 = vcmask 392512
  %3469 = vst.msk [vmem:[#allocation2] sm:$0xff] %vm3468, %v3463
  %3470 = vst.msk [vmem:[#allocation2 + $0x8] sm:$0xff] %vm3468, %v3465
  %3473 = vrot.lane.b32.xlu0 %v3364, 48
  %v3474 = vpop.permute.xlu0 %3473
  %3475 = vrot.lane.b32.xlu0 %v3366, 48
  %v3476 = vpop.permute.xlu0 %3475
  %vm3479 = vcmask 458112
  %3480 = vst.msk [vmem:[#allocation2] sm:$0xff] %vm3479, %v3474
  %3481 = vst.msk [vmem:[#allocation2 + $0x8] sm:$0xff] %vm3479, %v3476
  %3484 = vrot.lane.b32.xlu0 %v3369, 56
  %v3485 = vpop.permute.xlu0 %3484
  %3486 = vrot.lane.b32.xlu0 %v3371, 56
  %v3487 = vpop.permute.xlu0 %3486
  %vm3490 = vcmask 523712
  %3491 = vst.msk [vmem:[#allocation2] sm:$0xff] %vm3490, %v3485
  %3492 = vst.msk [vmem:[#allocation2 + $0x8] sm:$0xff] %vm3490, %v3487
  %3495 = vrot.lane.b32.xlu0 %v3374, 64
  %v3496 = vpop.permute.xlu0 %3495
  %3497 = vrot.lane.b32.xlu0 %v3376, 64
  %v3498 = vpop.permute.xlu0 %3497
  %vm3501 = vcmask 589312
  %3502 = vst.msk [vmem:[#allocation2] sm:$0xff] %vm3501, %v3496
  %3503 = vst.msk [vmem:[#allocation2 + $0x8] sm:$0xff] %vm3501, %v3498
  %3506 = vrot.lane.b32.xlu0 %v3379, 72
  %v3507 = vpop.permute.xlu0 %3506
  %3508 = vrot.lane.b32.xlu0 %v3381, 72
  %v3509 = vpop.permute.xlu0 %3508
  %vm3512 = vcmask 654912
  %3513 = vst.msk [vmem:[#allocation2] sm:$0xff] %vm3512, %v3507
  %3514 = vst.msk [vmem:[#allocation2 + $0x8] sm:$0xff] %vm3512, %v3509
  %3517 = vrot.lane.b32.xlu0 %v3384, 80
  %v3518 = vpop.permute.xlu0 %3517
  %3519 = vrot.lane.b32.xlu0 %v3386, 80
  %v3520 = vpop.permute.xlu0 %3519
  %vm3523 = vcmask 720512
  %3524 = vst.msk [vmem:[#allocation2] sm:$0xff] %vm3523, %v3518
  %3525 = vst.msk [vmem:[#allocation2 + $0x8] sm:$0xff] %vm3523, %v3520
  %3528 = vrot.lane.b32.xlu0 %v3389, 88
  %v3529 = vpop.permute.xlu0 %3528
  %3530 = vrot.lane.b32.xlu0 %v3391, 88
  %v3531 = vpop.permute.xlu0 %3530
  %vm3534 = vcmask 786112
  %3535 = vst.msk [vmem:[#allocation2] sm:$0xff] %vm3534, %v3529
  %3536 = vst.msk [vmem:[#allocation2 + $0x8] sm:$0xff] %vm3534, %v3531
  %3539 = vrot.lane.b32.xlu0 %v3394, 96
  %v3540 = vpop.permute.xlu0 %3539
  %3541 = vrot.lane.b32.xlu0 %v3396, 96
  %v3542 = vpop.permute.xlu0 %3541
  %vm3545 = vcmask 851712
  %3546 = vst.msk [vmem:[#allocation2] sm:$0xff] %vm3545, %v3540
  %3547 = vst.msk [vmem:[#allocation2 + $0x8] sm:$0xff] %vm3545, %v3542
  %3550 = vrot.lane.b32.xlu0 %v3399, 104
  %v3551 = vpop.permute.xlu0 %3550
  %3552 = vrot.lane.b32.xlu0 %v3401, 104
  %v3553 = vpop.permute.xlu0 %3552
  %vm3556 = vcmask 917312
  %3557 = vst.msk [vmem:[#allocation2] sm:$0xff] %vm3556, %v3551
  %3558 = vst.msk [vmem:[#allocation2 + $0x8] sm:$0xff] %vm3556, %v3553
  %3561 = vrot.lane.b32.xlu0 %v3404, 112
  %v3562 = vpop.permute.xlu0 %3561
  %3563 = vrot.lane.b32.xlu0 %v3406, 112
  %v3564 = vpop.permute.xlu0 %3563
  %vm3567 = vcmask 982912
  %3568 = vst.msk [vmem:[#allocation2] sm:$0xff] %vm3567, %v3562
  %3569 = vst.msk [vmem:[#allocation2 + $0x8] sm:$0xff] %vm3567, %v3564
  %3572 = vrot.lane.b32.xlu0 %v3409, 120
  %v3573 = vpop.permute.xlu0 %3572
  %3574 = vrot.lane.b32.xlu0 %v3411, 120
  %v3575 = vpop.permute.xlu0 %3574
  %vm3578 = vcmask 1048512
  %3579 = vst.msk [vmem:[#allocation2] sm:$0xff] %vm3578, %v3573
  %3580 = vst.msk [vmem:[#allocation2 + $0x8] sm:$0xff] %vm3578, %v3575
  %v3581 = vld [vmem:[#allocation2] sm:$0xff]
  %v3582 = vld [vmem:[#allocation2 + $0x8] sm:$0xff]
  %v3583 = vld [vmem:[%s17] sm:$0x1]
  %v3585 = vperm.slane %v3583, 0
  %v3587 = vadd.f32 %v3581, %v3585
  %v3588 = vadd.f32 %v3582, %v3585
  %v3589 = vtanh.pop %v3587
  %v3590 = vtanh.pop %v3588
  %v3591 = vpack.c.bf16 %v3590, %v3589
  %v3592 = vld [vmem:[%s18] sm:$0xf]
  %v3593 = vld [vmem:[%s18 + $0x4] sm:$0xf]
  %v3594 = vld [vmem:[%s18 + $0x8] sm:$0xf]
  %v3595 = vld [vmem:[%s18 + $0xc] sm:$0xf]
  %v3596 = vld [vmem:[%s18 + $0x10] sm:$0xf]
  %v3597 = vld [vmem:[%s18 + $0x14] sm:$0xf]
  %v3598 = vld [vmem:[%s18 + $0x18] sm:$0xf]
  %v3599 = vld [vmem:[%s18 + $0x1c] sm:$0xf]
  %v3600 = vld [vmem:[%s18 + $0x20] sm:$0xf]
  %v3601 = vld [vmem:[%s18 + $0x24] sm:$0xf]
  %v3602 = vld [vmem:[%s18 + $0x28] sm:$0xf]
  %v3603 = vld [vmem:[%s18 + $0x2c] sm:$0xf]
  %v3604 = vld [vmem:[%s18 + $0x30] sm:$0xf]
  %v3605 = vld [vmem:[%s18 + $0x34] sm:$0xf]
  %v3606 = vld [vmem:[%s18 + $0x38] sm:$0xf]
  %v3607 = vld [vmem:[%s18 + $0x3c] sm:$0xf]
  %v3608 = vld [vmem:[%s19] sm:$0x1]
  %v3610 = vperm.slane %v3608, 0
  %v3628 = vunpack.c.l.b16 %v3592
  %v3629 = vunpack.c.l.b16 %v3593
  %v3630 = vunpack.c.l.b16 %v3594
  %v3631 = vunpack.c.l.b16 %v3595
  %v3632 = vunpack.c.l.b16 %v3596
  %v3633 = vunpack.c.l.b16 %v3597
  %v3634 = vunpack.c.l.b16 %v3598
  %v3635 = vunpack.c.l.b16 %v3599
  %v3636 = vunpack.c.l.b16 %v3600
  %v3637 = vunpack.c.l.b16 %v3601
  %v3638 = vunpack.c.l.b16 %v3602
  %v3639 = vunpack.c.l.b16 %v3603
  %v3640 = vunpack.c.l.b16 %v3604
  %v3641 = vunpack.c.l.b16 %v3605
  %v3642 = vunpack.c.l.b16 %v3606
  %v3643 = vunpack.c.l.b16 %v3607
  %v3644 = vpack.c.b16 %v3629, %v3628
  %v3645 = vpack.c.b16 %v3631, %v3630
  %v3646 = vpack.c.b16 %v3633, %v3632
  %v3647 = vpack.c.b16 %v3635, %v3634
  %v3648 = vpack.c.b16 %v3637, %v3636
  %v3649 = vpack.c.b16 %v3639, %v3638
  %v3650 = vpack.c.b16 %v3641, %v3640
  %v3651 = vpack.c.b16 %v3643, %v3642
  %3660 = vmatpush.bf16.msra.mxu0 %v3651
  %3661 = vmatpush.bf16.msra.mxu0 %v3650
  %3662 = vmatpush.bf16.msra.mxu0 %v3649
  %3663 = vmatpush.bf16.msra.mxu0 %v3648
  %3664 = vmatpush.bf16.msra.mxu0 %v3647
  %3665 = vmatpush.bf16.msra.mxu0 %v3646
  %3666 = vmatpush.bf16.msra.mxu0 %v3645
  %3667 = vmatpush.bf16.msra.mxu0 %v3644
  %3668 = vmatmul.bf16.gmra.mxu0 %v3591
  %v3669 = vpop.f32.mrf.mxu0
  %v3670 = vadd.f32 %v3610, %v3669
  %v3671 = vpop.f32.mrf.mxu0
  %v3672 = vadd.f32 %v3610, %v3671
  %3673 = vdwg.mxu0
  %v3674 = vtanh.pop %v3670
  %v3675 = vtanh.pop %v3672
  %v3676 = vld [vmem:[%s8] sm:$0xf]
  %v3677 = vld [vmem:[%s8 + $0x4] sm:$0xf]
  %v3678 = vld [vmem:[%s8 + $0x8] sm:$0xf]
  %v3679 = vld [vmem:[%s8 + $0xc] sm:$0xf]
  %v3680 = vld [vmem:[%s8 + $0x10] sm:$0xf]
  %v3681 = vld [vmem:[%s8 + $0x14] sm:$0xf]
  %v3682 = vld [vmem:[%s8 + $0x18] sm:$0xf]
  %v3683 = vld [vmem:[%s8 + $0x1c] sm:$0xf]
  %v3684 = vld [vmem:[%s8 + $0x20] sm:$0xf]
  %v3685 = vld [vmem:[%s8 + $0x24] sm:$0xf]
  %v3686 = vld [vmem:[%s8 + $0x28] sm:$0xf]
  %v3687 = vld [vmem:[%s8 + $0x2c] sm:$0xf]
  %v3688 = vld [vmem:[%s8 + $0x30] sm:$0xf]
  %v3689 = vld [vmem:[%s8 + $0x34] sm:$0xf]
  %v3690 = vld [vmem:[%s8 + $0x38] sm:$0xf]
  %v3691 = vld [vmem:[%s8 + $0x3c] sm:$0xf]
  %v3692 = vld [vmem:[%s9] sm:$0x1]
  %v3694 = vperm.slane %v3692, 0
  %v3712 = vunpack.c.l.b16 %v3676
  %v3713 = vunpack.c.l.b16 %v3677
  %v3714 = vunpack.c.l.b16 %v3678
  %v3715 = vunpack.c.l.b16 %v3679
  %v3716 = vunpack.c.l.b16 %v3680
  %v3717 = vunpack.c.l.b16 %v3681
  %v3718 = vunpack.c.l.b16 %v3682
  %v3719 = vunpack.c.l.b16 %v3683
  %v3720 = vunpack.c.l.b16 %v3684
  %v3721 = vunpack.c.l.b16 %v3685
  %v3722 = vunpack.c.l.b16 %v3686
  %v3723 = vunpack.c.l.b16 %v3687
  %v3724 = vunpack.c.l.b16 %v3688
  %v3725 = vunpack.c.l.b16 %v3689
  %v3726 = vunpack.c.l.b16 %v3690
  %v3727 = vunpack.c.l.b16 %v3691
  %v3728 = vpack.c.b16 %v3713, %v3712
  %v3729 = vpack.c.b16 %v3715, %v3714
  %v3730 = vpack.c.b16 %v3717, %v3716
  %v3731 = vpack.c.b16 %v3719, %v3718
  %v3732 = vpack.c.b16 %v3721, %v3720
  %v3733 = vpack.c.b16 %v3723, %v3722
  %v3734 = vpack.c.b16 %v3725, %v3724
  %v3735 = vpack.c.b16 %v3727, %v3726
  %3744 = vmatpush.bf16.msra.mxu0 %v3735
  %3745 = vmatpush.bf16.msra.mxu0 %v3734
  %3746 = vmatpush.bf16.msra.mxu0 %v3733
  %3747 = vmatpush.bf16.msra.mxu0 %v3732
  %3748 = vmatpush.bf16.msra.mxu0 %v3731
  %3749 = vmatpush.bf16.msra.mxu0 %v3730
  %3750 = vmatpush.bf16.msra.mxu0 %v3729
  %3751 = vmatpush.bf16.msra.mxu0 %v3728
  %3752 = vmatmul.bf16.gmra.mxu0 %v1648
  %v3753 = vpop.f32.mrf.mxu0
  %v3754 = vadd.f32 %v3694, %v3753
  %v3755 = vpop.f32.mrf.mxu0
  %v3756 = vadd.f32 %v3694, %v3755
  %3757 = vdwg.mxu0
  %v3758 = vtanh.pop %v3754
  %v3759 = vtanh.pop %v3756
  %v3760 = vld [vmem:[%s10] sm:$0xf]
  %v3761 = vld [vmem:[%s10 + $0x4] sm:$0xf]
  %v3762 = vld [vmem:[%s10 + $0x8] sm:$0xf]
  %v3763 = vld [vmem:[%s10 + $0xc] sm:$0xf]
  %v3764 = vld [vmem:[%s10 + $0x10] sm:$0xf]
  %v3765 = vld [vmem:[%s10 + $0x14] sm:$0xf]
  %v3766 = vld [vmem:[%s10 + $0x18] sm:$0xf]
  %v3767 = vld [vmem:[%s10 + $0x1c] sm:$0xf]
  %v3768 = vld [vmem:[%s10 + $0x20] sm:$0xf]
  %v3769 = vld [vmem:[%s10 + $0x24] sm:$0xf]
  %v3770 = vld [vmem:[%s10 + $0x28] sm:$0xf]
  %v3771 = vld [vmem:[%s10 + $0x2c] sm:$0xf]
  %v3772 = vld [vmem:[%s10 + $0x30] sm:$0xf]
  %v3773 = vld [vmem:[%s10 + $0x34] sm:$0xf]
  %v3774 = vld [vmem:[%s10 + $0x38] sm:$0xf]
  %v3775 = vld [vmem:[%s10 + $0x3c] sm:$0xf]
  %v3776 = vld [vmem:[%s11] sm:$0x1]
  %v3778 = vperm.slane %v3776, 0
  %v3796 = vunpack.c.l.b16 %v3760
  %v3797 = vunpack.c.l.b16 %v3761
  %v3798 = vunpack.c.l.b16 %v3762
  %v3799 = vunpack.c.l.b16 %v3763
  %v3800 = vunpack.c.l.b16 %v3764
  %v3801 = vunpack.c.l.b16 %v3765
  %v3802 = vunpack.c.l.b16 %v3766
  %v3803 = vunpack.c.l.b16 %v3767
  %v3804 = vunpack.c.l.b16 %v3768
  %v3805 = vunpack.c.l.b16 %v3769
  %v3806 = vunpack.c.l.b16 %v3770
  %v3807 = vunpack.c.l.b16 %v3771
  %v3808 = vunpack.c.l.b16 %v3772
  %v3809 = vunpack.c.l.b16 %v3773
  %v3810 = vunpack.c.l.b16 %v3774
  %v3811 = vunpack.c.l.b16 %v3775
  %v3812 = vpack.c.b16 %v3797, %v3796
  %v3813 = vpack.c.b16 %v3799, %v3798
  %v3814 = vpack.c.b16 %v3801, %v3800
  %v3815 = vpack.c.b16 %v3803, %v3802
  %v3816 = vpack.c.b16 %v3805, %v3804
  %v3817 = vpack.c.b16 %v3807, %v3806
  %v3818 = vpack.c.b16 %v3809, %v3808
  %v3819 = vpack.c.b16 %v3811, %v3810
  %3828 = vmatpush.bf16.msra.mxu0 %v3819
  %3829 = vmatpush.bf16.msra.mxu0 %v3818
  %3830 = vmatpush.bf16.msra.mxu0 %v3817
  %3831 = vmatpush.bf16.msra.mxu0 %v3816
  %3832 = vmatpush.bf16.msra.mxu0 %v3815
  %3833 = vmatpush.bf16.msra.mxu0 %v3814
  %3834 = vmatpush.bf16.msra.mxu0 %v3813
  %3835 = vmatpush.bf16.msra.mxu0 %v3812
  %3836 = vmatmul.bf16.gmra.mxu0 %v3131
  %v3837 = vpop.f32.mrf.mxu0
  %v3838 = vadd.f32 %v3778, %v3837
  %v3839 = vpop.f32.mrf.mxu0
  %v3840 = vadd.f32 %v3778, %v3839
  %3841 = vdwg.mxu0
  %v3842 = vtanh.pop %v3838
  %v3843 = vtanh.pop %v3840
  %v3844 = vadd.f32 %v3758, %v3842
  %v3845 = vadd.f32 %v3759, %v3843
  %v3846 = vpack.c.bf16 %v3845, %v3844
  %v3847 = vld [vmem:[%s12] sm:$0xf]
  %v3848 = vld [vmem:[%s12 + $0x4] sm:$0xf]
  %v3849 = vld [vmem:[%s12 + $0x8] sm:$0xf]
  %v3850 = vld [vmem:[%s12 + $0xc] sm:$0xf]
  %v3851 = vld [vmem:[%s12 + $0x10] sm:$0xf]
  %v3852 = vld [vmem:[%s12 + $0x14] sm:$0xf]
  %v3853 = vld [vmem:[%s12 + $0x18] sm:$0xf]
  %v3854 = vld [vmem:[%s12 + $0x1c] sm:$0xf]
  %v3855 = vld [vmem:[%s12 + $0x20] sm:$0xf]
  %v3856 = vld [vmem:[%s12 + $0x24] sm:$0xf]
  %v3857 = vld [vmem:[%s12 + $0x28] sm:$0xf]
  %v3858 = vld [vmem:[%s12 + $0x2c] sm:$0xf]
  %v3859 = vld [vmem:[%s12 + $0x30] sm:$0xf]
  %v3860 = vld [vmem:[%s12 + $0x34] sm:$0xf]
  %v3861 = vld [vmem:[%s12 + $0x38] sm:$0xf]
  %v3862 = vld [vmem:[%s12 + $0x3c] sm:$0xf]
  %v3863 = vld [vmem:[%s13] sm:$0x1]
  %v3865 = vperm.slane %v3863, 0
  %v3883 = vunpack.c.l.b16 %v3847
  %v3884 = vunpack.c.l.b16 %v3848
  %v3885 = vunpack.c.l.b16 %v3849
  %v3886 = vunpack.c.l.b16 %v3850
  %v3887 = vunpack.c.l.b16 %v3851
  %v3888 = vunpack.c.l.b16 %v3852
  %v3889 = vunpack.c.l.b16 %v3853
  %v3890 = vunpack.c.l.b16 %v3854
  %v3891 = vunpack.c.l.b16 %v3855
  %v3892 = vunpack.c.l.b16 %v3856
  %v3893 = vunpack.c.l.b16 %v3857
  %v3894 = vunpack.c.l.b16 %v3858
  %v3895 = vunpack.c.l.b16 %v3859
  %v3896 = vunpack.c.l.b16 %v3860
  %v3897 = vunpack.c.l.b16 %v3861
  %v3898 = vunpack.c.l.b16 %v3862
  %v3899 = vpack.c.b16 %v3884, %v3883
  %v3900 = vpack.c.b16 %v3886, %v3885
  %v3901 = vpack.c.b16 %v3888, %v3887
  %v3902 = vpack.c.b16 %v3890, %v3889
  %v3903 = vpack.c.b16 %v3892, %v3891
  %v3904 = vpack.c.b16 %v3894, %v3893
  %v3905 = vpack.c.b16 %v3896, %v3895
  %v3906 = vpack.c.b16 %v3898, %v3897
  %3915 = vmatpush.bf16.msra.mxu0 %v3906
  %3916 = vmatpush.bf16.msra.mxu0 %v3905
  %3917 = vmatpush.bf16.msra.mxu0 %v3904
  %3918 = vmatpush.bf16.msra.mxu0 %v3903
  %3919 = vmatpush.bf16.msra.mxu0 %v3902
  %3920 = vmatpush.bf16.msra.mxu0 %v3901
  %3921 = vmatpush.bf16.msra.mxu0 %v3900
  %3922 = vmatpush.bf16.msra.mxu0 %v3899
  %3923 = vmatmul.bf16.gmra.mxu0 %v3846
  %v3924 = vpop.f32.mrf.mxu0
  %v3925 = vadd.f32 %v3865, %v3924
  %v3926 = vpop.f32.mrf.mxu0
  %v3927 = vadd.f32 %v3865, %v3926
  %3928 = vdwg.mxu0
  %v3929 = vtanh.pop %v3925
  %v3930 = vtanh.pop %v3927
  %3931 = vmax.xlane.f32.xlu0 %v3929
  %v3932 = vpop.xlane.xlu0 %3931
  %3933 = vmax.xlane.f32.xlu0 %v3930
  %v3934 = vpop.xlane.xlu0 %3933
  %v3935 = vsub.f32 %v3929, %v3932
  %v3936 = vsub.f32 %v3930, %v3934
  %v3937 = vmul.f32 %v3935, 1.442695
  %v3938 = vpow.pop %v3937
  %v3939 = vmul.f32 %v3936, 1.442695
  %v3940 = vpow.pop %v3939
  %3941 = vadd.xlane.f32.xlu0 %v3938
  %v3942 = vpop.xlane.xlu0 %3941
  %3943 = vadd.xlane.f32.xlu0 %v3940
  %v3944 = vpop.xlane.xlu0 %3943
  %v3945 = vrcp.pop %v3942
  %v3946 = vrcp.pop %v3944
  %v3947 = vmul.f32 %v3938, %v3945
  %v3948 = vmul.f32 %v3940, %v3946
  %v3949 = vmul.f32 %v3947, %v1596
  %v3950 = vmul.f32 %v3948, %v1599
  %v3951 = vpack.c.bf16 %v3949, %v3949
  %v3952 = vpack.c.bf16 %v3950, %v3950
  %v3955 = vunpack.c.l.b16 %v3951
  %v3956 = vunpack.c.l.b16 %v3952
  %v3957 = vpack.c.b16 %v3956, %v3955
  %v3959 = vld [vmem:[%s14] sm:$0xff]
  %v3960 = vld [vmem:[%s14 + $0x8] sm:$0xff]
  %v3961 = vld [vmem:[%s14 + $0x10] sm:$0xff]
  %v3962 = vld [vmem:[%s14 + $0x18] sm:$0xff]
  %v3963 = vld [vmem:[%s14 + $0x20] sm:$0xff]
  %v3964 = vld [vmem:[%s14 + $0x28] sm:$0xff]
  %v3965 = vld [vmem:[%s14 + $0x30] sm:$0xff]
  %v3966 = vld [vmem:[%s14 + $0x38] sm:$0xff]
  %v3967 = vld [vmem:[%s14 + $0x40] sm:$0xff]
  %v3968 = vld [vmem:[%s14 + $0x48] sm:$0xff]
  %v3969 = vld [vmem:[%s14 + $0x50] sm:$0xff]
  %v3970 = vld [vmem:[%s14 + $0x58] sm:$0xff]
  %v3971 = vld [vmem:[%s14 + $0x60] sm:$0xff]
  %v3972 = vld [vmem:[%s14 + $0x68] sm:$0xff]
  %v3973 = vld [vmem:[%s14 + $0x70] sm:$0xff]
  %v3974 = vld [vmem:[%s14 + $0x78] sm:$0xff]
  %v3975 = vld [vmem:[%s14 + $0x80] sm:$0xff]
  %v3976 = vld [vmem:[%s14 + $0x88] sm:$0xff]
  %v3977 = vld [vmem:[%s14 + $0x90] sm:$0xff]
  %v3978 = vld [vmem:[%s14 + $0x98] sm:$0xff]
  %v3979 = vld [vmem:[%s14 + $0xa0] sm:$0xff]
  %v3980 = vld [vmem:[%s14 + $0xa8] sm:$0xff]
  %v3981 = vld [vmem:[%s14 + $0xb0] sm:$0xff]
  %v3982 = vld [vmem:[%s14 + $0xb8] sm:$0xff]
  %v3983 = vld [vmem:[%s14 + $0xc0] sm:$0xff]
  %v3984 = vld [vmem:[%s14 + $0xc8] sm:$0xff]
  %v3985 = vld [vmem:[%s14 + $0xd0] sm:$0xff]
  %v3986 = vld [vmem:[%s14 + $0xd8] sm:$0xff]
  %v3987 = vld [vmem:[%s14 + $0xe0] sm:$0xff]
  %v3988 = vld [vmem:[%s14 + $0xe8] sm:$0xff]
  %v3989 = vld [vmem:[%s14 + $0xf0] sm:$0xff]
  %v3990 = vld [vmem:[%s14 + $0xf8] sm:$0xff]
  %v3991 = vld [vmem:[%s15] sm:$0x3]
  %v3993 = vperm.slane %v3991, 0
  %v3994 = vperm.slane %v3991, 1
  %v4029 = vunpack.c.l.b16 %v3959
  %v4030 = vunpack.c.h.b16 %v3959
  %v4031 = vunpack.c.l.b16 %v3960
  %v4032 = vunpack.c.h.b16 %v3960
  %v4033 = vunpack.c.l.b16 %v3961
  %v4034 = vunpack.c.h.b16 %v3961
  %v4035 = vunpack.c.l.b16 %v3962
  %v4036 = vunpack.c.h.b16 %v3962
  %v4037 = vunpack.c.l.b16 %v3963
  %v4038 = vunpack.c.h.b16 %v3963
  %v4039 = vunpack.c.l.b16 %v3964
  %v4040 = vunpack.c.h.b16 %v3964
  %v4041 = vunpack.c.l.b16 %v3965
  %v4042 = vunpack.c.h.b16 %v3965
  %v4043 = vunpack.c.l.b16 %v3966
  %v4044 = vunpack.c.h.b16 %v3966
  %v4045 = vunpack.c.l.b16 %v3967
  %v4046 = vunpack.c.h.b16 %v3967
  %v4047 = vunpack.c.l.b16 %v3968
  %v4048 = vunpack.c.h.b16 %v3968
  %v4049 = vunpack.c.l.b16 %v3969
  %v4050 = vunpack.c.h.b16 %v3969
  %v4051 = vunpack.c.l.b16 %v3970
  %v4052 = vunpack.c.h.b16 %v3970
  %v4053 = vunpack.c.l.b16 %v3971
  %v4054 = vunpack.c.h.b16 %v3971
  %v4055 = vunpack.c.l.b16 %v3972
  %v4056 = vunpack.c.h.b16 %v3972
  %v4057 = vunpack.c.l.b16 %v3973
  %v4058 = vunpack.c.h.b16 %v3973
  %v4059 = vunpack.c.l.b16 %v3974
  %v4060 = vunpack.c.h.b16 %v3974
  %v4061 = vunpack.c.l.b16 %v3975
  %v4062 = vunpack.c.h.b16 %v3975
  %v4063 = vunpack.c.l.b16 %v3976
  %v4064 = vunpack.c.h.b16 %v3976
  %v4065 = vunpack.c.l.b16 %v3977
  %v4066 = vunpack.c.h.b16 %v3977
  %v4067 = vunpack.c.l.b16 %v3978
  %v4068 = vunpack.c.h.b16 %v3978
  %v4069 = vunpack.c.l.b16 %v3979
  %v4070 = vunpack.c.h.b16 %v3979
  %v4071 = vunpack.c.l.b16 %v3980
  %v4072 = vunpack.c.h.b16 %v3980
  %v4073 = vunpack.c.l.b16 %v3981
  %v4074 = vunpack.c.h.b16 %v3981
  %v4075 = vunpack.c.l.b16 %v3982
  %v4076 = vunpack.c.h.b16 %v3982
  %v4077 = vunpack.c.l.b16 %v3983
  %v4078 = vunpack.c.h.b16 %v3983
  %v4079 = vunpack.c.l.b16 %v3984
  %v4080 = vunpack.c.h.b16 %v3984
  %v4081 = vunpack.c.l.b16 %v3985
  %v4082 = vunpack.c.h.b16 %v3985
  %v4083 = vunpack.c.l.b16 %v3986
  %v4084 = vunpack.c.h.b16 %v3986
  %v4085 = vunpack.c.l.b16 %v3987
  %v4086 = vunpack.c.h.b16 %v3987
  %v4087 = vunpack.c.l.b16 %v3988
  %v4088 = vunpack.c.h.b16 %v3988
  %v4089 = vunpack.c.l.b16 %v3989
  %v4090 = vunpack.c.h.b16 %v3989
  %v4091 = vunpack.c.l.b16 %v3990
  %v4092 = vunpack.c.h.b16 %v3990
  %v4093 = vpack.c.b16 %v4031, %v4029
  %v4094 = vpack.c.b16 %v4032, %v4030
  %v4095 = vpack.c.b16 %v4035, %v4033
  %v4096 = vpack.c.b16 %v4036, %v4034
  %v4097 = vpack.c.b16 %v4039, %v4037
  %v4098 = vpack.c.b16 %v4040, %v4038
  %v4099 = vpack.c.b16 %v4043, %v4041
  %v4100 = vpack.c.b16 %v4044, %v4042
  %v4101 = vpack.c.b16 %v4047, %v4045
  %v4102 = vpack.c.b16 %v4048, %v4046
  %v4103 = vpack.c.b16 %v4051, %v4049
  %v4104 = vpack.c.b16 %v4052, %v4050
  %v4105 = vpack.c.b16 %v4055, %v4053
  %v4106 = vpack.c.b16 %v4056, %v4054
  %v4107 = vpack.c.b16 %v4059, %v4057
  %v4108 = vpack.c.b16 %v4060, %v4058
  %v4109 = vpack.c.b16 %v4063, %v4061
  %v4110 = vpack.c.b16 %v4064, %v4062
  %v4111 = vpack.c.b16 %v4067, %v4065
  %v4112 = vpack.c.b16 %v4068, %v4066
  %v4113 = vpack.c.b16 %v4071, %v4069
  %v4114 = vpack.c.b16 %v4072, %v4070
  %v4115 = vpack.c.b16 %v4075, %v4073
  %v4116 = vpack.c.b16 %v4076, %v4074
  %v4117 = vpack.c.b16 %v4079, %v4077
  %v4118 = vpack.c.b16 %v4080, %v4078
  %v4119 = vpack.c.b16 %v4083, %v4081
  %v4120 = vpack.c.b16 %v4084, %v4082
  %v4121 = vpack.c.b16 %v4087, %v4085
  %v4122 = vpack.c.b16 %v4088, %v4086
  %v4123 = vpack.c.b16 %v4091, %v4089
  %v4124 = vpack.c.b16 %v4092, %v4090
  %4157 = vmatpush.bf16.msra.mxu0 %v4107
  %4158 = vmatpush.bf16.msra.mxu0 %v4105
  %4159 = vmatpush.bf16.msra.mxu0 %v4103
  %4160 = vmatpush.bf16.msra.mxu0 %v4101
  %4161 = vmatpush.bf16.msra.mxu0 %v4099
  %4162 = vmatpush.bf16.msra.mxu0 %v4097
  %4163 = vmatpush.bf16.msra.mxu0 %v4095
  %4164 = vmatpush.bf16.msra.mxu0 %v4093
  %4165 = vmatmul.bf16.gmra.mxu0 %v1648
  %v4166 = vpop.f32.mrf.mxu0
  %v4167 = vadd.f32 %v3993, %v4166
  %v4168 = vpop.f32.mrf.mxu0
  %v4169 = vadd.f32 %v3993, %v4168
  %4170 = vdwg.mxu0
  %4171 = vmatpush.bf16.msra.mxu0 %v4123
  %4172 = vmatpush.bf16.msra.mxu0 %v4121
  %4173 = vmatpush.bf16.msra.mxu0 %v4119
  %4174 = vmatpush.bf16.msra.mxu0 %v4117
  %4175 = vmatpush.bf16.msra.mxu0 %v4115
  %4176 = vmatpush.bf16.msra.mxu0 %v4113
  %4177 = vmatpush.bf16.msra.mxu0 %v4111
  %4178 = vmatpush.bf16.msra.mxu0 %v4109
  %4179 = vmatmul.bf16.gmra.mxu0 %v3957
  %v4180 = vpop.f32.mrf.mxu0
  %v4181 = vadd.f32 %v4167, %v4180
  %v4182 = vpop.f32.mrf.mxu0
  %v4183 = vadd.f32 %v4169, %v4182
  %4184 = vdwg.mxu0
  %4185 = vmatpush.bf16.msra.mxu0 %v4108
  %4186 = vmatpush.bf16.msra.mxu0 %v4106
  %4187 = vmatpush.bf16.msra.mxu0 %v4104
  %4188 = vmatpush.bf16.msra.mxu0 %v4102
  %4189 = vmatpush.bf16.msra.mxu0 %v4100
  %4190 = vmatpush.bf16.msra.mxu0 %v4098
  %4191 = vmatpush.bf16.msra.mxu0 %v4096
  %4192 = vmatpush.bf16.msra.mxu0 %v4094
  %4193 = vmatmul.bf16.gmra.mxu0 %v1648
  %v4194 = vpop.f32.mrf.mxu0
  %v4195 = vadd.f32 %v3994, %v4194
  %v4196 = vpop.f32.mrf.mxu0
  %v4197 = vadd.f32 %v3994, %v4196
  %4198 = vdwg.mxu0
  %4199 = vmatpush.bf16.msra.mxu0 %v4124
  %4200 = vmatpush.bf16.msra.mxu0 %v4122
  %4201 = vmatpush.bf16.msra.mxu0 %v4120
  %4202 = vmatpush.bf16.msra.mxu0 %v4118
  %4203 = vmatpush.bf16.msra.mxu0 %v4116
  %4204 = vmatpush.bf16.msra.mxu0 %v4114
  %4205 = vmatpush.bf16.msra.mxu0 %v4112
  %4206 = vmatpush.bf16.msra.mxu0 %v4110
  %4207 = vmatmul.bf16.gmra.mxu0 %v3957
  %v4208 = vpop.f32.mrf.mxu0
  %v4209 = vadd.f32 %v4195, %v4208
  %v4210 = vpop.f32.mrf.mxu0
  %v4211 = vadd.f32 %v4197, %v4210
  %4212 = vdwg.mxu0
  %4213 = vst [vmem:[%s20] sm:$0xff] %v4181
  %4214 = vst [vmem:[%s20 + $0x10] sm:$0xff] %v4183
  %v4215 = vadd.f32 %v4209, %v3674
  %v4216 = vadd.f32 %v4211, %v3675
  %4217 = vst [vmem:[%s20 + $0x8] sm:$0xff] %v4215
  %4218 = vst [vmem:[%s20 + $0x18] sm:$0xff] %v4216
  // Predicated region
  $region82: #{kvmm_forward.1} parent=0 // pred_check
    _
  $region83: #{kvmm_forward.1} parent=0 // pred_check_branch
    %4220 = sbr.rel (0) target = $region85
  $region84: #{kvmm_forward.1} parent=0 // pred_region
    _
  $region85: #{kvmm_forward.1} parent=0 // pred_fallthru
    _
  // Predicated region
  $region86: #{kvmm_forward.1} parent=0 // pred_check
    _
  $region87: #{kvmm_forward.1} parent=0 // pred_check_branch
    %4222 = sbr.rel (0) target = $region89
  $region88: #{kvmm_forward.1} parent=0 // pred_region
    _
  $region89: #{kvmm_forward.1} parent=0 // pred_fallthru
    _

</llo_original>
